<compile_context>
chip_gen: v6e
topology: v6e:2x2x1
jax: 0.10.0
libtpu: 0.0.40
codegen_flags: <defaults>
</compile_context>

<pallas_src>
import jax
import jax.numpy as jnp
from jax.experimental import pallas as pl
from jax.experimental.pallas import tpu as pltpu

LANE = 128


def _round_up(n, m):
    return -(-n // m) * m


# -----------------------------------------------------------------------------
# Pallas kernel
# -----------------------------------------------------------------------------
def seq2seq_kernel(xe_ref, xd_ref,
                   wihe_ref, whhe_ref, bihe_ref, bhhe_ref,
                   wihd_ref, whhd_ref, bihd_ref, bhhd_ref,
                   wfc_ref, bfc_ref,
                   out_ref,
                   h_acc_ref):
    HP = whhe_ref.shape[0]           # padded hidden width (lane aligned, 128)
    G = wihe_ref.shape[1] // 3       # padded gate stride (== HP here)
    T_in = xe_ref.shape[0]
    T_out = out_ref.shape[0]

    # ---- hoisted weight/bias loads (reused by every unrolled step) ----
    whhe = whhe_ref[...]
    bhhe = bhhe_ref[...]
    whhd = whhd_ref[...]
    bhhd = bhhd_ref[...]

    # ---- batched input-side projections: pulled off the serial chain ----
    # b_ih is folded in here, so each recurrence step only does h @ W_hh + b_hh.
    gi_enc = (jnp.dot(xe_ref[...], wihe_ref[...],
                      preferred_element_type=jnp.float32) + bihe_ref[...])   # (T_in, 3G)
    gi_dec = (jnp.dot(xd_ref[...], wihd_ref[...],
                      preferred_element_type=jnp.float32) + bihd_ref[...])   # (2, 3G)
    gi_dec0 = gi_dec[0:1, :]         # decoder step 0 (token 0)
    gi_dec1 = gi_dec[1:2, :]         # decoder steps >= 1 (targets[1]) — reused 7x

    def gru_step(gi_t, h, whh, bhh):
        # PyTorch nn.GRU cell (gate order r, z, n):
        #   r = sigmoid(gi_r + gh_r); z = sigmoid(gi_z + gh_z)
        #   n = tanh(gi_n + r * gh_n); h' = (1 - z) * n + z * h
        gh = jnp.dot(h, whh, preferred_element_type=jnp.float32) + bhh       # (1, 3G)
        r = jax.nn.sigmoid(gi_t[:, 0:G] + gh[:, 0:G])
        z = jax.nn.sigmoid(gi_t[:, G:2 * G] + gh[:, G:2 * G])
        n = jnp.tanh(gi_t[:, 2 * G:3 * G] + r * gh[:, 2 * G:3 * G])
        return (1.0 - z) * n + z * h

    # ---- encoder recurrence (fully unrolled; all slices static) ----
    h = jnp.zeros((1, HP), jnp.float32)
    for t in range(T_in):
        h = gru_step(gi_enc[t:t + 1, :], h, whhe, bhhe)

    # ---- decoder recurrence (fully unrolled); stash h rows in VMEM scratch ----
    for t in range(T_out):
        h = gru_step(gi_dec0 if t == 0 else gi_dec1, h, whhd, bhhd)
        h_acc_ref[pl.ds(t, 1), :] = h

    # ---- final Linear over all decoder states: one MXU op + lane-dense store --
    out_ref[...] = (jnp.dot(h_acc_ref[...], wfc_ref[...],
                            preferred_element_type=jnp.float32) + bfc_ref[...])


# -----------------------------------------------------------------------------
# Parameter packing: natural (PyTorch-like, transposed) layout -> padded layout
# -----------------------------------------------------------------------------
def _pad_gate_cols(w, H, G):
    """(..., 3H) -> (..., 3G): place each gate block [r|z|n] at a G-aligned offset."""
    parts = []
    for g in range(3):
        blk = w[..., g * H:(g + 1) * H]
        pad = jnp.zeros(w.shape[:-1] + (G - H,), w.dtype)
        parts.append(jnp.concatenate([blk, pad], axis=-1))
    return jnp.concatenate(parts, axis=-1)


def _pad_rows(w, H, HP):
    """(H, N) -> (HP, N) with zero rows appended."""
    return jnp.concatenate([w, jnp.zeros((HP - H,) + w.shape[1:], w.dtype)], axis=0)


def pack_params(params, hidden_size):
    """One-time repack of natural-layout params into the padded kernel layout."""
    H = hidden_size
    HP = _round_up(H, LANE)
    p = {"embedding": params["embedding"],
         "w_fc": _pad_rows(params["w_fc"], H, HP),        # (HP, V)
         "b_fc": params["b_fc"]}                           # (1, V)
    for side in ("enc", "dec"):
        p[f"w_ih_{side}"] = _pad_gate_cols(params[f"w_ih_{side}"], H, HP)                    # (H, 3HP)
        p[f"w_hh_{side}"] = _pad_rows(_pad_gate_cols(params[f"w_hh_{side}"], H, HP), H, HP)  # (HP, 3HP)
        p[f"b_ih_{side}"] = _pad_gate_cols(params[f"b_ih_{side}"], H, HP)                    # (1, 3HP)
        p[f"b_hh_{side}"] = _pad_gate_cols(params[f"b_hh_{side}"], H, HP)                    # (1, 3HP)
    return p


# -----------------------------------------------------------------------------
# Forward wrapper
# -----------------------------------------------------------------------------
@jax.jit
def seq2seq_forward(inputs, targets, packed):
    """Reproduces Seq2SeqNet.forward(inputs, targets) -> (T_out, vocab) logits."""
    emb = packed["embedding"]                        # (V, H)
    T_out = targets.shape[0]
    HP = packed["w_fc"].shape[0]
    V = packed["w_fc"].shape[1]

    # glue: tiny embedding gathers (no clean in-kernel equivalent needed)
    x_enc = emb[inputs]                              # (T_in, H)
    dec_tokens = jnp.stack([jnp.zeros((), jnp.int32), targets[1].astype(jnp.int32)])
    x_dec = emb[dec_tokens]                          # (2, H): token 0, then targets[1]

    vmem = pl.BlockSpec(memory_space=pltpu.MemorySpace.VMEM)
    # Whole-array VMEM invocation: total footprint ~115 KiB, so no grid / tiling
    # / pipelining — the kernel is purely latency (serial recurrence) bound.
    return pl.pallas_call(
        seq2seq_kernel,
        out_shape=jax.ShapeDtypeStruct((T_out, V), jnp.float32),
        in_specs=[vmem] * 12,
        out_specs=vmem,
        scratch_shapes=[pltpu.VMEM((T_out, HP), jnp.float32)],
    )(x_enc, x_dec,
      packed["w_ih_enc"], packed["w_hh_enc"], packed["b_ih_enc"], packed["b_hh_enc"],
      packed["w_ih_dec"], packed["w_hh_dec"], packed["b_ih_dec"], packed["b_hh_dec"],
      packed["w_fc"], packed["b_fc"])


# -----------------------------------------------------------------------------
# Params + pure-JAX reference (for a sanity check)
# -----------------------------------------------------------------------------
def init_params(key, vocab_size, hidden_size):
    H = hidden_size
    ks = jax.random.split(key, 11)
    s = 1.0 / jnp.sqrt(jnp.float32(H))

    def u(k, shape):
        return jax.random.uniform(k, shape, jnp.float32, -s, s)

    return {
        "embedding": jax.random.normal(ks[0], (vocab_size, H), jnp.float32),
        # GRU weights transposed to (H, 3H); gate order r, z, n
        "w_ih_enc": u(ks[1], (H, 3 * H)), "w_hh_enc": u(ks[2], (H, 3 * H)),
        "b_ih_enc": u(ks[3], (1, 3 * H)), "b_hh_enc": u(ks[4], (1, 3 * H)),
        "w_ih_dec": u(ks[5], (H, 3 * H)), "w_hh_dec": u(ks[6], (H, 3 * H)),
        "b_ih_dec": u(ks[7], (1, 3 * H)), "b_hh_dec": u(ks[8], (1, 3 * H)),
        # fc: Linear(H, vocab) transposed to (H, V)
        "w_fc": u(ks[9], (H, vocab_size)), "b_fc": u(ks[10], (1, vocab_size)),
    }


def _gru_cell_ref(x, h, w_ih, w_hh, b_ih, b_hh, H):
    gi = x @ w_ih + b_ih
    gh = h @ w_hh + b_hh
    r = jax.nn.sigmoid(gi[:, 0:H] + gh[:, 0:H])
    z = jax.nn.sigmoid(gi[:, H:2 * H] + gh[:, H:2 * H])
    n = jnp.tanh(gi[:, 2 * H:3 * H] + r * gh[:, 2 * H:3 * H])
    return (1.0 - z) * n + z * h


def seq2seq_reference(inputs, targets, params, H):
    emb = params["embedding"]
    h = jnp.zeros((1, H), jnp.float32)
    for t in range(inputs.shape[0]):
        h = _gru_cell_ref(emb[inputs[t]][None, :], h,
                          params["w_ih_enc"], params["w_hh_enc"],
                          params["b_ih_enc"], params["b_hh_enc"], H)
    outs = []
    dec_tok = jnp.zeros((), jnp.int32)
    for _ in range(targets.shape[0]):
        h = _gru_cell_ref(emb[dec_tok][None, :], h,
                          params["w_ih_dec"], params["w_hh_dec"],
                          params["b_ih_dec"], params["b_hh_dec"], H)
        outs.append(h @ params["w_fc"] + params["b_fc"])
        dec_tok = targets[1].astype(jnp.int32)
    return jnp.concatenate(outs, axis=0)


if __name__ == "__main__":
    vocab_size = 256
    hidden_size = 32
    T_in = 8
    T_out = 8

    key = jax.random.PRNGKey(0)
    k_param, k_in, k_tgt = jax.random.split(key, 3)

    params = init_params(k_param, vocab_size, hidden_size)
    packed = pack_params(params, hidden_size)

    inputs = jax.random.randint(k_in, (T_in,), 0, vocab_size, jnp.int32)
    targets = jax.random.randint(k_tgt, (T_out,), 0, vocab_size, jnp.int32)

    out = seq2seq_forward(inputs, targets, packed)
    out = jax.block_until_ready(out)
    assert out.shape == (T_out, vocab_size), out.shape
    assert jnp.all(jnp.isfinite(out))

    # Sanity check vs pure-JAX reference (loose tol: MXU vs XLA matmul rounding).
    ref = seq2seq_reference(inputs, targets, params, hidden_size)
    assert jnp.allclose(out, ref, atol=1e-1, rtol=1e-2), float(jnp.max(jnp.abs(out - ref)))

    print("KERNEL_OK")
</pallas_src>

<mosaic_0001>
module attributes {stable_mosaic.version = 11 : i64} {
  func.func @seq2seq_kernel(%arg0: memref<8x32xf32, #tpu.memory_space<vmem>>, %arg1: memref<2x32xf32, #tpu.memory_space<vmem>>, %arg2: memref<32x384xf32, #tpu.memory_space<vmem>>, %arg3: memref<128x384xf32, #tpu.memory_space<vmem>>, %arg4: memref<1x384xf32, #tpu.memory_space<vmem>>, %arg5: memref<1x384xf32, #tpu.memory_space<vmem>>, %arg6: memref<32x384xf32, #tpu.memory_space<vmem>>, %arg7: memref<128x384xf32, #tpu.memory_space<vmem>>, %arg8: memref<1x384xf32, #tpu.memory_space<vmem>>, %arg9: memref<1x384xf32, #tpu.memory_space<vmem>>, %arg10: memref<128x256xf32, #tpu.memory_space<vmem>>, %arg11: memref<1x256xf32, #tpu.memory_space<vmem>>, %arg12: memref<8x256xf32, #tpu.memory_space<vmem>>, %arg13: memref<8x128xf32, #tpu.memory_space<vmem>>) attributes {dimension_semantics = [], scalar_prefetch = 0 : i64, scratch_operands = 1 : i64, tpu.core_type = #tpu.core_type<tc>} {
    %c0 = arith.constant 0 : index
    %c0_0 = arith.constant 0 : index
    %0 = vector.load %arg3[%c0, %c0_0] : memref<128x384xf32, #tpu.memory_space<vmem>>, vector<128x384xf32>
    %c0_1 = arith.constant 0 : index
    %c0_2 = arith.constant 0 : index
    %1 = vector.load %arg5[%c0_1, %c0_2] : memref<1x384xf32, #tpu.memory_space<vmem>>, vector<1x384xf32>
    %c0_3 = arith.constant 0 : index
    %c0_4 = arith.constant 0 : index
    %2 = vector.load %arg7[%c0_3, %c0_4] : memref<128x384xf32, #tpu.memory_space<vmem>>, vector<128x384xf32>
    %c0_5 = arith.constant 0 : index
    %c0_6 = arith.constant 0 : index
    %3 = vector.load %arg9[%c0_5, %c0_6] : memref<1x384xf32, #tpu.memory_space<vmem>>, vector<1x384xf32>
    %c0_7 = arith.constant 0 : index
    %c0_8 = arith.constant 0 : index
    %4 = vector.load %arg0[%c0_7, %c0_8] : memref<8x32xf32, #tpu.memory_space<vmem>>, vector<8x32xf32>
    %c0_9 = arith.constant 0 : index
    %c0_10 = arith.constant 0 : index
    %5 = vector.load %arg2[%c0_9, %c0_10] : memref<32x384xf32, #tpu.memory_space<vmem>>, vector<32x384xf32>
    %cst = arith.constant dense<0.000000e+00> : vector<8x384xf32>
    %6 = tpu.matmul %4, %5, %cst {dimension_numbers = #tpu.dot_dimension_numbers<[1], [0], [0], [1], [0, 0, 1, 1], [], []>} : vector<8x32xf32>, vector<32x384xf32>, vector<8x384xf32> -> vector<8x384xf32>
    %c0_11 = arith.constant 0 : index
    %c0_12 = arith.constant 0 : index
    %7 = vector.load %arg4[%c0_11, %c0_12] : memref<1x384xf32, #tpu.memory_space<vmem>>, vector<1x384xf32>
    %8 = vector.broadcast %7 : vector<1x384xf32> to vector<8x384xf32>
    %9 = arith.addf %6, %8 : vector<8x384xf32>
    %c0_13 = arith.constant 0 : index
    %c0_14 = arith.constant 0 : index
    %10 = vector.load %arg1[%c0_13, %c0_14] : memref<2x32xf32, #tpu.memory_space<vmem>>, vector<2x32xf32>
    %c0_15 = arith.constant 0 : index
    %c0_16 = arith.constant 0 : index
    %11 = vector.load %arg6[%c0_15, %c0_16] : memref<32x384xf32, #tpu.memory_space<vmem>>, vector<32x384xf32>
    %cst_17 = arith.constant dense<0.000000e+00> : vector<2x384xf32>
    %12 = tpu.matmul %10, %11, %cst_17 {dimension_numbers = #tpu.dot_dimension_numbers<[1], [0], [0], [1], [0, 0, 1, 1], [], []>} : vector<2x32xf32>, vector<32x384xf32>, vector<2x384xf32> -> vector<2x384xf32>
    %c0_18 = arith.constant 0 : index
    %c0_19 = arith.constant 0 : index
    %13 = vector.load %arg8[%c0_18, %c0_19] : memref<1x384xf32, #tpu.memory_space<vmem>>, vector<1x384xf32>
    %14 = vector.broadcast %13 : vector<1x384xf32> to vector<2x384xf32>
    %15 = arith.addf %12, %14 : vector<2x384xf32>
    %16 = vector.extract_strided_slice %15 {offsets = [0, 0], sizes = [1, 384], strides = [1, 1]} : vector<2x384xf32> to vector<1x384xf32>
    %17 = vector.extract_strided_slice %15 {offsets = [1, 0], sizes = [1, 384], strides = [1, 1]} : vector<2x384xf32> to vector<1x384xf32>
    %cst_20 = arith.constant 0.000000e+00 : f32
    %18 = vector.broadcast %cst_20 : f32 to vector<1x128xf32>
    %19 = vector.extract_strided_slice %9 {offsets = [0, 0], sizes = [1, 384], strides = [1, 1]} : vector<8x384xf32> to vector<1x384xf32>
    %cst_21 = arith.constant dense<0.000000e+00> : vector<1x384xf32>
    %20 = tpu.matmul %18, %0, %cst_21 {dimension_numbers = #tpu.dot_dimension_numbers<[1], [0], [0], [1], [0, 0, 1, 1], [], []>} : vector<1x128xf32>, vector<128x384xf32>, vector<1x384xf32> -> vector<1x384xf32>
    %21 = arith.addf %20, %1 : vector<1x384xf32>
    %22 = vector.extract_strided_slice %19 {offsets = [0, 0], sizes = [1, 128], strides = [1, 1]} : vector<1x384xf32> to vector<1x128xf32>
    %23 = vector.extract_strided_slice %21 {offsets = [0, 0], sizes = [1, 128], strides = [1, 1]} : vector<1x384xf32> to vector<1x128xf32>
    %24 = arith.addf %22, %23 : vector<1x128xf32>
    %25 = arith.negf %24 : vector<1x128xf32>
    %26 = math.exp %25 : vector<1x128xf32>
    %cst_22 = arith.constant 1.000000e+00 : f32
    %27 = vector.broadcast %cst_22 : f32 to vector<1x128xf32>
    %28 = arith.addf %27, %26 : vector<1x128xf32>
    %29 = arith.divf %27, %28 : vector<1x128xf32>
    %30 = vector.extract_strided_slice %19 {offsets = [0, 128], sizes = [1, 128], strides = [1, 1]} : vector<1x384xf32> to vector<1x128xf32>
    %31 = vector.extract_strided_slice %21 {offsets = [0, 128], sizes = [1, 128], strides = [1, 1]} : vector<1x384xf32> to vector<1x128xf32>
    %32 = arith.addf %30, %31 : vector<1x128xf32>
    %33 = arith.negf %32 : vector<1x128xf32>
    %34 = math.exp %33 : vector<1x128xf32>
    %cst_23 = arith.constant 1.000000e+00 : f32
    %35 = vector.broadcast %cst_23 : f32 to vector<1x128xf32>
    %36 = arith.addf %35, %34 : vector<1x128xf32>
    %37 = arith.divf %35, %36 : vector<1x128xf32>
    %38 = vector.extract_strided_slice %19 {offsets = [0, 256], sizes = [1, 128], strides = [1, 1]} : vector<1x384xf32> to vector<1x128xf32>
    %39 = vector.extract_strided_slice %21 {offsets = [0, 256], sizes = [1, 128], strides = [1, 1]} : vector<1x384xf32> to vector<1x128xf32>
    %40 = arith.mulf %29, %39 : vector<1x128xf32>
    %41 = arith.addf %38, %40 : vector<1x128xf32>
    %42 = math.tanh %41 : vector<1x128xf32>
    %cst_24 = arith.constant 1.000000e+00 : f32
    %43 = vector.broadcast %cst_24 : f32 to vector<1x128xf32>
    %44 = arith.subf %43, %37 : vector<1x128xf32>
    %45 = arith.mulf %44, %42 : vector<1x128xf32>
    %46 = arith.mulf %37, %18 : vector<1x128xf32>
    %47 = arith.addf %45, %46 : vector<1x128xf32>
    %48 = vector.extract_strided_slice %9 {offsets = [1, 0], sizes = [1, 384], strides = [1, 1]} : vector<8x384xf32> to vector<1x384xf32>
    %cst_25 = arith.constant dense<0.000000e+00> : vector<1x384xf32>
    %49 = tpu.matmul %47, %0, %cst_25 {dimension_numbers = #tpu.dot_dimension_numbers<[1], [0], [0], [1], [0, 0, 1, 1], [], []>} : vector<1x128xf32>, vector<128x384xf32>, vector<1x384xf32> -> vector<1x384xf32>
    %50 = arith.addf %49, %1 : vector<1x384xf32>
    %51 = vector.extract_strided_slice %48 {offsets = [0, 0], sizes = [1, 128], strides = [1, 1]} : vector<1x384xf32> to vector<1x128xf32>
    %52 = vector.extract_strided_slice %50 {offsets = [0, 0], sizes = [1, 128], strides = [1, 1]} : vector<1x384xf32> to vector<1x128xf32>
    %53 = arith.addf %51, %52 : vector<1x128xf32>
    %54 = arith.negf %53 : vector<1x128xf32>
    %55 = math.exp %54 : vector<1x128xf32>
    %cst_26 = arith.constant 1.000000e+00 : f32
    %56 = vector.broadcast %cst_26 : f32 to vector<1x128xf32>
    %57 = arith.addf %56, %55 : vector<1x128xf32>
    %58 = arith.divf %56, %57 : vector<1x128xf32>
    %59 = vector.extract_strided_slice %48 {offsets = [0, 128], sizes = [1, 128], strides = [1, 1]} : vector<1x384xf32> to vector<1x128xf32>
    %60 = vector.extract_strided_slice %50 {offsets = [0, 128], sizes = [1, 128], strides = [1, 1]} : vector<1x384xf32> to vector<1x128xf32>
    %61 = arith.addf %59, %60 : vector<1x128xf32>
    %62 = arith.negf %61 : vector<1x128xf32>
    %63 = math.exp %62 : vector<1x128xf32>
    %cst_27 = arith.constant 1.000000e+00 : f32
    %64 = vector.broadcast %cst_27 : f32 to vector<1x128xf32>
    %65 = arith.addf %64, %63 : vector<1x128xf32>
    %66 = arith.divf %64, %65 : vector<1x128xf32>
    %67 = vector.extract_strided_slice %48 {offsets = [0, 256], sizes = [1, 128], strides = [1, 1]} : vector<1x384xf32> to vector<1x128xf32>
    %68 = vector.extract_strided_slice %50 {offsets = [0, 256], sizes = [1, 128], strides = [1, 1]} : vector<1x384xf32> to vector<1x128xf32>
    %69 = arith.mulf %58, %68 : vector<1x128xf32>
    %70 = arith.addf %67, %69 : vector<1x128xf32>
    %71 = math.tanh %70 : vector<1x128xf32>
    %cst_28 = arith.constant 1.000000e+00 : f32
    %72 = vector.broadcast %cst_28 : f32 to vector<1x128xf32>
    %73 = arith.subf %72, %66 : vector<1x128xf32>
    %74 = arith.mulf %73, %71 : vector<1x128xf32>
    %75 = arith.mulf %66, %47 : vector<1x128xf32>
    %76 = arith.addf %74, %75 : vector<1x128xf32>
    %77 = vector.extract_strided_slice %9 {offsets = [2, 0], sizes = [1, 384], strides = [1, 1]} : vector<8x384xf32> to vector<1x384xf32>
    %cst_29 = arith.constant dense<0.000000e+00> : vector<1x384xf32>
    %78 = tpu.matmul %76, %0, %cst_29 {dimension_numbers = #tpu.dot_dimension_numbers<[1], [0], [0], [1], [0, 0, 1, 1], [], []>} : vector<1x128xf32>, vector<128x384xf32>, vector<1x384xf32> -> vector<1x384xf32>
    %79 = arith.addf %78, %1 : vector<1x384xf32>
    %80 = vector.extract_strided_slice %77 {offsets = [0, 0], sizes = [1, 128], strides = [1, 1]} : vector<1x384xf32> to vector<1x128xf32>
    %81 = vector.extract_strided_slice %79 {offsets = [0, 0], sizes = [1, 128], strides = [1, 1]} : vector<1x384xf32> to vector<1x128xf32>
    %82 = arith.addf %80, %81 : vector<1x128xf32>
    %83 = arith.negf %82 : vector<1x128xf32>
    %84 = math.exp %83 : vector<1x128xf32>
    %cst_30 = arith.constant 1.000000e+00 : f32
    %85 = vector.broadcast %cst_30 : f32 to vector<1x128xf32>
    %86 = arith.addf %85, %84 : vector<1x128xf32>
    %87 = arith.divf %85, %86 : vector<1x128xf32>
    %88 = vector.extract_strided_slice %77 {offsets = [0, 128], sizes = [1, 128], strides = [1, 1]} : vector<1x384xf32> to vector<1x128xf32>
    %89 = vector.extract_strided_slice %79 {offsets = [0, 128], sizes = [1, 128], strides = [1, 1]} : vector<1x384xf32> to vector<1x128xf32>
    %90 = arith.addf %88, %89 : vector<1x128xf32>
    %91 = arith.negf %90 : vector<1x128xf32>
    %92 = math.exp %91 : vector<1x128xf32>
    %cst_31 = arith.constant 1.000000e+00 : f32
    %93 = vector.broadcast %cst_31 : f32 to vector<1x128xf32>
    %94 = arith.addf %93, %92 : vector<1x128xf32>
    %95 = arith.divf %93, %94 : vector<1x128xf32>
    %96 = vector.extract_strided_slice %77 {offsets = [0, 256], sizes = [1, 128], strides = [1, 1]} : vector<1x384xf32> to vector<1x128xf32>
    %97 = vector.extract_strided_slice %79 {offsets = [0, 256], sizes = [1, 128], strides = [1, 1]} : vector<1x384xf32> to vector<1x128xf32>
    %98 = arith.mulf %87, %97 : vector<1x128xf32>
    %99 = arith.addf %96, %98 : vector<1x128xf32>
    %100 = math.tanh %99 : vector<1x128xf32>
    %cst_32 = arith.constant 1.000000e+00 : f32
    %101 = vector.broadcast %cst_32 : f32 to vector<1x128xf32>
    %102 = arith.subf %101, %95 : vector<1x128xf32>
    %103 = arith.mulf %102, %100 : vector<1x128xf32>
    %104 = arith.mulf %95, %76 : vector<1x128xf32>
    %105 = arith.addf %103, %104 : vector<1x128xf32>
    %106 = vector.extract_strided_slice %9 {offsets = [3, 0], sizes = [1, 384], strides = [1, 1]} : vector<8x384xf32> to vector<1x384xf32>
    %cst_33 = arith.constant dense<0.000000e+00> : vector<1x384xf32>
    %107 = tpu.matmul %105, %0, %cst_33 {dimension_numbers = #tpu.dot_dimension_numbers<[1], [0], [0], [1], [0, 0, 1, 1], [], []>} : vector<1x128xf32>, vector<128x384xf32>, vector<1x384xf32> -> vector<1x384xf32>
    %108 = arith.addf %107, %1 : vector<1x384xf32>
    %109 = vector.extract_strided_slice %106 {offsets = [0, 0], sizes = [1, 128], strides = [1, 1]} : vector<1x384xf32> to vector<1x128xf32>
    %110 = vector.extract_strided_slice %108 {offsets = [0, 0], sizes = [1, 128], strides = [1, 1]} : vector<1x384xf32> to vector<1x128xf32>
    %111 = arith.addf %109, %110 : vector<1x128xf32>
    %112 = arith.negf %111 : vector<1x128xf32>
    %113 = math.exp %112 : vector<1x128xf32>
    %cst_34 = arith.constant 1.000000e+00 : f32
    %114 = vector.broadcast %cst_34 : f32 to vector<1x128xf32>
    %115 = arith.addf %114, %113 : vector<1x128xf32>
    %116 = arith.divf %114, %115 : vector<1x128xf32>
    %117 = vector.extract_strided_slice %106 {offsets = [0, 128], sizes = [1, 128], strides = [1, 1]} : vector<1x384xf32> to vector<1x128xf32>
    %118 = vector.extract_strided_slice %108 {offsets = [0, 128], sizes = [1, 128], strides = [1, 1]} : vector<1x384xf32> to vector<1x128xf32>
    %119 = arith.addf %117, %118 : vector<1x128xf32>
    %120 = arith.negf %119 : vector<1x128xf32>
    %121 = math.exp %120 : vector<1x128xf32>
    %cst_35 = arith.constant 1.000000e+00 : f32
    %122 = vector.broadcast %cst_35 : f32 to vector<1x128xf32>
    %123 = arith.addf %122, %121 : vector<1x128xf32>
    %124 = arith.divf %122, %123 : vector<1x128xf32>
    %125 = vector.extract_strided_slice %106 {offsets = [0, 256], sizes = [1, 128], strides = [1, 1]} : vector<1x384xf32> to vector<1x128xf32>
    %126 = vector.extract_strided_slice %108 {offsets = [0, 256], sizes = [1, 128], strides = [1, 1]} : vector<1x384xf32> to vector<1x128xf32>
    %127 = arith.mulf %116, %126 : vector<1x128xf32>
    %128 = arith.addf %125, %127 : vector<1x128xf32>
    %129 = math.tanh %128 : vector<1x128xf32>
    %cst_36 = arith.constant 1.000000e+00 : f32
    %130 = vector.broadcast %cst_36 : f32 to vector<1x128xf32>
    %131 = arith.subf %130, %124 : vector<1x128xf32>
    %132 = arith.mulf %131, %129 : vector<1x128xf32>
    %133 = arith.mulf %124, %105 : vector<1x128xf32>
    %134 = arith.addf %132, %133 : vector<1x128xf32>
    %135 = vector.extract_strided_slice %9 {offsets = [4, 0], sizes = [1, 384], strides = [1, 1]} : vector<8x384xf32> to vector<1x384xf32>
    %cst_37 = arith.constant dense<0.000000e+00> : vector<1x384xf32>
    %136 = tpu.matmul %134, %0, %cst_37 {dimension_numbers = #tpu.dot_dimension_numbers<[1], [0], [0], [1], [0, 0, 1, 1], [], []>} : vector<1x128xf32>, vector<128x384xf32>, vector<1x384xf32> -> vector<1x384xf32>
    %137 = arith.addf %136, %1 : vector<1x384xf32>
    %138 = vector.extract_strided_slice %135 {offsets = [0, 0], sizes = [1, 128], strides = [1, 1]} : vector<1x384xf32> to vector<1x128xf32>
    %139 = vector.extract_strided_slice %137 {offsets = [0, 0], sizes = [1, 128], strides = [1, 1]} : vector<1x384xf32> to vector<1x128xf32>
    %140 = arith.addf %138, %139 : vector<1x128xf32>
    %141 = arith.negf %140 : vector<1x128xf32>
    %142 = math.exp %141 : vector<1x128xf32>
    %cst_38 = arith.constant 1.000000e+00 : f32
    %143 = vector.broadcast %cst_38 : f32 to vector<1x128xf32>
    %144 = arith.addf %143, %142 : vector<1x128xf32>
    %145 = arith.divf %143, %144 : vector<1x128xf32>
    %146 = vector.extract_strided_slice %135 {offsets = [0, 128], sizes = [1, 128], strides = [1, 1]} : vector<1x384xf32> to vector<1x128xf32>
    %147 = vector.extract_strided_slice %137 {offsets = [0, 128], sizes = [1, 128], strides = [1, 1]} : vector<1x384xf32> to vector<1x128xf32>
    %148 = arith.addf %146, %147 : vector<1x128xf32>
    %149 = arith.negf %148 : vector<1x128xf32>
    %150 = math.exp %149 : vector<1x128xf32>
    %cst_39 = arith.constant 1.000000e+00 : f32
    %151 = vector.broadcast %cst_39 : f32 to vector<1x128xf32>
    %152 = arith.addf %151, %150 : vector<1x128xf32>
    %153 = arith.divf %151, %152 : vector<1x128xf32>
    %154 = vector.extract_strided_slice %135 {offsets = [0, 256], sizes = [1, 128], strides = [1, 1]} : vector<1x384xf32> to vector<1x128xf32>
    %155 = vector.extract_strided_slice %137 {offsets = [0, 256], sizes = [1, 128], strides = [1, 1]} : vector<1x384xf32> to vector<1x128xf32>
    %156 = arith.mulf %145, %155 : vector<1x128xf32>
    %157 = arith.addf %154, %156 : vector<1x128xf32>
    %158 = math.tanh %157 : vector<1x128xf32>
    %cst_40 = arith.constant 1.000000e+00 : f32
    %159 = vector.broadcast %cst_40 : f32 to vector<1x128xf32>
    %160 = arith.subf %159, %153 : vector<1x128xf32>
    %161 = arith.mulf %160, %158 : vector<1x128xf32>
    %162 = arith.mulf %153, %134 : vector<1x128xf32>
    %163 = arith.addf %161, %162 : vector<1x128xf32>
    %164 = vector.extract_strided_slice %9 {offsets = [5, 0], sizes = [1, 384], strides = [1, 1]} : vector<8x384xf32> to vector<1x384xf32>
    %cst_41 = arith.constant dense<0.000000e+00> : vector<1x384xf32>
    %165 = tpu.matmul %163, %0, %cst_41 {dimension_numbers = #tpu.dot_dimension_numbers<[1], [0], [0], [1], [0, 0, 1, 1], [], []>} : vector<1x128xf32>, vector<128x384xf32>, vector<1x384xf32> -> vector<1x384xf32>
    %166 = arith.addf %165, %1 : vector<1x384xf32>
    %167 = vector.extract_strided_slice %164 {offsets = [0, 0], sizes = [1, 128], strides = [1, 1]} : vector<1x384xf32> to vector<1x128xf32>
    %168 = vector.extract_strided_slice %166 {offsets = [0, 0], sizes = [1, 128], strides = [1, 1]} : vector<1x384xf32> to vector<1x128xf32>
    %169 = arith.addf %167, %168 : vector<1x128xf32>
    %170 = arith.negf %169 : vector<1x128xf32>
    %171 = math.exp %170 : vector<1x128xf32>
    %cst_42 = arith.constant 1.000000e+00 : f32
    %172 = vector.broadcast %cst_42 : f32 to vector<1x128xf32>
    %173 = arith.addf %172, %171 : vector<1x128xf32>
    %174 = arith.divf %172, %173 : vector<1x128xf32>
    %175 = vector.extract_strided_slice %164 {offsets = [0, 128], sizes = [1, 128], strides = [1, 1]} : vector<1x384xf32> to vector<1x128xf32>
    %176 = vector.extract_strided_slice %166 {offsets = [0, 128], sizes = [1, 128], strides = [1, 1]} : vector<1x384xf32> to vector<1x128xf32>
    %177 = arith.addf %175, %176 : vector<1x128xf32>
    %178 = arith.negf %177 : vector<1x128xf32>
    %179 = math.exp %178 : vector<1x128xf32>
    %cst_43 = arith.constant 1.000000e+00 : f32
    %180 = vector.broadcast %cst_43 : f32 to vector<1x128xf32>
    %181 = arith.addf %180, %179 : vector<1x128xf32>
    %182 = arith.divf %180, %181 : vector<1x128xf32>
    %183 = vector.extract_strided_slice %164 {offsets = [0, 256], sizes = [1, 128], strides = [1, 1]} : vector<1x384xf32> to vector<1x128xf32>
    %184 = vector.extract_strided_slice %166 {offsets = [0, 256], sizes = [1, 128], strides = [1, 1]} : vector<1x384xf32> to vector<1x128xf32>
    %185 = arith.mulf %174, %184 : vector<1x128xf32>
    %186 = arith.addf %183, %185 : vector<1x128xf32>
    %187 = math.tanh %186 : vector<1x128xf32>
    %cst_44 = arith.constant 1.000000e+00 : f32
    %188 = vector.broadcast %cst_44 : f32 to vector<1x128xf32>
    %189 = arith.subf %188, %182 : vector<1x128xf32>
    %190 = arith.mulf %189, %187 : vector<1x128xf32>
    %191 = arith.mulf %182, %163 : vector<1x128xf32>
    %192 = arith.addf %190, %191 : vector<1x128xf32>
    %193 = vector.extract_strided_slice %9 {offsets = [6, 0], sizes = [1, 384], strides = [1, 1]} : vector<8x384xf32> to vector<1x384xf32>
    %cst_45 = arith.constant dense<0.000000e+00> : vector<1x384xf32>
    %194 = tpu.matmul %192, %0, %cst_45 {dimension_numbers = #tpu.dot_dimension_numbers<[1], [0], [0], [1], [0, 0, 1, 1], [], []>} : vector<1x128xf32>, vector<128x384xf32>, vector<1x384xf32> -> vector<1x384xf32>
    %195 = arith.addf %194, %1 : vector<1x384xf32>
    %196 = vector.extract_strided_slice %193 {offsets = [0, 0], sizes = [1, 128], strides = [1, 1]} : vector<1x384xf32> to vector<1x128xf32>
    %197 = vector.extract_strided_slice %195 {offsets = [0, 0], sizes = [1, 128], strides = [1, 1]} : vector<1x384xf32> to vector<1x128xf32>
    %198 = arith.addf %196, %197 : vector<1x128xf32>
    %199 = arith.negf %198 : vector<1x128xf32>
    %200 = math.exp %199 : vector<1x128xf32>
    %cst_46 = arith.constant 1.000000e+00 : f32
    %201 = vector.broadcast %cst_46 : f32 to vector<1x128xf32>
    %202 = arith.addf %201, %200 : vector<1x128xf32>
    %203 = arith.divf %201, %202 : vector<1x128xf32>
    %204 = vector.extract_strided_slice %193 {offsets = [0, 128], sizes = [1, 128], strides = [1, 1]} : vector<1x384xf32> to vector<1x128xf32>
    %205 = vector.extract_strided_slice %195 {offsets = [0, 128], sizes = [1, 128], strides = [1, 1]} : vector<1x384xf32> to vector<1x128xf32>
    %206 = arith.addf %204, %205 : vector<1x128xf32>
    %207 = arith.negf %206 : vector<1x128xf32>
    %208 = math.exp %207 : vector<1x128xf32>
    %cst_47 = arith.constant 1.000000e+00 : f32
    %209 = vector.broadcast %cst_47 : f32 to vector<1x128xf32>
    %210 = arith.addf %209, %208 : vector<1x128xf32>
    %211 = arith.divf %209, %210 : vector<1x128xf32>
    %212 = vector.extract_strided_slice %193 {offsets = [0, 256], sizes = [1, 128], strides = [1, 1]} : vector<1x384xf32> to vector<1x128xf32>
    %213 = vector.extract_strided_slice %195 {offsets = [0, 256], sizes = [1, 128], strides = [1, 1]} : vector<1x384xf32> to vector<1x128xf32>
    %214 = arith.mulf %203, %213 : vector<1x128xf32>
    %215 = arith.addf %212, %214 : vector<1x128xf32>
    %216 = math.tanh %215 : vector<1x128xf32>
    %cst_48 = arith.constant 1.000000e+00 : f32
    %217 = vector.broadcast %cst_48 : f32 to vector<1x128xf32>
    %218 = arith.subf %217, %211 : vector<1x128xf32>
    %219 = arith.mulf %218, %216 : vector<1x128xf32>
    %220 = arith.mulf %211, %192 : vector<1x128xf32>
    %221 = arith.addf %219, %220 : vector<1x128xf32>
    %222 = vector.extract_strided_slice %9 {offsets = [7, 0], sizes = [1, 384], strides = [1, 1]} : vector<8x384xf32> to vector<1x384xf32>
    %cst_49 = arith.constant dense<0.000000e+00> : vector<1x384xf32>
    %223 = tpu.matmul %221, %0, %cst_49 {dimension_numbers = #tpu.dot_dimension_numbers<[1], [0], [0], [1], [0, 0, 1, 1], [], []>} : vector<1x128xf32>, vector<128x384xf32>, vector<1x384xf32> -> vector<1x384xf32>
    %224 = arith.addf %223, %1 : vector<1x384xf32>
    %225 = vector.extract_strided_slice %222 {offsets = [0, 0], sizes = [1, 128], strides = [1, 1]} : vector<1x384xf32> to vector<1x128xf32>
    %226 = vector.extract_strided_slice %224 {offsets = [0, 0], sizes = [1, 128], strides = [1, 1]} : vector<1x384xf32> to vector<1x128xf32>
    %227 = arith.addf %225, %226 : vector<1x128xf32>
    %228 = arith.negf %227 : vector<1x128xf32>
    %229 = math.exp %228 : vector<1x128xf32>
    %cst_50 = arith.constant 1.000000e+00 : f32
    %230 = vector.broadcast %cst_50 : f32 to vector<1x128xf32>
    %231 = arith.addf %230, %229 : vector<1x128xf32>
    %232 = arith.divf %230, %231 : vector<1x128xf32>
    %233 = vector.extract_strided_slice %222 {offsets = [0, 128], sizes = [1, 128], strides = [1, 1]} : vector<1x384xf32> to vector<1x128xf32>
    %234 = vector.extract_strided_slice %224 {offsets = [0, 128], sizes = [1, 128], strides = [1, 1]} : vector<1x384xf32> to vector<1x128xf32>
    %235 = arith.addf %233, %234 : vector<1x128xf32>
    %236 = arith.negf %235 : vector<1x128xf32>
    %237 = math.exp %236 : vector<1x128xf32>
    %cst_51 = arith.constant 1.000000e+00 : f32
    %238 = vector.broadcast %cst_51 : f32 to vector<1x128xf32>
    %239 = arith.addf %238, %237 : vector<1x128xf32>
    %240 = arith.divf %238, %239 : vector<1x128xf32>
    %241 = vector.extract_strided_slice %222 {offsets = [0, 256], sizes = [1, 128], strides = [1, 1]} : vector<1x384xf32> to vector<1x128xf32>
    %242 = vector.extract_strided_slice %224 {offsets = [0, 256], sizes = [1, 128], strides = [1, 1]} : vector<1x384xf32> to vector<1x128xf32>
    %243 = arith.mulf %232, %242 : vector<1x128xf32>
    %244 = arith.addf %241, %243 : vector<1x128xf32>
    %245 = math.tanh %244 : vector<1x128xf32>
    %cst_52 = arith.constant 1.000000e+00 : f32
    %246 = vector.broadcast %cst_52 : f32 to vector<1x128xf32>
    %247 = arith.subf %246, %240 : vector<1x128xf32>
    %248 = arith.mulf %247, %245 : vector<1x128xf32>
    %249 = arith.mulf %240, %221 : vector<1x128xf32>
    %250 = arith.addf %248, %249 : vector<1x128xf32>
    %cst_53 = arith.constant dense<0.000000e+00> : vector<1x384xf32>
    %251 = tpu.matmul %250, %2, %cst_53 {dimension_numbers = #tpu.dot_dimension_numbers<[1], [0], [0], [1], [0, 0, 1, 1], [], []>} : vector<1x128xf32>, vector<128x384xf32>, vector<1x384xf32> -> vector<1x384xf32>
    %252 = arith.addf %251, %3 : vector<1x384xf32>
    %253 = vector.extract_strided_slice %16 {offsets = [0, 0], sizes = [1, 128], strides = [1, 1]} : vector<1x384xf32> to vector<1x128xf32>
    %254 = vector.extract_strided_slice %252 {offsets = [0, 0], sizes = [1, 128], strides = [1, 1]} : vector<1x384xf32> to vector<1x128xf32>
    %255 = arith.addf %253, %254 : vector<1x128xf32>
    %256 = arith.negf %255 : vector<1x128xf32>
    %257 = math.exp %256 : vector<1x128xf32>
    %cst_54 = arith.constant 1.000000e+00 : f32
    %258 = vector.broadcast %cst_54 : f32 to vector<1x128xf32>
    %259 = arith.addf %258, %257 : vector<1x128xf32>
    %260 = arith.divf %258, %259 : vector<1x128xf32>
    %261 = vector.extract_strided_slice %16 {offsets = [0, 128], sizes = [1, 128], strides = [1, 1]} : vector<1x384xf32> to vector<1x128xf32>
    %262 = vector.extract_strided_slice %252 {offsets = [0, 128], sizes = [1, 128], strides = [1, 1]} : vector<1x384xf32> to vector<1x128xf32>
    %263 = arith.addf %261, %262 : vector<1x128xf32>
    %264 = arith.negf %263 : vector<1x128xf32>
    %265 = math.exp %264 : vector<1x128xf32>
    %cst_55 = arith.constant 1.000000e+00 : f32
    %266 = vector.broadcast %cst_55 : f32 to vector<1x128xf32>
    %267 = arith.addf %266, %265 : vector<1x128xf32>
    %268 = arith.divf %266, %267 : vector<1x128xf32>
    %269 = vector.extract_strided_slice %16 {offsets = [0, 256], sizes = [1, 128], strides = [1, 1]} : vector<1x384xf32> to vector<1x128xf32>
    %270 = vector.extract_strided_slice %252 {offsets = [0, 256], sizes = [1, 128], strides = [1, 1]} : vector<1x384xf32> to vector<1x128xf32>
    %271 = arith.mulf %260, %270 : vector<1x128xf32>
    %272 = arith.addf %269, %271 : vector<1x128xf32>
    %273 = math.tanh %272 : vector<1x128xf32>
    %cst_56 = arith.constant 1.000000e+00 : f32
    %274 = vector.broadcast %cst_56 : f32 to vector<1x128xf32>
    %275 = arith.subf %274, %268 : vector<1x128xf32>
    %276 = arith.mulf %275, %273 : vector<1x128xf32>
    %277 = arith.mulf %268, %250 : vector<1x128xf32>
    %278 = arith.addf %276, %277 : vector<1x128xf32>
    %c0_57 = arith.constant 0 : index
    %c0_58 = arith.constant 0 : index
    %279 = vector.load %arg13[%c0_57, %c0_58] : memref<8x128xf32, #tpu.memory_space<vmem>>, vector<1x128xf32>
    tpu.vector_store %arg13[%c0_57, %c0_58], %278 {strides = array<i32>} : memref<8x128xf32, #tpu.memory_space<vmem>>, vector<1x128xf32>,
    %cst_59 = arith.constant dense<0.000000e+00> : vector<1x384xf32>
    %280 = tpu.matmul %278, %2, %cst_59 {dimension_numbers = #tpu.dot_dimension_numbers<[1], [0], [0], [1], [0, 0, 1, 1], [], []>} : vector<1x128xf32>, vector<128x384xf32>, vector<1x384xf32> -> vector<1x384xf32>
    %281 = arith.addf %280, %3 : vector<1x384xf32>
    %282 = vector.extract_strided_slice %17 {offsets = [0, 0], sizes = [1, 128], strides = [1, 1]} : vector<1x384xf32> to vector<1x128xf32>
    %283 = vector.extract_strided_slice %281 {offsets = [0, 0], sizes = [1, 128], strides = [1, 1]} : vector<1x384xf32> to vector<1x128xf32>
    %284 = arith.addf %282, %283 : vector<1x128xf32>
    %285 = arith.negf %284 : vector<1x128xf32>
    %286 = math.exp %285 : vector<1x128xf32>
    %cst_60 = arith.constant 1.000000e+00 : f32
    %287 = vector.broadcast %cst_60 : f32 to vector<1x128xf32>
    %288 = arith.addf %287, %286 : vector<1x128xf32>
    %289 = arith.divf %287, %288 : vector<1x128xf32>
    %290 = vector.extract_strided_slice %17 {offsets = [0, 128], sizes = [1, 128], strides = [1, 1]} : vector<1x384xf32> to vector<1x128xf32>
    %291 = vector.extract_strided_slice %281 {offsets = [0, 128], sizes = [1, 128], strides = [1, 1]} : vector<1x384xf32> to vector<1x128xf32>
    %292 = arith.addf %290, %291 : vector<1x128xf32>
    %293 = arith.negf %292 : vector<1x128xf32>
    %294 = math.exp %293 : vector<1x128xf32>
    %cst_61 = arith.constant 1.000000e+00 : f32
    %295 = vector.broadcast %cst_61 : f32 to vector<1x128xf32>
    %296 = arith.addf %295, %294 : vector<1x128xf32>
    %297 = arith.divf %295, %296 : vector<1x128xf32>
    %298 = vector.extract_strided_slice %17 {offsets = [0, 256], sizes = [1, 128], strides = [1, 1]} : vector<1x384xf32> to vector<1x128xf32>
    %299 = vector.extract_strided_slice %281 {offsets = [0, 256], sizes = [1, 128], strides = [1, 1]} : vector<1x384xf32> to vector<1x128xf32>
    %300 = arith.mulf %289, %299 : vector<1x128xf32>
    %301 = arith.addf %298, %300 : vector<1x128xf32>
    %302 = math.tanh %301 : vector<1x128xf32>
    %cst_62 = arith.constant 1.000000e+00 : f32
    %303 = vector.broadcast %cst_62 : f32 to vector<1x128xf32>
    %304 = arith.subf %303, %297 : vector<1x128xf32>
    %305 = arith.mulf %304, %302 : vector<1x128xf32>
    %306 = arith.mulf %297, %278 : vector<1x128xf32>
    %307 = arith.addf %305, %306 : vector<1x128xf32>
    %c1 = arith.constant 1 : index
    %c0_63 = arith.constant 0 : index
    %308 = vector.load %arg13[%c1, %c0_63] : memref<8x128xf32, #tpu.memory_space<vmem>>, vector<1x128xf32>
    tpu.vector_store %arg13[%c1, %c0_63], %307 {strides = array<i32>} : memref<8x128xf32, #tpu.memory_space<vmem>>, vector<1x128xf32>,
    %cst_64 = arith.constant dense<0.000000e+00> : vector<1x384xf32>
    %309 = tpu.matmul %307, %2, %cst_64 {dimension_numbers = #tpu.dot_dimension_numbers<[1], [0], [0], [1], [0, 0, 1, 1], [], []>} : vector<1x128xf32>, vector<128x384xf32>, vector<1x384xf32> -> vector<1x384xf32>
    %310 = arith.addf %309, %3 : vector<1x384xf32>
    %311 = vector.extract_strided_slice %17 {offsets = [0, 0], sizes = [1, 128], strides = [1, 1]} : vector<1x384xf32> to vector<1x128xf32>
    %312 = vector.extract_strided_slice %310 {offsets = [0, 0], sizes = [1, 128], strides = [1, 1]} : vector<1x384xf32> to vector<1x128xf32>
    %313 = arith.addf %311, %312 : vector<1x128xf32>
    %314 = arith.negf %313 : vector<1x128xf32>
    %315 = math.exp %314 : vector<1x128xf32>
    %cst_65 = arith.constant 1.000000e+00 : f32
    %316 = vector.broadcast %cst_65 : f32 to vector<1x128xf32>
    %317 = arith.addf %316, %315 : vector<1x128xf32>
    %318 = arith.divf %316, %317 : vector<1x128xf32>
    %319 = vector.extract_strided_slice %17 {offsets = [0, 128], sizes = [1, 128], strides = [1, 1]} : vector<1x384xf32> to vector<1x128xf32>
    %320 = vector.extract_strided_slice %310 {offsets = [0, 128], sizes = [1, 128], strides = [1, 1]} : vector<1x384xf32> to vector<1x128xf32>
    %321 = arith.addf %319, %320 : vector<1x128xf32>
    %322 = arith.negf %321 : vector<1x128xf32>
    %323 = math.exp %322 : vector<1x128xf32>
    %cst_66 = arith.constant 1.000000e+00 : f32
    %324 = vector.broadcast %cst_66 : f32 to vector<1x128xf32>
    %325 = arith.addf %324, %323 : vector<1x128xf32>
    %326 = arith.divf %324, %325 : vector<1x128xf32>
    %327 = vector.extract_strided_slice %17 {offsets = [0, 256], sizes = [1, 128], strides = [1, 1]} : vector<1x384xf32> to vector<1x128xf32>
    %328 = vector.extract_strided_slice %310 {offsets = [0, 256], sizes = [1, 128], strides = [1, 1]} : vector<1x384xf32> to vector<1x128xf32>
    %329 = arith.mulf %318, %328 : vector<1x128xf32>
    %330 = arith.addf %327, %329 : vector<1x128xf32>
    %331 = math.tanh %330 : vector<1x128xf32>
    %cst_67 = arith.constant 1.000000e+00 : f32
    %332 = vector.broadcast %cst_67 : f32 to vector<1x128xf32>
    %333 = arith.subf %332, %326 : vector<1x128xf32>
    %334 = arith.mulf %333, %331 : vector<1x128xf32>
    %335 = arith.mulf %326, %307 : vector<1x128xf32>
    %336 = arith.addf %334, %335 : vector<1x128xf32>
    %c2 = arith.constant 2 : index
    %c0_68 = arith.constant 0 : index
    %337 = vector.load %arg13[%c2, %c0_68] : memref<8x128xf32, #tpu.memory_space<vmem>>, vector<1x128xf32>
    tpu.vector_store %arg13[%c2, %c0_68], %336 {strides = array<i32>} : memref<8x128xf32, #tpu.memory_space<vmem>>, vector<1x128xf32>,
    %cst_69 = arith.constant dense<0.000000e+00> : vector<1x384xf32>
    %338 = tpu.matmul %336, %2, %cst_69 {dimension_numbers = #tpu.dot_dimension_numbers<[1], [0], [0], [1], [0, 0, 1, 1], [], []>} : vector<1x128xf32>, vector<128x384xf32>, vector<1x384xf32> -> vector<1x384xf32>
    %339 = arith.addf %338, %3 : vector<1x384xf32>
    %340 = vector.extract_strided_slice %17 {offsets = [0, 0], sizes = [1, 128], strides = [1, 1]} : vector<1x384xf32> to vector<1x128xf32>
    %341 = vector.extract_strided_slice %339 {offsets = [0, 0], sizes = [1, 128], strides = [1, 1]} : vector<1x384xf32> to vector<1x128xf32>
    %342 = arith.addf %340, %341 : vector<1x128xf32>
    %343 = arith.negf %342 : vector<1x128xf32>
    %344 = math.exp %343 : vector<1x128xf32>
    %cst_70 = arith.constant 1.000000e+00 : f32
    %345 = vector.broadcast %cst_70 : f32 to vector<1x128xf32>
    %346 = arith.addf %345, %344 : vector<1x128xf32>
    %347 = arith.divf %345, %346 : vector<1x128xf32>
    %348 = vector.extract_strided_slice %17 {offsets = [0, 128], sizes = [1, 128], strides = [1, 1]} : vector<1x384xf32> to vector<1x128xf32>
    %349 = vector.extract_strided_slice %339 {offsets = [0, 128], sizes = [1, 128], strides = [1, 1]} : vector<1x384xf32> to vector<1x128xf32>
    %350 = arith.addf %348, %349 : vector<1x128xf32>
    %351 = arith.negf %350 : vector<1x128xf32>
    %352 = math.exp %351 : vector<1x128xf32>
    %cst_71 = arith.constant 1.000000e+00 : f32
    %353 = vector.broadcast %cst_71 : f32 to vector<1x128xf32>
    %354 = arith.addf %353, %352 : vector<1x128xf32>
    %355 = arith.divf %353, %354 : vector<1x128xf32>
    %356 = vector.extract_strided_slice %17 {offsets = [0, 256], sizes = [1, 128], strides = [1, 1]} : vector<1x384xf32> to vector<1x128xf32>
    %357 = vector.extract_strided_slice %339 {offsets = [0, 256], sizes = [1, 128], strides = [1, 1]} : vector<1x384xf32> to vector<1x128xf32>
    %358 = arith.mulf %347, %357 : vector<1x128xf32>
    %359 = arith.addf %356, %358 : vector<1x128xf32>
    %360 = math.tanh %359 : vector<1x128xf32>
    %cst_72 = arith.constant 1.000000e+00 : f32
    %361 = vector.broadcast %cst_72 : f32 to vector<1x128xf32>
    %362 = arith.subf %361, %355 : vector<1x128xf32>
    %363 = arith.mulf %362, %360 : vector<1x128xf32>
    %364 = arith.mulf %355, %336 : vector<1x128xf32>
    %365 = arith.addf %363, %364 : vector<1x128xf32>
    %c3 = arith.constant 3 : index
    %c0_73 = arith.constant 0 : index
    %366 = vector.load %arg13[%c3, %c0_73] : memref<8x128xf32, #tpu.memory_space<vmem>>, vector<1x128xf32>
    tpu.vector_store %arg13[%c3, %c0_73], %365 {strides = array<i32>} : memref<8x128xf32, #tpu.memory_space<vmem>>, vector<1x128xf32>,
    %cst_74 = arith.constant dense<0.000000e+00> : vector<1x384xf32>
    %367 = tpu.matmul %365, %2, %cst_74 {dimension_numbers = #tpu.dot_dimension_numbers<[1], [0], [0], [1], [0, 0, 1, 1], [], []>} : vector<1x128xf32>, vector<128x384xf32>, vector<1x384xf32> -> vector<1x384xf32>
    %368 = arith.addf %367, %3 : vector<1x384xf32>
    %369 = vector.extract_strided_slice %17 {offsets = [0, 0], sizes = [1, 128], strides = [1, 1]} : vector<1x384xf32> to vector<1x128xf32>
    %370 = vector.extract_strided_slice %368 {offsets = [0, 0], sizes = [1, 128], strides = [1, 1]} : vector<1x384xf32> to vector<1x128xf32>
    %371 = arith.addf %369, %370 : vector<1x128xf32>
    %372 = arith.negf %371 : vector<1x128xf32>
    %373 = math.exp %372 : vector<1x128xf32>
    %cst_75 = arith.constant 1.000000e+00 : f32
    %374 = vector.broadcast %cst_75 : f32 to vector<1x128xf32>
    %375 = arith.addf %374, %373 : vector<1x128xf32>
    %376 = arith.divf %374, %375 : vector<1x128xf32>
    %377 = vector.extract_strided_slice %17 {offsets = [0, 128], sizes = [1, 128], strides = [1, 1]} : vector<1x384xf32> to vector<1x128xf32>
    %378 = vector.extract_strided_slice %368 {offsets = [0, 128], sizes = [1, 128], strides = [1, 1]} : vector<1x384xf32> to vector<1x128xf32>
    %379 = arith.addf %377, %378 : vector<1x128xf32>
    %380 = arith.negf %379 : vector<1x128xf32>
    %381 = math.exp %380 : vector<1x128xf32>
    %cst_76 = arith.constant 1.000000e+00 : f32
    %382 = vector.broadcast %cst_76 : f32 to vector<1x128xf32>
    %383 = arith.addf %382, %381 : vector<1x128xf32>
    %384 = arith.divf %382, %383 : vector<1x128xf32>
    %385 = vector.extract_strided_slice %17 {offsets = [0, 256], sizes = [1, 128], strides = [1, 1]} : vector<1x384xf32> to vector<1x128xf32>
    %386 = vector.extract_strided_slice %368 {offsets = [0, 256], sizes = [1, 128], strides = [1, 1]} : vector<1x384xf32> to vector<1x128xf32>
    %387 = arith.mulf %376, %386 : vector<1x128xf32>
    %388 = arith.addf %385, %387 : vector<1x128xf32>
    %389 = math.tanh %388 : vector<1x128xf32>
    %cst_77 = arith.constant 1.000000e+00 : f32
    %390 = vector.broadcast %cst_77 : f32 to vector<1x128xf32>
    %391 = arith.subf %390, %384 : vector<1x128xf32>
    %392 = arith.mulf %391, %389 : vector<1x128xf32>
    %393 = arith.mulf %384, %365 : vector<1x128xf32>
    %394 = arith.addf %392, %393 : vector<1x128xf32>
    %c4 = arith.constant 4 : index
    %c0_78 = arith.constant 0 : index
    %395 = vector.load %arg13[%c4, %c0_78] : memref<8x128xf32, #tpu.memory_space<vmem>>, vector<1x128xf32>
    tpu.vector_store %arg13[%c4, %c0_78], %394 {strides = array<i32>} : memref<8x128xf32, #tpu.memory_space<vmem>>, vector<1x128xf32>,
    %cst_79 = arith.constant dense<0.000000e+00> : vector<1x384xf32>
    %396 = tpu.matmul %394, %2, %cst_79 {dimension_numbers = #tpu.dot_dimension_numbers<[1], [0], [0], [1], [0, 0, 1, 1], [], []>} : vector<1x128xf32>, vector<128x384xf32>, vector<1x384xf32> -> vector<1x384xf32>
    %397 = arith.addf %396, %3 : vector<1x384xf32>
    %398 = vector.extract_strided_slice %17 {offsets = [0, 0], sizes = [1, 128], strides = [1, 1]} : vector<1x384xf32> to vector<1x128xf32>
    %399 = vector.extract_strided_slice %397 {offsets = [0, 0], sizes = [1, 128], strides = [1, 1]} : vector<1x384xf32> to vector<1x128xf32>
    %400 = arith.addf %398, %399 : vector<1x128xf32>
    %401 = arith.negf %400 : vector<1x128xf32>
    %402 = math.exp %401 : vector<1x128xf32>
    %cst_80 = arith.constant 1.000000e+00 : f32
    %403 = vector.broadcast %cst_80 : f32 to vector<1x128xf32>
    %404 = arith.addf %403, %402 : vector<1x128xf32>
    %405 = arith.divf %403, %404 : vector<1x128xf32>
    %406 = vector.extract_strided_slice %17 {offsets = [0, 128], sizes = [1, 128], strides = [1, 1]} : vector<1x384xf32> to vector<1x128xf32>
    %407 = vector.extract_strided_slice %397 {offsets = [0, 128], sizes = [1, 128], strides = [1, 1]} : vector<1x384xf32> to vector<1x128xf32>
    %408 = arith.addf %406, %407 : vector<1x128xf32>
    %409 = arith.negf %408 : vector<1x128xf32>
    %410 = math.exp %409 : vector<1x128xf32>
    %cst_81 = arith.constant 1.000000e+00 : f32
    %411 = vector.broadcast %cst_81 : f32 to vector<1x128xf32>
    %412 = arith.addf %411, %410 : vector<1x128xf32>
    %413 = arith.divf %411, %412 : vector<1x128xf32>
    %414 = vector.extract_strided_slice %17 {offsets = [0, 256], sizes = [1, 128], strides = [1, 1]} : vector<1x384xf32> to vector<1x128xf32>
    %415 = vector.extract_strided_slice %397 {offsets = [0, 256], sizes = [1, 128], strides = [1, 1]} : vector<1x384xf32> to vector<1x128xf32>
    %416 = arith.mulf %405, %415 : vector<1x128xf32>
    %417 = arith.addf %414, %416 : vector<1x128xf32>
    %418 = math.tanh %417 : vector<1x128xf32>
    %cst_82 = arith.constant 1.000000e+00 : f32
    %419 = vector.broadcast %cst_82 : f32 to vector<1x128xf32>
    %420 = arith.subf %419, %413 : vector<1x128xf32>
    %421 = arith.mulf %420, %418 : vector<1x128xf32>
    %422 = arith.mulf %413, %394 : vector<1x128xf32>
    %423 = arith.addf %421, %422 : vector<1x128xf32>
    %c5 = arith.constant 5 : index
    %c0_83 = arith.constant 0 : index
    %424 = vector.load %arg13[%c5, %c0_83] : memref<8x128xf32, #tpu.memory_space<vmem>>, vector<1x128xf32>
    tpu.vector_store %arg13[%c5, %c0_83], %423 {strides = array<i32>} : memref<8x128xf32, #tpu.memory_space<vmem>>, vector<1x128xf32>,
    %cst_84 = arith.constant dense<0.000000e+00> : vector<1x384xf32>
    %425 = tpu.matmul %423, %2, %cst_84 {dimension_numbers = #tpu.dot_dimension_numbers<[1], [0], [0], [1], [0, 0, 1, 1], [], []>} : vector<1x128xf32>, vector<128x384xf32>, vector<1x384xf32> -> vector<1x384xf32>
    %426 = arith.addf %425, %3 : vector<1x384xf32>
    %427 = vector.extract_strided_slice %17 {offsets = [0, 0], sizes = [1, 128], strides = [1, 1]} : vector<1x384xf32> to vector<1x128xf32>
    %428 = vector.extract_strided_slice %426 {offsets = [0, 0], sizes = [1, 128], strides = [1, 1]} : vector<1x384xf32> to vector<1x128xf32>
    %429 = arith.addf %427, %428 : vector<1x128xf32>
    %430 = arith.negf %429 : vector<1x128xf32>
    %431 = math.exp %430 : vector<1x128xf32>
    %cst_85 = arith.constant 1.000000e+00 : f32
    %432 = vector.broadcast %cst_85 : f32 to vector<1x128xf32>
    %433 = arith.addf %432, %431 : vector<1x128xf32>
    %434 = arith.divf %432, %433 : vector<1x128xf32>
    %435 = vector.extract_strided_slice %17 {offsets = [0, 128], sizes = [1, 128], strides = [1, 1]} : vector<1x384xf32> to vector<1x128xf32>
    %436 = vector.extract_strided_slice %426 {offsets = [0, 128], sizes = [1, 128], strides = [1, 1]} : vector<1x384xf32> to vector<1x128xf32>
    %437 = arith.addf %435, %436 : vector<1x128xf32>
    %438 = arith.negf %437 : vector<1x128xf32>
    %439 = math.exp %438 : vector<1x128xf32>
    %cst_86 = arith.constant 1.000000e+00 : f32
    %440 = vector.broadcast %cst_86 : f32 to vector<1x128xf32>
    %441 = arith.addf %440, %439 : vector<1x128xf32>
    %442 = arith.divf %440, %441 : vector<1x128xf32>
    %443 = vector.extract_strided_slice %17 {offsets = [0, 256], sizes = [1, 128], strides = [1, 1]} : vector<1x384xf32> to vector<1x128xf32>
    %444 = vector.extract_strided_slice %426 {offsets = [0, 256], sizes = [1, 128], strides = [1, 1]} : vector<1x384xf32> to vector<1x128xf32>
    %445 = arith.mulf %434, %444 : vector<1x128xf32>
    %446 = arith.addf %443, %445 : vector<1x128xf32>
    %447 = math.tanh %446 : vector<1x128xf32>
    %cst_87 = arith.constant 1.000000e+00 : f32
    %448 = vector.broadcast %cst_87 : f32 to vector<1x128xf32>
    %449 = arith.subf %448, %442 : vector<1x128xf32>
    %450 = arith.mulf %449, %447 : vector<1x128xf32>
    %451 = arith.mulf %442, %423 : vector<1x128xf32>
    %452 = arith.addf %450, %451 : vector<1x128xf32>
    %c6 = arith.constant 6 : index
    %c0_88 = arith.constant 0 : index
    %453 = vector.load %arg13[%c6, %c0_88] : memref<8x128xf32, #tpu.memory_space<vmem>>, vector<1x128xf32>
    tpu.vector_store %arg13[%c6, %c0_88], %452 {strides = array<i32>} : memref<8x128xf32, #tpu.memory_space<vmem>>, vector<1x128xf32>,
    %cst_89 = arith.constant dense<0.000000e+00> : vector<1x384xf32>
    %454 = tpu.matmul %452, %2, %cst_89 {dimension_numbers = #tpu.dot_dimension_numbers<[1], [0], [0], [1], [0, 0, 1, 1], [], []>} : vector<1x128xf32>, vector<128x384xf32>, vector<1x384xf32> -> vector<1x384xf32>
    %455 = arith.addf %454, %3 : vector<1x384xf32>
    %456 = vector.extract_strided_slice %17 {offsets = [0, 0], sizes = [1, 128], strides = [1, 1]} : vector<1x384xf32> to vector<1x128xf32>
    %457 = vector.extract_strided_slice %455 {offsets = [0, 0], sizes = [1, 128], strides = [1, 1]} : vector<1x384xf32> to vector<1x128xf32>
    %458 = arith.addf %456, %457 : vector<1x128xf32>
    %459 = arith.negf %458 : vector<1x128xf32>
    %460 = math.exp %459 : vector<1x128xf32>
    %cst_90 = arith.constant 1.000000e+00 : f32
    %461 = vector.broadcast %cst_90 : f32 to vector<1x128xf32>
    %462 = arith.addf %461, %460 : vector<1x128xf32>
    %463 = arith.divf %461, %462 : vector<1x128xf32>
    %464 = vector.extract_strided_slice %17 {offsets = [0, 128], sizes = [1, 128], strides = [1, 1]} : vector<1x384xf32> to vector<1x128xf32>
    %465 = vector.extract_strided_slice %455 {offsets = [0, 128], sizes = [1, 128], strides = [1, 1]} : vector<1x384xf32> to vector<1x128xf32>
    %466 = arith.addf %464, %465 : vector<1x128xf32>
    %467 = arith.negf %466 : vector<1x128xf32>
    %468 = math.exp %467 : vector<1x128xf32>
    %cst_91 = arith.constant 1.000000e+00 : f32
    %469 = vector.broadcast %cst_91 : f32 to vector<1x128xf32>
    %470 = arith.addf %469, %468 : vector<1x128xf32>
    %471 = arith.divf %469, %470 : vector<1x128xf32>
    %472 = vector.extract_strided_slice %17 {offsets = [0, 256], sizes = [1, 128], strides = [1, 1]} : vector<1x384xf32> to vector<1x128xf32>
    %473 = vector.extract_strided_slice %455 {offsets = [0, 256], sizes = [1, 128], strides = [1, 1]} : vector<1x384xf32> to vector<1x128xf32>
    %474 = arith.mulf %463, %473 : vector<1x128xf32>
    %475 = arith.addf %472, %474 : vector<1x128xf32>
    %476 = math.tanh %475 : vector<1x128xf32>
    %cst_92 = arith.constant 1.000000e+00 : f32
    %477 = vector.broadcast %cst_92 : f32 to vector<1x128xf32>
    %478 = arith.subf %477, %471 : vector<1x128xf32>
    %479 = arith.mulf %478, %476 : vector<1x128xf32>
    %480 = arith.mulf %471, %452 : vector<1x128xf32>
    %481 = arith.addf %479, %480 : vector<1x128xf32>
    %c7 = arith.constant 7 : index
    %c0_93 = arith.constant 0 : index
    %482 = vector.load %arg13[%c7, %c0_93] : memref<8x128xf32, #tpu.memory_space<vmem>>, vector<1x128xf32>
    tpu.vector_store %arg13[%c7, %c0_93], %481 {strides = array<i32>} : memref<8x128xf32, #tpu.memory_space<vmem>>, vector<1x128xf32>,
    %c0_94 = arith.constant 0 : index
    %c0_95 = arith.constant 0 : index
    %483 = vector.load %arg13[%c0_94, %c0_95] : memref<8x128xf32, #tpu.memory_space<vmem>>, vector<8x128xf32>
    %c0_96 = arith.constant 0 : index
    %c0_97 = arith.constant 0 : index
    %484 = vector.load %arg10[%c0_96, %c0_97] : memref<128x256xf32, #tpu.memory_space<vmem>>, vector<128x256xf32>
    %cst_98 = arith.constant dense<0.000000e+00> : vector<8x256xf32>
    %485 = tpu.matmul %483, %484, %cst_98 {dimension_numbers = #tpu.dot_dimension_numbers<[1], [0], [0], [1], [0, 0, 1, 1], [], []>} : vector<8x128xf32>, vector<128x256xf32>, vector<8x256xf32> -> vector<8x256xf32>
    %c0_99 = arith.constant 0 : index
    %c0_100 = arith.constant 0 : index
    %486 = vector.load %arg11[%c0_99, %c0_100] : memref<1x256xf32, #tpu.memory_space<vmem>>, vector<1x256xf32>
    %487 = vector.broadcast %486 : vector<1x256xf32> to vector<8x256xf32>
    %488 = arith.addf %485, %487 : vector<8x256xf32>
    %c0_101 = arith.constant 0 : index
    %c0_102 = arith.constant 0 : index
    %489 = vector.load %arg12[%c0_101, %c0_102] : memref<8x256xf32, #tpu.memory_space<vmem>>, vector<8x256xf32>
    tpu.vector_store %arg12[%c0_101, %c0_102], %488 {strides = array<i32>} : memref<8x256xf32, #tpu.memory_space<vmem>>, vector<8x256xf32>,
    return
  }
}

</mosaic_0001>

<llo_original>
// kernel: seq2seq_forward.1
$region0: #{seq2seq_forward.1}
  #allocation0 [shape = 'u32[]', space=smem, size = 0x4, offset = 0x4, fixed_abs, tag = 'smem constant byte address 0x4 - core index']
  #allocation1 [shape = 'u32[144,128]{1,0:T(1,128)}', space=vmem, size = 0x12000, scoped, tag = 'internal scratch']
  #allocation2 [shape = 'f32[8,128]{1,0:T(8,128)}', space=vmem, size = 0x1000, scoped, tag = 'scratch operand']
  %s0 = inlined_call_operand.vmem [shape: f32[8,32], index: 0, kind: input, shape index: {}]
  %s1 = inlined_call_operand.vmem [shape: f32[2,32], index: 1, kind: input, shape index: {}]
  %s2 = inlined_call_operand.hbm [shape: f32[32,384], index: 2, kind: input, shape index: {}]
  %s3 = inlined_call_operand.vmem [shape: f32[128,384], index: 3, kind: input, shape index: {}]
  %s4 = inlined_call_operand.vmem [shape: f32[1,384], index: 4, kind: input, shape index: {}]
  %s5 = inlined_call_operand.vmem [shape: f32[1,384], index: 5, kind: input, shape index: {}]
  %s6 = inlined_call_operand.hbm [shape: f32[32,384], index: 6, kind: input, shape index: {}]
  %s7 = inlined_call_operand.hbm [shape: f32[128,384], index: 7, kind: input, shape index: {}]
  %s8 = inlined_call_operand.vmem [shape: f32[1,384], index: 8, kind: input, shape index: {}]
  %s9 = inlined_call_operand.vmem [shape: f32[1,384], index: 9, kind: input, shape index: {}]
  %s10 = inlined_call_operand.hbm [shape: f32[128,256], index: 10, kind: input, shape index: {}]
  %s11 = inlined_call_operand.vmem [shape: f32[1,256], index: 11, kind: input, shape index: {}]
  %s12 = inlined_call_operand.hbm [shape: f32[8,256], index: 12, kind: output, shape index: {}]
  %s13 = sld [smem:[#allocation0]]
  $region74: #{seq2seq_forward.1} parent=0
    _
  %s15 = ssub.s32 1, %s13
  %s16 = scalar_select 0, %s15, %s13
  $region1: #{seq2seq_forward.1} parent=0
    #allocation3 [shape = 'u8[49152]{0}', space=vmem, size = 0xc000, scoped, tag = 'input window, operand 2, single buffered']
    #allocation4 [shape = 's32[1]{0}', space=sflag, size = 0x4, scoped, tag = 'scoped memory for seq2seq_forward.1']
    #allocation5 [shape = 's32[1]{0}', space=sflag, size = 0x4, scoped, tag = 'scoped memory for seq2seq_forward.1']
    #allocation6 [shape = 'u8[49152]{0}', space=vmem, size = 0xc000, scoped, tag = 'input window, operand 6, single buffered']
    #allocation7 [shape = 's32[1]{0}', space=sflag, size = 0x4, scoped, tag = 'scoped memory for seq2seq_forward.1']
    #allocation8 [shape = 'u8[196608]{0}', space=vmem, size = 0x30000, scoped, tag = 'input window, operand 7, single buffered']
    #allocation9 [shape = 'u8[131072]{0}', space=vmem, size = 0x20000, scoped, tag = 'input window, operand 10, single buffered']
    #allocation10 [shape = 's32[1]{0}', space=sflag, size = 0x4, scoped, tag = 'scoped memory for seq2seq_forward.1']
    #allocation11 [shape = 'u8[8192]{0}', space=vmem, size = 0x2000, scoped, tag = 'output window, operand 0, single buffered']
    %17 = vsyncpa [#allocation4], 0
    %18 = vsyncpa [#allocation7], 0
    %19 = vsyncpa [#allocation10], 0
    %20 = vsyncpa [#allocation5], 0
    // Predicated region
    $region2: #{seq2seq_forward.1} parent=1 // pred_check
      _
    $region3: #{seq2seq_forward.1} parent=1 // pred_check_branch
      %22 = sbr.rel (0) target = $region5
    $region4: #{seq2seq_forward.1} parent=1 // pred_region
      _
    $region5: #{seq2seq_forward.1} parent=1 // pred_fallthru
      _
    // Predicated region
    $region6: #{seq2seq_forward.1} parent=1 // pred_check
      _
    $region7: #{seq2seq_forward.1} parent=1 // pred_check_branch
      %24 = sbr.rel (0) target = $region9
    $region8: #{seq2seq_forward.1} parent=1 // pred_region
      _
    $region9: #{seq2seq_forward.1} parent=1 // pred_fallthru
      _
    // Predicated region
    $region10: #{seq2seq_forward.1} parent=1 // pred_check
      _
    $region11: #{seq2seq_forward.1} parent=1 // pred_check_branch
      %26 = sbr.rel (0) target = $region13
    $region12: #{seq2seq_forward.1} parent=1 // pred_region
      %s28 = ssub.s32 1536, 1536
      %29 = vsyncadd [#allocation4], %s28
      %s30 = sshll.u32 [#allocation3], 4
      %s31 = int_to_ptr.vmem [resolvable:$true] %s30
      %36 = dma.hbm_to_vmem [thread:$0]  %s2, 1536, %s31, [#allocation4], 384, 384, 24
    $region13: #{seq2seq_forward.1} parent=1 // pred_fallthru
      _
    // Predicated region
    $region14: #{seq2seq_forward.1} parent=1 // pred_check
      _
    $region15: #{seq2seq_forward.1} parent=1 // pred_check_branch
      %38 = sbr.rel (0) target = $region17
    $region16: #{seq2seq_forward.1} parent=1 // pred_region
      _
    $region17: #{seq2seq_forward.1} parent=1 // pred_fallthru
      _
    // Predicated region
    $region18: #{seq2seq_forward.1} parent=1 // pred_check
      _
    $region19: #{seq2seq_forward.1} parent=1 // pred_check_branch
      %40 = sbr.rel (0) target = $region21
    $region20: #{seq2seq_forward.1} parent=1 // pred_region
      _
    $region21: #{seq2seq_forward.1} parent=1 // pred_fallthru
      _
    // Predicated region
    $region22: #{seq2seq_forward.1} parent=1 // pred_check
      _
    $region23: #{seq2seq_forward.1} parent=1 // pred_check_branch
      %42 = sbr.rel (0) target = $region25
    $region24: #{seq2seq_forward.1} parent=1 // pred_region
      _
    $region25: #{seq2seq_forward.1} parent=1 // pred_fallthru
      _
    // Predicated region
    $region26: #{seq2seq_forward.1} parent=1 // pred_check
      _
    $region27: #{seq2seq_forward.1} parent=1 // pred_check_branch
      %44 = sbr.rel (0) target = $region29
    $region28: #{seq2seq_forward.1} parent=1 // pred_region
      %s46 = ssub.s32 1536, 1536
      %47 = vsyncadd [#allocation7], %s46
      %s48 = sshll.u32 [#allocation6], 4
      %s49 = int_to_ptr.vmem [resolvable:$true] %s48
      %54 = dma.hbm_to_vmem [thread:$0]  %s6, 1536, %s49, [#allocation7], 384, 384, 24
    $region29: #{seq2seq_forward.1} parent=1 // pred_fallthru
      _
    // Predicated region
    $region30: #{seq2seq_forward.1} parent=1 // pred_check
      _
    $region31: #{seq2seq_forward.1} parent=1 // pred_check_branch
      %56 = sbr.rel (0) target = $region33
    $region32: #{seq2seq_forward.1} parent=1 // pred_region
      %s58 = ssub.s32 6144, 6144
      %59 = vsyncadd [#allocation7], %s58
      %s60 = sshll.u32 [#allocation8], 4
      %s61 = int_to_ptr.vmem [resolvable:$true] %s60
      %66 = dma.hbm_to_vmem [thread:$0]  %s7, 6144, %s61, [#allocation7], 384, 384, 24
    $region33: #{seq2seq_forward.1} parent=1 // pred_fallthru
      _
    // Predicated region
    $region34: #{seq2seq_forward.1} parent=1 // pred_check
      _
    $region35: #{seq2seq_forward.1} parent=1 // pred_check_branch
      %68 = sbr.rel (0) target = $region37
    $region36: #{seq2seq_forward.1} parent=1 // pred_region
      _
    $region37: #{seq2seq_forward.1} parent=1 // pred_fallthru
      _
    // Predicated region
    $region38: #{seq2seq_forward.1} parent=1 // pred_check
      _
    $region39: #{seq2seq_forward.1} parent=1 // pred_check_branch
      %70 = sbr.rel (0) target = $region41
    $region40: #{seq2seq_forward.1} parent=1 // pred_region
      _
    $region41: #{seq2seq_forward.1} parent=1 // pred_fallthru
      _
    // Predicated region
    $region42: #{seq2seq_forward.1} parent=1 // pred_check
      _
    $region43: #{seq2seq_forward.1} parent=1 // pred_check_branch
      %72 = sbr.rel (0) target = $region45
    $region44: #{seq2seq_forward.1} parent=1 // pred_region
      %s74 = ssub.s32 4096, 4096
      %75 = vsyncadd [#allocation10], %s74
      %s76 = sshll.u32 [#allocation9], 4
      %s77 = int_to_ptr.vmem [resolvable:$true] %s76
      %82 = dma.hbm_to_vmem [thread:$0]  %s10, 4096, %s77, [#allocation10], 256, 256, 16
    $region45: #{seq2seq_forward.1} parent=1 // pred_fallthru
      _
    // Predicated region
    $region46: #{seq2seq_forward.1} parent=1 // pred_check
      _
    $region47: #{seq2seq_forward.1} parent=1 // pred_check_branch
      %84 = sbr.rel (0) target = $region49
    $region48: #{seq2seq_forward.1} parent=1 // pred_region
      _
    $region49: #{seq2seq_forward.1} parent=1 // pred_fallthru
      _
    // Predicated region
    $region50: #{seq2seq_forward.1} parent=1 // pred_check
      _
    $region51: #{seq2seq_forward.1} parent=1 // pred_check_branch
      %86 = sbr.rel (0) target = $region53
    $region52: #{seq2seq_forward.1} parent=1 // pred_region
      %87 = dma.done [#allocation4], 1536
    $region53: #{seq2seq_forward.1} parent=1 // pred_fallthru
      _
    // Predicated region
    $region54: #{seq2seq_forward.1} parent=1 // pred_check
      _
    $region55: #{seq2seq_forward.1} parent=1 // pred_check_branch
      %89 = sbr.rel (0) target = $region57
    $region56: #{seq2seq_forward.1} parent=1 // pred_region
      %90 = dma.done [#allocation7], 1536
    $region57: #{seq2seq_forward.1} parent=1 // pred_fallthru
      _
    // Predicated region
    $region58: #{seq2seq_forward.1} parent=1 // pred_check
      _
    $region59: #{seq2seq_forward.1} parent=1 // pred_check_branch
      %92 = sbr.rel (0) target = $region61
    $region60: #{seq2seq_forward.1} parent=1 // pred_region
      %93 = dma.done [#allocation7], 6144
    $region61: #{seq2seq_forward.1} parent=1 // pred_fallthru
      _
    // Predicated region
    $region62: #{seq2seq_forward.1} parent=1 // pred_check
      _
    $region63: #{seq2seq_forward.1} parent=1 // pred_check_branch
      %95 = sbr.rel (0) target = $region65
    $region64: #{seq2seq_forward.1} parent=1 // pred_region
      %96 = dma.done [#allocation10], 4096
    $region65: #{seq2seq_forward.1} parent=1 // pred_fallthru
      _
    %v97 = vld [vmem:[%s3] sm:$0xff]
    %v98 = vld [vmem:[%s3 + $0x8] sm:$0xff]
    %v99 = vld [vmem:[%s3 + $0x10] sm:$0xff]
    %v100 = vld [vmem:[%s3 + $0x18] sm:$0xff]
    %v101 = vld [vmem:[%s3 + $0x20] sm:$0xff]
    %v102 = vld [vmem:[%s3 + $0x28] sm:$0xff]
    %v103 = vld [vmem:[%s3 + $0x30] sm:$0xff]
    %v104 = vld [vmem:[%s3 + $0x38] sm:$0xff]
    %v105 = vld [vmem:[%s3 + $0x40] sm:$0xff]
    %v106 = vld [vmem:[%s3 + $0x48] sm:$0xff]
    %v107 = vld [vmem:[%s3 + $0x50] sm:$0xff]
    %v108 = vld [vmem:[%s3 + $0x58] sm:$0xff]
    %v109 = vld [vmem:[%s3 + $0x60] sm:$0xff]
    %v110 = vld [vmem:[%s3 + $0x68] sm:$0xff]
    %v111 = vld [vmem:[%s3 + $0x70] sm:$0xff]
    %v112 = vld [vmem:[%s3 + $0x78] sm:$0xff]
    %v113 = vld [vmem:[%s3 + $0x80] sm:$0xff]
    %v114 = vld [vmem:[%s3 + $0x88] sm:$0xff]
    %v115 = vld [vmem:[%s3 + $0x90] sm:$0xff]
    %v116 = vld [vmem:[%s3 + $0x98] sm:$0xff]
    %v117 = vld [vmem:[%s3 + $0xa0] sm:$0xff]
    %v118 = vld [vmem:[%s3 + $0xa8] sm:$0xff]
    %v119 = vld [vmem:[%s3 + $0xb0] sm:$0xff]
    %v120 = vld [vmem:[%s3 + $0xb8] sm:$0xff]
    %v121 = vld [vmem:[%s3 + $0xc0] sm:$0xff]
    %v122 = vld [vmem:[%s3 + $0xc8] sm:$0xff]
    %v123 = vld [vmem:[%s3 + $0xd0] sm:$0xff]
    %v124 = vld [vmem:[%s3 + $0xd8] sm:$0xff]
    %v125 = vld [vmem:[%s3 + $0xe0] sm:$0xff]
    %v126 = vld [vmem:[%s3 + $0xe8] sm:$0xff]
    %v127 = vld [vmem:[%s3 + $0xf0] sm:$0xff]
    %v128 = vld [vmem:[%s3 + $0xf8] sm:$0xff]
    %v129 = vld [vmem:[%s3 + $0x100] sm:$0xff]
    %v130 = vld [vmem:[%s3 + $0x108] sm:$0xff]
    %v131 = vld [vmem:[%s3 + $0x110] sm:$0xff]
    %v132 = vld [vmem:[%s3 + $0x118] sm:$0xff]
    %v133 = vld [vmem:[%s3 + $0x120] sm:$0xff]
    %v134 = vld [vmem:[%s3 + $0x128] sm:$0xff]
    %v135 = vld [vmem:[%s3 + $0x130] sm:$0xff]
    %v136 = vld [vmem:[%s3 + $0x138] sm:$0xff]
    %v137 = vld [vmem:[%s3 + $0x140] sm:$0xff]
    %v138 = vld [vmem:[%s3 + $0x148] sm:$0xff]
    %v139 = vld [vmem:[%s3 + $0x150] sm:$0xff]
    %v140 = vld [vmem:[%s3 + $0x158] sm:$0xff]
    %v141 = vld [vmem:[%s3 + $0x160] sm:$0xff]
    %v142 = vld [vmem:[%s3 + $0x168] sm:$0xff]
    %v143 = vld [vmem:[%s3 + $0x170] sm:$0xff]
    %v144 = vld [vmem:[%s3 + $0x178] sm:$0xff]
    %v145 = vld [vmem:[%s5] sm:$0x7]
    %v146 = vld [vmem:[#allocation8] sm:$0xff]
    %v147 = vld [vmem:[#allocation8 + $0x8] sm:$0xff]
    %v148 = vld [vmem:[#allocation8 + $0x10] sm:$0xff]
    %v149 = vld [vmem:[#allocation8 + $0x18] sm:$0xff]
    %v150 = vld [vmem:[#allocation8 + $0x20] sm:$0xff]
    %v151 = vld [vmem:[#allocation8 + $0x28] sm:$0xff]
    %v152 = vld [vmem:[#allocation8 + $0x30] sm:$0xff]
    %v153 = vld [vmem:[#allocation8 + $0x38] sm:$0xff]
    %v154 = vld [vmem:[#allocation8 + $0x40] sm:$0xff]
    %v155 = vld [vmem:[#allocation8 + $0x48] sm:$0xff]
    %v156 = vld [vmem:[#allocation8 + $0x50] sm:$0xff]
    %v157 = vld [vmem:[#allocation8 + $0x58] sm:$0xff]
    %v158 = vld [vmem:[#allocation8 + $0x60] sm:$0xff]
    %v159 = vld [vmem:[#allocation8 + $0x68] sm:$0xff]
    %v160 = vld [vmem:[#allocation8 + $0x70] sm:$0xff]
    %v161 = vld [vmem:[#allocation8 + $0x78] sm:$0xff]
    %v162 = vld [vmem:[#allocation8 + $0x80] sm:$0xff]
    %v163 = vld [vmem:[#allocation8 + $0x88] sm:$0xff]
    %v164 = vld [vmem:[#allocation8 + $0x90] sm:$0xff]
    %v165 = vld [vmem:[#allocation8 + $0x98] sm:$0xff]
    %v166 = vld [vmem:[#allocation8 + $0xa0] sm:$0xff]
    %v167 = vld [vmem:[#allocation8 + $0xa8] sm:$0xff]
    %v168 = vld [vmem:[#allocation8 + $0xb0] sm:$0xff]
    %v169 = vld [vmem:[#allocation8 + $0xb8] sm:$0xff]
    %v170 = vld [vmem:[#allocation8 + $0xc0] sm:$0xff]
    %v171 = vld [vmem:[#allocation8 + $0xc8] sm:$0xff]
    %v172 = vld [vmem:[#allocation8 + $0xd0] sm:$0xff]
    %v173 = vld [vmem:[#allocation8 + $0xd8] sm:$0xff]
    %v174 = vld [vmem:[#allocation8 + $0xe0] sm:$0xff]
    %v175 = vld [vmem:[#allocation8 + $0xe8] sm:$0xff]
    %v176 = vld [vmem:[#allocation8 + $0xf0] sm:$0xff]
    %v177 = vld [vmem:[#allocation8 + $0xf8] sm:$0xff]
    %v178 = vld [vmem:[#allocation8 + $0x100] sm:$0xff]
    %v179 = vld [vmem:[#allocation8 + $0x108] sm:$0xff]
    %v180 = vld [vmem:[#allocation8 + $0x110] sm:$0xff]
    %v181 = vld [vmem:[#allocation8 + $0x118] sm:$0xff]
    %v182 = vld [vmem:[#allocation8 + $0x120] sm:$0xff]
    %v183 = vld [vmem:[#allocation8 + $0x128] sm:$0xff]
    %v184 = vld [vmem:[#allocation8 + $0x130] sm:$0xff]
    %v185 = vld [vmem:[#allocation8 + $0x138] sm:$0xff]
    %v186 = vld [vmem:[#allocation8 + $0x140] sm:$0xff]
    %v187 = vld [vmem:[#allocation8 + $0x148] sm:$0xff]
    %v188 = vld [vmem:[#allocation8 + $0x150] sm:$0xff]
    %v189 = vld [vmem:[#allocation8 + $0x158] sm:$0xff]
    %v190 = vld [vmem:[#allocation8 + $0x160] sm:$0xff]
    %v191 = vld [vmem:[#allocation8 + $0x168] sm:$0xff]
    %v192 = vld [vmem:[#allocation8 + $0x170] sm:$0xff]
    %v193 = vld [vmem:[#allocation8 + $0x178] sm:$0xff]
    %v194 = vld [vmem:[%s9] sm:$0x7]
    %v195 = vld [vmem:[%s0] sm:$0xff]
    %v196 = vld [vmem:[#allocation3] sm:$0xff]
    %v197 = vld [vmem:[#allocation3 + $0x8] sm:$0xff]
    %v198 = vld [vmem:[#allocation3 + $0x10] sm:$0xff]
    %v199 = vld [vmem:[#allocation3 + $0x18] sm:$0xff]
    %v200 = vld [vmem:[#allocation3 + $0x20] sm:$0xff]
    %v201 = vld [vmem:[#allocation3 + $0x28] sm:$0xff]
    %v202 = vld [vmem:[#allocation3 + $0x30] sm:$0xff]
    %v203 = vld [vmem:[#allocation3 + $0x38] sm:$0xff]
    %v204 = vld [vmem:[#allocation3 + $0x40] sm:$0xff]
    %v205 = vld [vmem:[#allocation3 + $0x48] sm:$0xff]
    %v206 = vld [vmem:[#allocation3 + $0x50] sm:$0xff]
    %v207 = vld [vmem:[#allocation3 + $0x58] sm:$0xff]
    %v208 = vld [vmem:[%s4] sm:$0x7]
    %v210 = vlaneseq
    %v211 = vshrl.u32 %v210, 7
    %v212 = vsub.s32 0, %v211
    %v213 = vrot.slane %v208, %v212
    %v214 = vlaneseq
    %v215 = vshrl.u32 %v214, 7
    %v216 = vsub.s32 1, %v215
    %v217 = vrot.slane %v208, %v216
    %v218 = vlaneseq
    %v219 = vshrl.u32 %v218, 7
    %v220 = vsub.s32 2, %v219
    %v221 = vrot.slane %v208, %v220
    %vm225 = vcmask 261120
    %v227 = vsel %vm225, %v195, 0
    %229 = vmatprep.subr.mxu0 0.0
    %230 = vmatpush1.msra.mxu0 0.0
    %231 = vmatprep.subr.mxu0 0.0
    %232 = vmatpush1.msra.mxu0 0.0
    %233 = vmatprep.subr.mxu0 0.0
    %234 = vmatpush1.msra.mxu0 0.0
    %235 = vmatprep.subr.mxu0 0.0
    %236 = vmatpush1.msra.mxu0 0.0
    %237 = vmatprep.subr.mxu0 0.0
    %238 = vmatpush1.msra.mxu0 0.0
    %239 = vmatprep.subr.mxu0 0.0
    %240 = vmatpush1.msra.mxu0 0.0
    %241 = vmatprep.subr.mxu0 0.0
    %242 = vmatpush1.msra.mxu0 0.0
    %243 = vmatprep.subr.mxu0 0.0
    %244 = vmatpush1.msra.mxu0 0.0
    %245 = vmatprep.subr.mxu0 0.0
    %246 = vmatpush1.msra.mxu0 0.0
    %247 = vmatprep.subr.mxu0 0.0
    %248 = vmatpush1.msra.mxu0 0.0
    %249 = vmatprep.subr.mxu0 0.0
    %250 = vmatpush1.msra.mxu0 0.0
    %251 = vmatprep.subr.mxu0 0.0
    %252 = vmatpush1.msra.mxu0 0.0
    %253 = vmatprep.subr.mxu0 %v206
    %254 = vmatpush1.msra.mxu0 %v205
    %255 = vmatprep.subr.mxu0 %v203
    %256 = vmatpush1.msra.mxu0 %v202
    %257 = vmatprep.subr.mxu0 %v200
    %258 = vmatpush1.msra.mxu0 %v199
    %259 = vmatprep.subr.mxu0 %v197
    %260 = vmatpush1.msra.mxu0 %v196
    %261 = vmatprep.subr.mxu0 0.0
    %262 = vmatpush2.msra.mxu0 0.0
    %263 = vmatprep.subr.mxu0 0.0
    %264 = vmatpush2.msra.mxu0 0.0
    %265 = vmatprep.subr.mxu0 0.0
    %266 = vmatpush2.msra.mxu0 0.0
    %267 = vmatprep.subr.mxu0 0.0
    %268 = vmatpush2.msra.mxu0 0.0
    %269 = vmatprep.subr.mxu0 0.0
    %270 = vmatpush2.msra.mxu0 0.0
    %271 = vmatprep.subr.mxu0 0.0
    %272 = vmatpush2.msra.mxu0 0.0
    %273 = vmatprep.subr.mxu0 0.0
    %274 = vmatpush2.msra.mxu0 0.0
    %275 = vmatprep.subr.mxu0 0.0
    %276 = vmatpush2.msra.mxu0 0.0
    %277 = vmatprep.subr.mxu0 0.0
    %278 = vmatpush2.msra.mxu0 0.0
    %279 = vmatprep.subr.mxu0 0.0
    %280 = vmatpush2.msra.mxu0 0.0
    %281 = vmatprep.subr.mxu0 0.0
    %282 = vmatpush2.msra.mxu0 0.0
    %283 = vmatprep.subr.mxu0 0.0
    %284 = vmatpush2.msra.mxu0 0.0
    %285 = vmatprep.subr.mxu0 0.0
    %286 = vmatpush2.msra.mxu0 0.0
    %287 = vmatprep.subr.mxu0 0.0
    %288 = vmatpush2.msra.mxu0 0.0
    %289 = vmatprep.subr.mxu0 0.0
    %290 = vmatpush2.msra.mxu0 0.0
    %291 = vmatprep.subr.mxu0 0.0
    %292 = vmatpush2.msra.mxu0 0.0
    %293 = vmatprep.mubr.f32.mxu0 0.0
    %294 = vmatmul.mubr.f32.gmra.mxu0 %v227
    %v295 = vpop.f32.mrf.mxu0
    %v296 = vadd.f32 %v213, %v295
    %v297 = vpop.f32.mrf.mxu0
    %v298 = vadd.f32 %v217, %v297
    %299 = vdwg.mxu0
    %300 = vmatprep.subr.mxu0 0.0
    %301 = vmatpush1.msra.mxu0 0.0
    %302 = vmatprep.subr.mxu0 0.0
    %303 = vmatpush1.msra.mxu0 0.0
    %304 = vmatprep.subr.mxu0 0.0
    %305 = vmatpush1.msra.mxu0 0.0
    %306 = vmatprep.subr.mxu0 0.0
    %307 = vmatpush1.msra.mxu0 0.0
    %308 = vmatprep.subr.mxu0 0.0
    %309 = vmatpush1.msra.mxu0 0.0
    %310 = vmatprep.subr.mxu0 0.0
    %311 = vmatpush1.msra.mxu0 0.0
    %312 = vmatprep.subr.mxu0 0.0
    %313 = vmatpush1.msra.mxu0 0.0
    %314 = vmatprep.subr.mxu0 0.0
    %315 = vmatpush1.msra.mxu0 0.0
    %316 = vmatprep.subr.mxu0 0.0
    %317 = vmatpush1.msra.mxu0 0.0
    %318 = vmatprep.subr.mxu0 0.0
    %319 = vmatpush1.msra.mxu0 0.0
    %320 = vmatprep.subr.mxu0 0.0
    %321 = vmatpush1.msra.mxu0 0.0
    %322 = vmatprep.subr.mxu0 0.0
    %323 = vmatpush1.msra.mxu0 0.0
    %324 = vmatprep.subr.mxu0 0.0
    %325 = vmatpush1.msra.mxu0 %v207
    %326 = vmatprep.subr.mxu0 0.0
    %327 = vmatpush1.msra.mxu0 %v204
    %328 = vmatprep.subr.mxu0 0.0
    %329 = vmatpush1.msra.mxu0 %v201
    %330 = vmatprep.subr.mxu0 0.0
    %331 = vmatpush1.msra.mxu0 %v198
    %332 = vmatprep.subr.mxu0 0.0
    %333 = vmatpush2.msra.mxu0 0.0
    %334 = vmatprep.subr.mxu0 0.0
    %335 = vmatpush2.msra.mxu0 0.0
    %336 = vmatprep.subr.mxu0 0.0
    %337 = vmatpush2.msra.mxu0 0.0
    %338 = vmatprep.subr.mxu0 0.0
    %339 = vmatpush2.msra.mxu0 0.0
    %340 = vmatprep.subr.mxu0 0.0
    %341 = vmatpush2.msra.mxu0 0.0
    %342 = vmatprep.subr.mxu0 0.0
    %343 = vmatpush2.msra.mxu0 0.0
    %344 = vmatprep.subr.mxu0 0.0
    %345 = vmatpush2.msra.mxu0 0.0
    %346 = vmatprep.subr.mxu0 0.0
    %347 = vmatpush2.msra.mxu0 0.0
    %348 = vmatprep.subr.mxu0 0.0
    %349 = vmatpush2.msra.mxu0 0.0
    %350 = vmatprep.subr.mxu0 0.0
    %351 = vmatpush2.msra.mxu0 0.0
    %352 = vmatprep.subr.mxu0 0.0
    %353 = vmatpush2.msra.mxu0 0.0
    %354 = vmatprep.subr.mxu0 0.0
    %355 = vmatpush2.msra.mxu0 0.0
    %356 = vmatprep.subr.mxu0 0.0
    %357 = vmatpush2.msra.mxu0 0.0
    %358 = vmatprep.subr.mxu0 0.0
    %359 = vmatpush2.msra.mxu0 0.0
    %360 = vmatprep.subr.mxu0 0.0
    %361 = vmatpush2.msra.mxu0 0.0
    %362 = vmatprep.subr.mxu0 0.0
    %363 = vmatpush2.msra.mxu0 0.0
    %364 = vmatprep.mubr.f32.mxu0 0.0
    %365 = vmatmul.mubr.f32.gmra.mxu0 %v227
    %v366 = vpop.f32.mrf.mxu0
    %v367 = vadd.f32 %v221, %v366
    %v368 = vpop.f32.mrf.mxu0
    %369 = vdwg.mxu0
    %v370 = vld [vmem:[%s1] sm:$0x3]
    %v371 = vld [vmem:[#allocation6] sm:$0xff]
    %v372 = vld [vmem:[#allocation6 + $0x8] sm:$0xff]
    %v373 = vld [vmem:[#allocation6 + $0x10] sm:$0xff]
    %v374 = vld [vmem:[#allocation6 + $0x18] sm:$0xff]
    %v375 = vld [vmem:[#allocation6 + $0x20] sm:$0xff]
    %v376 = vld [vmem:[#allocation6 + $0x28] sm:$0xff]
    %v377 = vld [vmem:[#allocation6 + $0x30] sm:$0xff]
    %v378 = vld [vmem:[#allocation6 + $0x38] sm:$0xff]
    %v379 = vld [vmem:[#allocation6 + $0x40] sm:$0xff]
    %v380 = vld [vmem:[#allocation6 + $0x48] sm:$0xff]
    %v381 = vld [vmem:[#allocation6 + $0x50] sm:$0xff]
    %v382 = vld [vmem:[#allocation6 + $0x58] sm:$0xff]
    %v383 = vld [vmem:[%s8] sm:$0x7]
    %v385 = vlaneseq
    %v386 = vshrl.u32 %v385, 7
    %v387 = vsub.s32 0, %v386
    %v388 = vrot.slane %v383, %v387
    %v389 = vlaneseq
    %v390 = vshrl.u32 %v389, 7
    %v391 = vsub.s32 1, %v390
    %v392 = vrot.slane %v383, %v391
    %v393 = vlaneseq
    %v394 = vshrl.u32 %v393, 7
    %v395 = vsub.s32 2, %v394
    %v396 = vrot.slane %v383, %v395
    %v401 = vsel %vm225, %v370, 0
    %403 = vmatprep.subr.mxu0 0.0
    %404 = vmatpush1.msra.mxu0 0.0
    %405 = vmatprep.subr.mxu0 0.0
    %406 = vmatpush1.msra.mxu0 0.0
    %407 = vmatprep.subr.mxu0 0.0
    %408 = vmatpush1.msra.mxu0 0.0
    %409 = vmatprep.subr.mxu0 0.0
    %410 = vmatpush1.msra.mxu0 0.0
    %411 = vmatprep.subr.mxu0 0.0
    %412 = vmatpush1.msra.mxu0 0.0
    %413 = vmatprep.subr.mxu0 0.0
    %414 = vmatpush1.msra.mxu0 0.0
    %415 = vmatprep.subr.mxu0 0.0
    %416 = vmatpush1.msra.mxu0 0.0
    %417 = vmatprep.subr.mxu0 0.0
    %418 = vmatpush1.msra.mxu0 0.0
    %419 = vmatprep.subr.mxu0 0.0
    %420 = vmatpush1.msra.mxu0 0.0
    %421 = vmatprep.subr.mxu0 0.0
    %422 = vmatpush1.msra.mxu0 0.0
    %423 = vmatprep.subr.mxu0 0.0
    %424 = vmatpush1.msra.mxu0 0.0
    %425 = vmatprep.subr.mxu0 0.0
    %426 = vmatpush1.msra.mxu0 0.0
    %427 = vmatprep.subr.mxu0 %v381
    %428 = vmatpush1.msra.mxu0 %v380
    %429 = vmatprep.subr.mxu0 %v378
    %430 = vmatpush1.msra.mxu0 %v377
    %431 = vmatprep.subr.mxu0 %v375
    %432 = vmatpush1.msra.mxu0 %v374
    %433 = vmatprep.subr.mxu0 %v372
    %434 = vmatpush1.msra.mxu0 %v371
    %435 = vmatprep.subr.mxu0 0.0
    %436 = vmatpush2.msra.mxu0 0.0
    %437 = vmatprep.subr.mxu0 0.0
    %438 = vmatpush2.msra.mxu0 0.0
    %439 = vmatprep.subr.mxu0 0.0
    %440 = vmatpush2.msra.mxu0 0.0
    %441 = vmatprep.subr.mxu0 0.0
    %442 = vmatpush2.msra.mxu0 0.0
    %443 = vmatprep.subr.mxu0 0.0
    %444 = vmatpush2.msra.mxu0 0.0
    %445 = vmatprep.subr.mxu0 0.0
    %446 = vmatpush2.msra.mxu0 0.0
    %447 = vmatprep.subr.mxu0 0.0
    %448 = vmatpush2.msra.mxu0 0.0
    %449 = vmatprep.subr.mxu0 0.0
    %450 = vmatpush2.msra.mxu0 0.0
    %451 = vmatprep.subr.mxu0 0.0
    %452 = vmatpush2.msra.mxu0 0.0
    %453 = vmatprep.subr.mxu0 0.0
    %454 = vmatpush2.msra.mxu0 0.0
    %455 = vmatprep.subr.mxu0 0.0
    %456 = vmatpush2.msra.mxu0 0.0
    %457 = vmatprep.subr.mxu0 0.0
    %458 = vmatpush2.msra.mxu0 0.0
    %459 = vmatprep.subr.mxu0 0.0
    %460 = vmatpush2.msra.mxu0 0.0
    %461 = vmatprep.subr.mxu0 0.0
    %462 = vmatpush2.msra.mxu0 0.0
    %463 = vmatprep.subr.mxu0 0.0
    %464 = vmatpush2.msra.mxu0 0.0
    %465 = vmatprep.subr.mxu0 0.0
    %466 = vmatpush2.msra.mxu0 0.0
    %467 = vmatprep.mubr.f32.mxu0 0.0
    %468 = vmatmul.mubr.f32.gmra.mxu0 %v401
    %v469 = vpop.f32.mrf.mxu0
    %v470 = vadd.f32 %v388, %v469
    %v471 = vpop.f32.mrf.mxu0
    %v472 = vadd.f32 %v392, %v471
    %473 = vdwg.mxu0
    %474 = vmatprep.subr.mxu0 0.0
    %475 = vmatpush1.msra.mxu0 0.0
    %476 = vmatprep.subr.mxu0 0.0
    %477 = vmatpush1.msra.mxu0 0.0
    %478 = vmatprep.subr.mxu0 0.0
    %479 = vmatpush1.msra.mxu0 0.0
    %480 = vmatprep.subr.mxu0 0.0
    %481 = vmatpush1.msra.mxu0 0.0
    %482 = vmatprep.subr.mxu0 0.0
    %483 = vmatpush1.msra.mxu0 0.0
    %484 = vmatprep.subr.mxu0 0.0
    %485 = vmatpush1.msra.mxu0 0.0
    %486 = vmatprep.subr.mxu0 0.0
    %487 = vmatpush1.msra.mxu0 0.0
    %488 = vmatprep.subr.mxu0 0.0
    %489 = vmatpush1.msra.mxu0 0.0
    %490 = vmatprep.subr.mxu0 0.0
    %491 = vmatpush1.msra.mxu0 0.0
    %492 = vmatprep.subr.mxu0 0.0
    %493 = vmatpush1.msra.mxu0 0.0
    %494 = vmatprep.subr.mxu0 0.0
    %495 = vmatpush1.msra.mxu0 0.0
    %496 = vmatprep.subr.mxu0 0.0
    %497 = vmatpush1.msra.mxu0 0.0
    %498 = vmatprep.subr.mxu0 0.0
    %499 = vmatpush1.msra.mxu0 %v382
    %500 = vmatprep.subr.mxu0 0.0
    %501 = vmatpush1.msra.mxu0 %v379
    %502 = vmatprep.subr.mxu0 0.0
    %503 = vmatpush1.msra.mxu0 %v376
    %504 = vmatprep.subr.mxu0 0.0
    %505 = vmatpush1.msra.mxu0 %v373
    %506 = vmatprep.subr.mxu0 0.0
    %507 = vmatpush2.msra.mxu0 0.0
    %508 = vmatprep.subr.mxu0 0.0
    %509 = vmatpush2.msra.mxu0 0.0
    %510 = vmatprep.subr.mxu0 0.0
    %511 = vmatpush2.msra.mxu0 0.0
    %512 = vmatprep.subr.mxu0 0.0
    %513 = vmatpush2.msra.mxu0 0.0
    %514 = vmatprep.subr.mxu0 0.0
    %515 = vmatpush2.msra.mxu0 0.0
    %516 = vmatprep.subr.mxu0 0.0
    %517 = vmatpush2.msra.mxu0 0.0
    %518 = vmatprep.subr.mxu0 0.0
    %519 = vmatpush2.msra.mxu0 0.0
    %520 = vmatprep.subr.mxu0 0.0
    %521 = vmatpush2.msra.mxu0 0.0
    %522 = vmatprep.subr.mxu0 0.0
    %523 = vmatpush2.msra.mxu0 0.0
    %524 = vmatprep.subr.mxu0 0.0
    %525 = vmatpush2.msra.mxu0 0.0
    %526 = vmatprep.subr.mxu0 0.0
    %527 = vmatpush2.msra.mxu0 0.0
    %528 = vmatprep.subr.mxu0 0.0
    %529 = vmatpush2.msra.mxu0 0.0
    %530 = vmatprep.subr.mxu0 0.0
    %531 = vmatpush2.msra.mxu0 0.0
    %532 = vmatprep.subr.mxu0 0.0
    %533 = vmatpush2.msra.mxu0 0.0
    %534 = vmatprep.subr.mxu0 0.0
    %535 = vmatpush2.msra.mxu0 0.0
    %536 = vmatprep.subr.mxu0 0.0
    %537 = vmatpush2.msra.mxu0 0.0
    %538 = vmatprep.mubr.f32.mxu0 0.0
    %539 = vmatmul.mubr.f32.gmra.mxu0 %v401
    %v540 = vpop.f32.mrf.mxu0
    %v541 = vadd.f32 %v396, %v540
    %v542 = vpop.f32.mrf.mxu0
    %543 = vdwg.mxu0
    %v545 = vlaneseq
    %v546 = vshrl.u32 %v545, 7
    %v547 = vsub.s32 0, %v546
    %v548 = vrot.slane %v145, %v547
    %v549 = vlaneseq
    %v550 = vshrl.u32 %v549, 7
    %v551 = vsub.s32 1, %v550
    %v552 = vrot.slane %v145, %v551
    %v553 = vlaneseq
    %v554 = vshrl.u32 %v553, 7
    %v555 = vsub.s32 2, %v554
    %v556 = vrot.slane %v145, %v555
    %560 = vmatprep.subr.mxu0 %v143
    %561 = vmatpush1.msra.mxu0 %v142
    %562 = vmatprep.subr.mxu0 %v140
    %563 = vmatpush1.msra.mxu0 %v139
    %564 = vmatprep.subr.mxu0 %v137
    %565 = vmatpush1.msra.mxu0 %v136
    %566 = vmatprep.subr.mxu0 %v134
    %567 = vmatpush1.msra.mxu0 %v133
    %568 = vmatprep.subr.mxu0 %v131
    %569 = vmatpush1.msra.mxu0 %v130
    %570 = vmatprep.subr.mxu0 %v128
    %571 = vmatpush1.msra.mxu0 %v127
    %572 = vmatprep.subr.mxu0 %v125
    %573 = vmatpush1.msra.mxu0 %v124
    %574 = vmatprep.subr.mxu0 %v122
    %575 = vmatpush1.msra.mxu0 %v121
    %576 = vmatprep.subr.mxu0 %v119
    %577 = vmatpush1.msra.mxu0 %v118
    %578 = vmatprep.subr.mxu0 %v116
    %579 = vmatpush1.msra.mxu0 %v115
    %580 = vmatprep.subr.mxu0 %v113
    %581 = vmatpush1.msra.mxu0 %v112
    %582 = vmatprep.subr.mxu0 %v110
    %583 = vmatpush1.msra.mxu0 %v109
    %584 = vmatprep.subr.mxu0 %v107
    %585 = vmatpush1.msra.mxu0 %v106
    %586 = vmatprep.subr.mxu0 %v104
    %587 = vmatpush1.msra.mxu0 %v103
    %588 = vmatprep.subr.mxu0 %v101
    %589 = vmatpush1.msra.mxu0 %v100
    %590 = vmatprep.subr.mxu0 %v98
    %591 = vmatpush1.msra.mxu0 %v97
    %592 = vmatprep.subr.mxu0 0.0
    %593 = vmatpush2.msra.mxu0 0.0
    %594 = vmatprep.subr.mxu0 0.0
    %595 = vmatpush2.msra.mxu0 0.0
    %596 = vmatprep.subr.mxu0 0.0
    %597 = vmatpush2.msra.mxu0 0.0
    %598 = vmatprep.subr.mxu0 0.0
    %599 = vmatpush2.msra.mxu0 0.0
    %600 = vmatprep.subr.mxu0 0.0
    %601 = vmatpush2.msra.mxu0 0.0
    %602 = vmatprep.subr.mxu0 0.0
    %603 = vmatpush2.msra.mxu0 0.0
    %604 = vmatprep.subr.mxu0 0.0
    %605 = vmatpush2.msra.mxu0 0.0
    %606 = vmatprep.subr.mxu0 0.0
    %607 = vmatpush2.msra.mxu0 0.0
    %608 = vmatprep.subr.mxu0 0.0
    %609 = vmatpush2.msra.mxu0 0.0
    %610 = vmatprep.subr.mxu0 0.0
    %611 = vmatpush2.msra.mxu0 0.0
    %612 = vmatprep.subr.mxu0 0.0
    %613 = vmatpush2.msra.mxu0 0.0
    %614 = vmatprep.subr.mxu0 0.0
    %615 = vmatpush2.msra.mxu0 0.0
    %616 = vmatprep.subr.mxu0 0.0
    %617 = vmatpush2.msra.mxu0 0.0
    %618 = vmatprep.subr.mxu0 0.0
    %619 = vmatpush2.msra.mxu0 0.0
    %620 = vmatprep.subr.mxu0 0.0
    %621 = vmatpush2.msra.mxu0 0.0
    %622 = vmatprep.subr.mxu0 0.0
    %623 = vmatpush2.msra.mxu0 0.0
    %624 = vmatprep.mubr.f32.mxu0 0.0
    %625 = vmatmul.mubr.f32.gmra.mxu0 0.0
    %v626 = vpop.f32.mrf.mxu0
    %v627 = vadd.f32 %v548, %v626
    %v628 = vpop.f32.mrf.mxu0
    %v629 = vadd.f32 %v552, %v628
    %630 = vdwg.mxu0
    %631 = vmatprep.subr.mxu0 0.0
    %632 = vmatpush1.msra.mxu0 %v144
    %633 = vmatprep.subr.mxu0 0.0
    %634 = vmatpush1.msra.mxu0 %v141
    %635 = vmatprep.subr.mxu0 0.0
    %636 = vmatpush1.msra.mxu0 %v138
    %637 = vmatprep.subr.mxu0 0.0
    %638 = vmatpush1.msra.mxu0 %v135
    %639 = vmatprep.subr.mxu0 0.0
    %640 = vmatpush1.msra.mxu0 %v132
    %641 = vmatprep.subr.mxu0 0.0
    %642 = vmatpush1.msra.mxu0 %v129
    %643 = vmatprep.subr.mxu0 0.0
    %644 = vmatpush1.msra.mxu0 %v126
    %645 = vmatprep.subr.mxu0 0.0
    %646 = vmatpush1.msra.mxu0 %v123
    %647 = vmatprep.subr.mxu0 0.0
    %648 = vmatpush1.msra.mxu0 %v120
    %649 = vmatprep.subr.mxu0 0.0
    %650 = vmatpush1.msra.mxu0 %v117
    %651 = vmatprep.subr.mxu0 0.0
    %652 = vmatpush1.msra.mxu0 %v114
    %653 = vmatprep.subr.mxu0 0.0
    %654 = vmatpush1.msra.mxu0 %v111
    %655 = vmatprep.subr.mxu0 0.0
    %656 = vmatpush1.msra.mxu0 %v108
    %657 = vmatprep.subr.mxu0 0.0
    %658 = vmatpush1.msra.mxu0 %v105
    %659 = vmatprep.subr.mxu0 0.0
    %660 = vmatpush1.msra.mxu0 %v102
    %661 = vmatprep.subr.mxu0 0.0
    %662 = vmatpush1.msra.mxu0 %v99
    %663 = vmatprep.subr.mxu0 0.0
    %664 = vmatpush2.msra.mxu0 0.0
    %665 = vmatprep.subr.mxu0 0.0
    %666 = vmatpush2.msra.mxu0 0.0
    %667 = vmatprep.subr.mxu0 0.0
    %668 = vmatpush2.msra.mxu0 0.0
    %669 = vmatprep.subr.mxu0 0.0
    %670 = vmatpush2.msra.mxu0 0.0
    %671 = vmatprep.subr.mxu0 0.0
    %672 = vmatpush2.msra.mxu0 0.0
    %673 = vmatprep.subr.mxu0 0.0
    %674 = vmatpush2.msra.mxu0 0.0
    %675 = vmatprep.subr.mxu0 0.0
    %676 = vmatpush2.msra.mxu0 0.0
    %677 = vmatprep.subr.mxu0 0.0
    %678 = vmatpush2.msra.mxu0 0.0
    %679 = vmatprep.subr.mxu0 0.0
    %680 = vmatpush2.msra.mxu0 0.0
    %681 = vmatprep.subr.mxu0 0.0
    %682 = vmatpush2.msra.mxu0 0.0
    %683 = vmatprep.subr.mxu0 0.0
    %684 = vmatpush2.msra.mxu0 0.0
    %685 = vmatprep.subr.mxu0 0.0
    %686 = vmatpush2.msra.mxu0 0.0
    %687 = vmatprep.subr.mxu0 0.0
    %688 = vmatpush2.msra.mxu0 0.0
    %689 = vmatprep.subr.mxu0 0.0
    %690 = vmatpush2.msra.mxu0 0.0
    %691 = vmatprep.subr.mxu0 0.0
    %692 = vmatpush2.msra.mxu0 0.0
    %693 = vmatprep.subr.mxu0 0.0
    %694 = vmatpush2.msra.mxu0 0.0
    %695 = vmatprep.mubr.f32.mxu0 0.0
    %696 = vmatmul.mubr.f32.gmra.mxu0 0.0
    %v697 = vpop.f32.mrf.mxu0
    %v698 = vadd.f32 %v556, %v697
    %v699 = vpop.f32.mrf.mxu0
    %700 = vdwg.mxu0
    %v701 = vadd.f32 %v296, %v627
    %v702 = vxor.u32 %v701, 2147483648
    %v703 = vmul.f32 %v702, 1.442695
    %v704 = vpow.pop %v703
    %v705 = vadd.f32 %v704, 1.0
    %v706 = vrcp.pop %v705
    %v707 = vmul.f32 1.0, %v706
    %v708 = vadd.f32 %v298, %v629
    %v709 = vxor.u32 %v708, 2147483648
    %v710 = vmul.f32 %v709, 1.442695
    %v711 = vpow.pop %v710
    %v712 = vadd.f32 %v711, 1.0
    %v713 = vrcp.pop %v712
    %v714 = vmul.f32 1.0, %v713
    %v715 = vmul.f32 %v707, %v698
    %v716 = vadd.f32 %v367, %v715
    %v717 = vtanh.pop %v716
    %v718 = vsub.f32 1.0, %v714
    %v719 = vmul.f32 %v718, %v717
    %v720 = vmul.f32 %v714, 0.0
    %v721 = vadd.f32 %v719, %v720
    %722 = vmatprep.subr.mxu0 %v143
    %723 = vmatpush1.msra.mxu0 %v142
    %724 = vmatprep.subr.mxu0 %v140
    %725 = vmatpush1.msra.mxu0 %v139
    %726 = vmatprep.subr.mxu0 %v137
    %727 = vmatpush1.msra.mxu0 %v136
    %728 = vmatprep.subr.mxu0 %v134
    %729 = vmatpush1.msra.mxu0 %v133
    %730 = vmatprep.subr.mxu0 %v131
    %731 = vmatpush1.msra.mxu0 %v130
    %732 = vmatprep.subr.mxu0 %v128
    %733 = vmatpush1.msra.mxu0 %v127
    %734 = vmatprep.subr.mxu0 %v125
    %735 = vmatpush1.msra.mxu0 %v124
    %736 = vmatprep.subr.mxu0 %v122
    %737 = vmatpush1.msra.mxu0 %v121
    %738 = vmatprep.subr.mxu0 %v119
    %739 = vmatpush1.msra.mxu0 %v118
    %740 = vmatprep.subr.mxu0 %v116
    %741 = vmatpush1.msra.mxu0 %v115
    %742 = vmatprep.subr.mxu0 %v113
    %743 = vmatpush1.msra.mxu0 %v112
    %744 = vmatprep.subr.mxu0 %v110
    %745 = vmatpush1.msra.mxu0 %v109
    %746 = vmatprep.subr.mxu0 %v107
    %747 = vmatpush1.msra.mxu0 %v106
    %748 = vmatprep.subr.mxu0 %v104
    %749 = vmatpush1.msra.mxu0 %v103
    %750 = vmatprep.subr.mxu0 %v101
    %751 = vmatpush1.msra.mxu0 %v100
    %752 = vmatprep.subr.mxu0 %v98
    %753 = vmatpush1.msra.mxu0 %v97
    %754 = vmatprep.subr.mxu0 0.0
    %755 = vmatpush2.msra.mxu0 0.0
    %756 = vmatprep.subr.mxu0 0.0
    %757 = vmatpush2.msra.mxu0 0.0
    %758 = vmatprep.subr.mxu0 0.0
    %759 = vmatpush2.msra.mxu0 0.0
    %760 = vmatprep.subr.mxu0 0.0
    %761 = vmatpush2.msra.mxu0 0.0
    %762 = vmatprep.subr.mxu0 0.0
    %763 = vmatpush2.msra.mxu0 0.0
    %764 = vmatprep.subr.mxu0 0.0
    %765 = vmatpush2.msra.mxu0 0.0
    %766 = vmatprep.subr.mxu0 0.0
    %767 = vmatpush2.msra.mxu0 0.0
    %768 = vmatprep.subr.mxu0 0.0
    %769 = vmatpush2.msra.mxu0 0.0
    %770 = vmatprep.subr.mxu0 0.0
    %771 = vmatpush2.msra.mxu0 0.0
    %772 = vmatprep.subr.mxu0 0.0
    %773 = vmatpush2.msra.mxu0 0.0
    %774 = vmatprep.subr.mxu0 0.0
    %775 = vmatpush2.msra.mxu0 0.0
    %776 = vmatprep.subr.mxu0 0.0
    %777 = vmatpush2.msra.mxu0 0.0
    %778 = vmatprep.subr.mxu0 0.0
    %779 = vmatpush2.msra.mxu0 0.0
    %780 = vmatprep.subr.mxu0 0.0
    %781 = vmatpush2.msra.mxu0 0.0
    %782 = vmatprep.subr.mxu0 0.0
    %783 = vmatpush2.msra.mxu0 0.0
    %784 = vmatprep.subr.mxu0 0.0
    %785 = vmatpush2.msra.mxu0 0.0
    %786 = vmatprep.mubr.f32.mxu0 0.0
    %787 = vmatmul.mubr.f32.gmra.mxu0 %v721
    %v788 = vpop.f32.mrf.mxu0
    %v789 = vadd.f32 %v548, %v788
    %v790 = vpop.f32.mrf.mxu0
    %v791 = vadd.f32 %v552, %v790
    %792 = vdwg.mxu0
    %793 = vmatprep.subr.mxu0 0.0
    %794 = vmatpush1.msra.mxu0 %v144
    %795 = vmatprep.subr.mxu0 0.0
    %796 = vmatpush1.msra.mxu0 %v141
    %797 = vmatprep.subr.mxu0 0.0
    %798 = vmatpush1.msra.mxu0 %v138
    %799 = vmatprep.subr.mxu0 0.0
    %800 = vmatpush1.msra.mxu0 %v135
    %801 = vmatprep.subr.mxu0 0.0
    %802 = vmatpush1.msra.mxu0 %v132
    %803 = vmatprep.subr.mxu0 0.0
    %804 = vmatpush1.msra.mxu0 %v129
    %805 = vmatprep.subr.mxu0 0.0
    %806 = vmatpush1.msra.mxu0 %v126
    %807 = vmatprep.subr.mxu0 0.0
    %808 = vmatpush1.msra.mxu0 %v123
    %809 = vmatprep.subr.mxu0 0.0
    %810 = vmatpush1.msra.mxu0 %v120
    %811 = vmatprep.subr.mxu0 0.0
    %812 = vmatpush1.msra.mxu0 %v117
    %813 = vmatprep.subr.mxu0 0.0
    %814 = vmatpush1.msra.mxu0 %v114
    %815 = vmatprep.subr.mxu0 0.0
    %816 = vmatpush1.msra.mxu0 %v111
    %817 = vmatprep.subr.mxu0 0.0
    %818 = vmatpush1.msra.mxu0 %v108
    %819 = vmatprep.subr.mxu0 0.0
    %820 = vmatpush1.msra.mxu0 %v105
    %821 = vmatprep.subr.mxu0 0.0
    %822 = vmatpush1.msra.mxu0 %v102
    %823 = vmatprep.subr.mxu0 0.0
    %824 = vmatpush1.msra.mxu0 %v99
    %825 = vmatprep.subr.mxu0 0.0
    %826 = vmatpush2.msra.mxu0 0.0
    %827 = vmatprep.subr.mxu0 0.0
    %828 = vmatpush2.msra.mxu0 0.0
    %829 = vmatprep.subr.mxu0 0.0
    %830 = vmatpush2.msra.mxu0 0.0
    %831 = vmatprep.subr.mxu0 0.0
    %832 = vmatpush2.msra.mxu0 0.0
    %833 = vmatprep.subr.mxu0 0.0
    %834 = vmatpush2.msra.mxu0 0.0
    %835 = vmatprep.subr.mxu0 0.0
    %836 = vmatpush2.msra.mxu0 0.0
    %837 = vmatprep.subr.mxu0 0.0
    %838 = vmatpush2.msra.mxu0 0.0
    %839 = vmatprep.subr.mxu0 0.0
    %840 = vmatpush2.msra.mxu0 0.0
    %841 = vmatprep.subr.mxu0 0.0
    %842 = vmatpush2.msra.mxu0 0.0
    %843 = vmatprep.subr.mxu0 0.0
    %844 = vmatpush2.msra.mxu0 0.0
    %845 = vmatprep.subr.mxu0 0.0
    %846 = vmatpush2.msra.mxu0 0.0
    %847 = vmatprep.subr.mxu0 0.0
    %848 = vmatpush2.msra.mxu0 0.0
    %849 = vmatprep.subr.mxu0 0.0
    %850 = vmatpush2.msra.mxu0 0.0
    %851 = vmatprep.subr.mxu0 0.0
    %852 = vmatpush2.msra.mxu0 0.0
    %853 = vmatprep.subr.mxu0 0.0
    %854 = vmatpush2.msra.mxu0 0.0
    %855 = vmatprep.subr.mxu0 0.0
    %856 = vmatpush2.msra.mxu0 0.0
    %857 = vmatprep.mubr.f32.mxu0 0.0
    %858 = vmatmul.mubr.f32.gmra.mxu0 %v721
    %v859 = vpop.f32.mrf.mxu0
    %v860 = vadd.f32 %v556, %v859
    %v861 = vpop.f32.mrf.mxu0
    %862 = vdwg.mxu0
    %v864 = vrot.slane %v789, 7
    %v866 = vadd.f32 %v296, %v864
    %v867 = vxor.u32 %v866, 2147483648
    %v868 = vmul.f32 %v867, 1.442695
    %v869 = vpow.pop %v868
    %v870 = vadd.f32 %v869, 1.0
    %v871 = vrcp.pop %v870
    %v872 = vmul.f32 1.0, %v871
    %v874 = vrot.slane %v791, 7
    %v876 = vadd.f32 %v298, %v874
    %v877 = vxor.u32 %v876, 2147483648
    %v878 = vmul.f32 %v877, 1.442695
    %v879 = vpow.pop %v878
    %v880 = vadd.f32 %v879, 1.0
    %v881 = vrcp.pop %v880
    %v882 = vmul.f32 1.0, %v881
    %v884 = vrot.slane %v860, 7
    %v886 = vmul.f32 %v872, %v884
    %v887 = vadd.f32 %v367, %v886
    %v888 = vtanh.pop %v887
    %v889 = vsub.f32 1.0, %v882
    %v890 = vmul.f32 %v889, %v888
    %v892 = vrot.slane %v721, 7
    %v894 = vmul.f32 %v882, %v892
    %v895 = vadd.f32 %v890, %v894
    %v897 = vrot.slane %v895, 1
    %899 = vmatprep.subr.mxu0 %v143
    %900 = vmatpush1.msra.mxu0 %v142
    %901 = vmatprep.subr.mxu0 %v140
    %902 = vmatpush1.msra.mxu0 %v139
    %903 = vmatprep.subr.mxu0 %v137
    %904 = vmatpush1.msra.mxu0 %v136
    %905 = vmatprep.subr.mxu0 %v134
    %906 = vmatpush1.msra.mxu0 %v133
    %907 = vmatprep.subr.mxu0 %v131
    %908 = vmatpush1.msra.mxu0 %v130
    %909 = vmatprep.subr.mxu0 %v128
    %910 = vmatpush1.msra.mxu0 %v127
    %911 = vmatprep.subr.mxu0 %v125
    %912 = vmatpush1.msra.mxu0 %v124
    %913 = vmatprep.subr.mxu0 %v122
    %914 = vmatpush1.msra.mxu0 %v121
    %915 = vmatprep.subr.mxu0 %v119
    %916 = vmatpush1.msra.mxu0 %v118
    %917 = vmatprep.subr.mxu0 %v116
    %918 = vmatpush1.msra.mxu0 %v115
    %919 = vmatprep.subr.mxu0 %v113
    %920 = vmatpush1.msra.mxu0 %v112
    %921 = vmatprep.subr.mxu0 %v110
    %922 = vmatpush1.msra.mxu0 %v109
    %923 = vmatprep.subr.mxu0 %v107
    %924 = vmatpush1.msra.mxu0 %v106
    %925 = vmatprep.subr.mxu0 %v104
    %926 = vmatpush1.msra.mxu0 %v103
    %927 = vmatprep.subr.mxu0 %v101
    %928 = vmatpush1.msra.mxu0 %v100
    %929 = vmatprep.subr.mxu0 %v98
    %930 = vmatpush1.msra.mxu0 %v97
    %931 = vmatprep.subr.mxu0 0.0
    %932 = vmatpush2.msra.mxu0 0.0
    %933 = vmatprep.subr.mxu0 0.0
    %934 = vmatpush2.msra.mxu0 0.0
    %935 = vmatprep.subr.mxu0 0.0
    %936 = vmatpush2.msra.mxu0 0.0
    %937 = vmatprep.subr.mxu0 0.0
    %938 = vmatpush2.msra.mxu0 0.0
    %939 = vmatprep.subr.mxu0 0.0
    %940 = vmatpush2.msra.mxu0 0.0
    %941 = vmatprep.subr.mxu0 0.0
    %942 = vmatpush2.msra.mxu0 0.0
    %943 = vmatprep.subr.mxu0 0.0
    %944 = vmatpush2.msra.mxu0 0.0
    %945 = vmatprep.subr.mxu0 0.0
    %946 = vmatpush2.msra.mxu0 0.0
    %947 = vmatprep.subr.mxu0 0.0
    %948 = vmatpush2.msra.mxu0 0.0
    %949 = vmatprep.subr.mxu0 0.0
    %950 = vmatpush2.msra.mxu0 0.0
    %951 = vmatprep.subr.mxu0 0.0
    %952 = vmatpush2.msra.mxu0 0.0
    %953 = vmatprep.subr.mxu0 0.0
    %954 = vmatpush2.msra.mxu0 0.0
    %955 = vmatprep.subr.mxu0 0.0
    %956 = vmatpush2.msra.mxu0 0.0
    %957 = vmatprep.subr.mxu0 0.0
    %958 = vmatpush2.msra.mxu0 0.0
    %959 = vmatprep.subr.mxu0 0.0
    %960 = vmatpush2.msra.mxu0 0.0
    %961 = vmatprep.subr.mxu0 0.0
    %962 = vmatpush2.msra.mxu0 0.0
    %963 = vmatprep.mubr.f32.mxu0 0.0
    %964 = vmatmul.mubr.f32.gmra.mxu0 %v897
    %v965 = vpop.f32.mrf.mxu0
    %v966 = vadd.f32 %v548, %v965
    %v967 = vpop.f32.mrf.mxu0
    %v968 = vadd.f32 %v552, %v967
    %969 = vdwg.mxu0
    %970 = vmatprep.subr.mxu0 0.0
    %971 = vmatpush1.msra.mxu0 %v144
    %972 = vmatprep.subr.mxu0 0.0
    %973 = vmatpush1.msra.mxu0 %v141
    %974 = vmatprep.subr.mxu0 0.0
    %975 = vmatpush1.msra.mxu0 %v138
    %976 = vmatprep.subr.mxu0 0.0
    %977 = vmatpush1.msra.mxu0 %v135
    %978 = vmatprep.subr.mxu0 0.0
    %979 = vmatpush1.msra.mxu0 %v132
    %980 = vmatprep.subr.mxu0 0.0
    %981 = vmatpush1.msra.mxu0 %v129
    %982 = vmatprep.subr.mxu0 0.0
    %983 = vmatpush1.msra.mxu0 %v126
    %984 = vmatprep.subr.mxu0 0.0
    %985 = vmatpush1.msra.mxu0 %v123
    %986 = vmatprep.subr.mxu0 0.0
    %987 = vmatpush1.msra.mxu0 %v120
    %988 = vmatprep.subr.mxu0 0.0
    %989 = vmatpush1.msra.mxu0 %v117
    %990 = vmatprep.subr.mxu0 0.0
    %991 = vmatpush1.msra.mxu0 %v114
    %992 = vmatprep.subr.mxu0 0.0
    %993 = vmatpush1.msra.mxu0 %v111
    %994 = vmatprep.subr.mxu0 0.0
    %995 = vmatpush1.msra.mxu0 %v108
    %996 = vmatprep.subr.mxu0 0.0
    %997 = vmatpush1.msra.mxu0 %v105
    %998 = vmatprep.subr.mxu0 0.0
    %999 = vmatpush1.msra.mxu0 %v102
    %1000 = vmatprep.subr.mxu0 0.0
    %1001 = vmatpush1.msra.mxu0 %v99
    %1002 = vmatprep.subr.mxu0 0.0
    %1003 = vmatpush2.msra.mxu0 0.0
    %1004 = vmatprep.subr.mxu0 0.0
    %1005 = vmatpush2.msra.mxu0 0.0
    %1006 = vmatprep.subr.mxu0 0.0
    %1007 = vmatpush2.msra.mxu0 0.0
    %1008 = vmatprep.subr.mxu0 0.0
    %1009 = vmatpush2.msra.mxu0 0.0
    %1010 = vmatprep.subr.mxu0 0.0
    %1011 = vmatpush2.msra.mxu0 0.0
    %1012 = vmatprep.subr.mxu0 0.0
    %1013 = vmatpush2.msra.mxu0 0.0
    %1014 = vmatprep.subr.mxu0 0.0
    %1015 = vmatpush2.msra.mxu0 0.0
    %1016 = vmatprep.subr.mxu0 0.0
    %1017 = vmatpush2.msra.mxu0 0.0
    %1018 = vmatprep.subr.mxu0 0.0
    %1019 = vmatpush2.msra.mxu0 0.0
    %1020 = vmatprep.subr.mxu0 0.0
    %1021 = vmatpush2.msra.mxu0 0.0
    %1022 = vmatprep.subr.mxu0 0.0
    %1023 = vmatpush2.msra.mxu0 0.0
    %1024 = vmatprep.subr.mxu0 0.0
    %1025 = vmatpush2.msra.mxu0 0.0
    %1026 = vmatprep.subr.mxu0 0.0
    %1027 = vmatpush2.msra.mxu0 0.0
    %1028 = vmatprep.subr.mxu0 0.0
    %1029 = vmatpush2.msra.mxu0 0.0
    %1030 = vmatprep.subr.mxu0 0.0
    %1031 = vmatpush2.msra.mxu0 0.0
    %1032 = vmatprep.subr.mxu0 0.0
    %1033 = vmatpush2.msra.mxu0 0.0
    %1034 = vmatprep.mubr.f32.mxu0 0.0
    %1035 = vmatmul.mubr.f32.gmra.mxu0 %v897
    %v1036 = vpop.f32.mrf.mxu0
    %v1037 = vadd.f32 %v556, %v1036
    %v1038 = vpop.f32.mrf.mxu0
    %1039 = vdwg.mxu0
    %v1041 = vrot.slane %v966, 6
    %v1043 = vadd.f32 %v296, %v1041
    %v1044 = vxor.u32 %v1043, 2147483648
    %v1045 = vmul.f32 %v1044, 1.442695
    %v1046 = vpow.pop %v1045
    %v1047 = vadd.f32 %v1046, 1.0
    %v1048 = vrcp.pop %v1047
    %v1049 = vmul.f32 1.0, %v1048
    %v1051 = vrot.slane %v968, 6
    %v1053 = vadd.f32 %v298, %v1051
    %v1054 = vxor.u32 %v1053, 2147483648
    %v1055 = vmul.f32 %v1054, 1.442695
    %v1056 = vpow.pop %v1055
    %v1057 = vadd.f32 %v1056, 1.0
    %v1058 = vrcp.pop %v1057
    %v1059 = vmul.f32 1.0, %v1058
    %v1061 = vrot.slane %v1037, 6
    %v1063 = vmul.f32 %v1049, %v1061
    %v1064 = vadd.f32 %v367, %v1063
    %v1065 = vtanh.pop %v1064
    %v1066 = vsub.f32 1.0, %v1059
    %v1067 = vmul.f32 %v1066, %v1065
    %v1068 = vrot.slane %v895, 7
    %v1070 = vmul.f32 %v1059, %v1068
    %v1071 = vadd.f32 %v1067, %v1070
    %v1073 = vrot.slane %v1071, 2
    %1075 = vmatprep.subr.mxu0 %v143
    %1076 = vmatpush1.msra.mxu0 %v142
    %1077 = vmatprep.subr.mxu0 %v140
    %1078 = vmatpush1.msra.mxu0 %v139
    %1079 = vmatprep.subr.mxu0 %v137
    %1080 = vmatpush1.msra.mxu0 %v136
    %1081 = vmatprep.subr.mxu0 %v134
    %1082 = vmatpush1.msra.mxu0 %v133
    %1083 = vmatprep.subr.mxu0 %v131
    %1084 = vmatpush1.msra.mxu0 %v130
    %1085 = vmatprep.subr.mxu0 %v128
    %1086 = vmatpush1.msra.mxu0 %v127
    %1087 = vmatprep.subr.mxu0 %v125
    %1088 = vmatpush1.msra.mxu0 %v124
    %1089 = vmatprep.subr.mxu0 %v122
    %1090 = vmatpush1.msra.mxu0 %v121
    %1091 = vmatprep.subr.mxu0 %v119
    %1092 = vmatpush1.msra.mxu0 %v118
    %1093 = vmatprep.subr.mxu0 %v116
    %1094 = vmatpush1.msra.mxu0 %v115
    %1095 = vmatprep.subr.mxu0 %v113
    %1096 = vmatpush1.msra.mxu0 %v112
    %1097 = vmatprep.subr.mxu0 %v110
    %1098 = vmatpush1.msra.mxu0 %v109
    %1099 = vmatprep.subr.mxu0 %v107
    %1100 = vmatpush1.msra.mxu0 %v106
    %1101 = vmatprep.subr.mxu0 %v104
    %1102 = vmatpush1.msra.mxu0 %v103
    %1103 = vmatprep.subr.mxu0 %v101
    %1104 = vmatpush1.msra.mxu0 %v100
    %1105 = vmatprep.subr.mxu0 %v98
    %1106 = vmatpush1.msra.mxu0 %v97
    %1107 = vmatprep.subr.mxu0 0.0
    %1108 = vmatpush2.msra.mxu0 0.0
    %1109 = vmatprep.subr.mxu0 0.0
    %1110 = vmatpush2.msra.mxu0 0.0
    %1111 = vmatprep.subr.mxu0 0.0
    %1112 = vmatpush2.msra.mxu0 0.0
    %1113 = vmatprep.subr.mxu0 0.0
    %1114 = vmatpush2.msra.mxu0 0.0
    %1115 = vmatprep.subr.mxu0 0.0
    %1116 = vmatpush2.msra.mxu0 0.0
    %1117 = vmatprep.subr.mxu0 0.0
    %1118 = vmatpush2.msra.mxu0 0.0
    %1119 = vmatprep.subr.mxu0 0.0
    %1120 = vmatpush2.msra.mxu0 0.0
    %1121 = vmatprep.subr.mxu0 0.0
    %1122 = vmatpush2.msra.mxu0 0.0
    %1123 = vmatprep.subr.mxu0 0.0
    %1124 = vmatpush2.msra.mxu0 0.0
    %1125 = vmatprep.subr.mxu0 0.0
    %1126 = vmatpush2.msra.mxu0 0.0
    %1127 = vmatprep.subr.mxu0 0.0
    %1128 = vmatpush2.msra.mxu0 0.0
    %1129 = vmatprep.subr.mxu0 0.0
    %1130 = vmatpush2.msra.mxu0 0.0
    %1131 = vmatprep.subr.mxu0 0.0
    %1132 = vmatpush2.msra.mxu0 0.0
    %1133 = vmatprep.subr.mxu0 0.0
    %1134 = vmatpush2.msra.mxu0 0.0
    %1135 = vmatprep.subr.mxu0 0.0
    %1136 = vmatpush2.msra.mxu0 0.0
    %1137 = vmatprep.subr.mxu0 0.0
    %1138 = vmatpush2.msra.mxu0 0.0
    %1139 = vmatprep.mubr.f32.mxu0 0.0
    %1140 = vmatmul.mubr.f32.gmra.mxu0 %v1073
    %v1141 = vpop.f32.mrf.mxu0
    %v1142 = vadd.f32 %v548, %v1141
    %v1143 = vpop.f32.mrf.mxu0
    %v1144 = vadd.f32 %v552, %v1143
    %1145 = vdwg.mxu0
    %1146 = vmatprep.subr.mxu0 0.0
    %1147 = vmatpush1.msra.mxu0 %v144
    %1148 = vmatprep.subr.mxu0 0.0
    %1149 = vmatpush1.msra.mxu0 %v141
    %1150 = vmatprep.subr.mxu0 0.0
    %1151 = vmatpush1.msra.mxu0 %v138
    %1152 = vmatprep.subr.mxu0 0.0
    %1153 = vmatpush1.msra.mxu0 %v135
    %1154 = vmatprep.subr.mxu0 0.0
    %1155 = vmatpush1.msra.mxu0 %v132
    %1156 = vmatprep.subr.mxu0 0.0
    %1157 = vmatpush1.msra.mxu0 %v129
    %1158 = vmatprep.subr.mxu0 0.0
    %1159 = vmatpush1.msra.mxu0 %v126
    %1160 = vmatprep.subr.mxu0 0.0
    %1161 = vmatpush1.msra.mxu0 %v123
    %1162 = vmatprep.subr.mxu0 0.0
    %1163 = vmatpush1.msra.mxu0 %v120
    %1164 = vmatprep.subr.mxu0 0.0
    %1165 = vmatpush1.msra.mxu0 %v117
    %1166 = vmatprep.subr.mxu0 0.0
    %1167 = vmatpush1.msra.mxu0 %v114
    %1168 = vmatprep.subr.mxu0 0.0
    %1169 = vmatpush1.msra.mxu0 %v111
    %1170 = vmatprep.subr.mxu0 0.0
    %1171 = vmatpush1.msra.mxu0 %v108
    %1172 = vmatprep.subr.mxu0 0.0
    %1173 = vmatpush1.msra.mxu0 %v105
    %1174 = vmatprep.subr.mxu0 0.0
    %1175 = vmatpush1.msra.mxu0 %v102
    %1176 = vmatprep.subr.mxu0 0.0
    %1177 = vmatpush1.msra.mxu0 %v99
    %1178 = vmatprep.subr.mxu0 0.0
    %1179 = vmatpush2.msra.mxu0 0.0
    %1180 = vmatprep.subr.mxu0 0.0
    %1181 = vmatpush2.msra.mxu0 0.0
    %1182 = vmatprep.subr.mxu0 0.0
    %1183 = vmatpush2.msra.mxu0 0.0
    %1184 = vmatprep.subr.mxu0 0.0
    %1185 = vmatpush2.msra.mxu0 0.0
    %1186 = vmatprep.subr.mxu0 0.0
    %1187 = vmatpush2.msra.mxu0 0.0
    %1188 = vmatprep.subr.mxu0 0.0
    %1189 = vmatpush2.msra.mxu0 0.0
    %1190 = vmatprep.subr.mxu0 0.0
    %1191 = vmatpush2.msra.mxu0 0.0
    %1192 = vmatprep.subr.mxu0 0.0
    %1193 = vmatpush2.msra.mxu0 0.0
    %1194 = vmatprep.subr.mxu0 0.0
    %1195 = vmatpush2.msra.mxu0 0.0
    %1196 = vmatprep.subr.mxu0 0.0
    %1197 = vmatpush2.msra.mxu0 0.0
    %1198 = vmatprep.subr.mxu0 0.0
    %1199 = vmatpush2.msra.mxu0 0.0
    %1200 = vmatprep.subr.mxu0 0.0
    %1201 = vmatpush2.msra.mxu0 0.0
    %1202 = vmatprep.subr.mxu0 0.0
    %1203 = vmatpush2.msra.mxu0 0.0
    %1204 = vmatprep.subr.mxu0 0.0
    %1205 = vmatpush2.msra.mxu0 0.0
    %1206 = vmatprep.subr.mxu0 0.0
    %1207 = vmatpush2.msra.mxu0 0.0
    %1208 = vmatprep.subr.mxu0 0.0
    %1209 = vmatpush2.msra.mxu0 0.0
    %1210 = vmatprep.mubr.f32.mxu0 0.0
    %1211 = vmatmul.mubr.f32.gmra.mxu0 %v1073
    %v1212 = vpop.f32.mrf.mxu0
    %v1213 = vadd.f32 %v556, %v1212
    %v1214 = vpop.f32.mrf.mxu0
    %1215 = vdwg.mxu0
    %v1217 = vrot.slane %v1142, 5
    %v1219 = vadd.f32 %v296, %v1217
    %v1220 = vxor.u32 %v1219, 2147483648
    %v1221 = vmul.f32 %v1220, 1.442695
    %v1222 = vpow.pop %v1221
    %v1223 = vadd.f32 %v1222, 1.0
    %v1224 = vrcp.pop %v1223
    %v1225 = vmul.f32 1.0, %v1224
    %v1227 = vrot.slane %v1144, 5
    %v1229 = vadd.f32 %v298, %v1227
    %v1230 = vxor.u32 %v1229, 2147483648
    %v1231 = vmul.f32 %v1230, 1.442695
    %v1232 = vpow.pop %v1231
    %v1233 = vadd.f32 %v1232, 1.0
    %v1234 = vrcp.pop %v1233
    %v1235 = vmul.f32 1.0, %v1234
    %v1237 = vrot.slane %v1213, 5
    %v1239 = vmul.f32 %v1225, %v1237
    %v1240 = vadd.f32 %v367, %v1239
    %v1241 = vtanh.pop %v1240
    %v1242 = vsub.f32 1.0, %v1235
    %v1243 = vmul.f32 %v1242, %v1241
    %v1244 = vrot.slane %v1071, 7
    %v1246 = vmul.f32 %v1235, %v1244
    %v1247 = vadd.f32 %v1243, %v1246
    %v1249 = vrot.slane %v1247, 3
    %1251 = vmatprep.subr.mxu0 %v143
    %1252 = vmatpush1.msra.mxu0 %v142
    %1253 = vmatprep.subr.mxu0 %v140
    %1254 = vmatpush1.msra.mxu0 %v139
    %1255 = vmatprep.subr.mxu0 %v137
    %1256 = vmatpush1.msra.mxu0 %v136
    %1257 = vmatprep.subr.mxu0 %v134
    %1258 = vmatpush1.msra.mxu0 %v133
    %1259 = vmatprep.subr.mxu0 %v131
    %1260 = vmatpush1.msra.mxu0 %v130
    %1261 = vmatprep.subr.mxu0 %v128
    %1262 = vmatpush1.msra.mxu0 %v127
    %1263 = vmatprep.subr.mxu0 %v125
    %1264 = vmatpush1.msra.mxu0 %v124
    %1265 = vmatprep.subr.mxu0 %v122
    %1266 = vmatpush1.msra.mxu0 %v121
    %1267 = vmatprep.subr.mxu0 %v119
    %1268 = vmatpush1.msra.mxu0 %v118
    %1269 = vmatprep.subr.mxu0 %v116
    %1270 = vmatpush1.msra.mxu0 %v115
    %1271 = vmatprep.subr.mxu0 %v113
    %1272 = vmatpush1.msra.mxu0 %v112
    %1273 = vmatprep.subr.mxu0 %v110
    %1274 = vmatpush1.msra.mxu0 %v109
    %1275 = vmatprep.subr.mxu0 %v107
    %1276 = vmatpush1.msra.mxu0 %v106
    %1277 = vmatprep.subr.mxu0 %v104
    %1278 = vmatpush1.msra.mxu0 %v103
    %1279 = vmatprep.subr.mxu0 %v101
    %1280 = vmatpush1.msra.mxu0 %v100
    %1281 = vmatprep.subr.mxu0 %v98
    %1282 = vmatpush1.msra.mxu0 %v97
    %1283 = vmatprep.subr.mxu0 0.0
    %1284 = vmatpush2.msra.mxu0 0.0
    %1285 = vmatprep.subr.mxu0 0.0
    %1286 = vmatpush2.msra.mxu0 0.0
    %1287 = vmatprep.subr.mxu0 0.0
    %1288 = vmatpush2.msra.mxu0 0.0
    %1289 = vmatprep.subr.mxu0 0.0
    %1290 = vmatpush2.msra.mxu0 0.0
    %1291 = vmatprep.subr.mxu0 0.0
    %1292 = vmatpush2.msra.mxu0 0.0
    %1293 = vmatprep.subr.mxu0 0.0
    %1294 = vmatpush2.msra.mxu0 0.0
    %1295 = vmatprep.subr.mxu0 0.0
    %1296 = vmatpush2.msra.mxu0 0.0
    %1297 = vmatprep.subr.mxu0 0.0
    %1298 = vmatpush2.msra.mxu0 0.0
    %1299 = vmatprep.subr.mxu0 0.0
    %1300 = vmatpush2.msra.mxu0 0.0
    %1301 = vmatprep.subr.mxu0 0.0
    %1302 = vmatpush2.msra.mxu0 0.0
    %1303 = vmatprep.subr.mxu0 0.0
    %1304 = vmatpush2.msra.mxu0 0.0
    %1305 = vmatprep.subr.mxu0 0.0
    %1306 = vmatpush2.msra.mxu0 0.0
    %1307 = vmatprep.subr.mxu0 0.0
    %1308 = vmatpush2.msra.mxu0 0.0
    %1309 = vmatprep.subr.mxu0 0.0
    %1310 = vmatpush2.msra.mxu0 0.0
    %1311 = vmatprep.subr.mxu0 0.0
    %1312 = vmatpush2.msra.mxu0 0.0
    %1313 = vmatprep.subr.mxu0 0.0
    %1314 = vmatpush2.msra.mxu0 0.0
    %1315 = vmatprep.mubr.f32.mxu0 0.0
    %1316 = vmatmul.mubr.f32.gmra.mxu0 %v1249
    %v1317 = vpop.f32.mrf.mxu0
    %v1318 = vadd.f32 %v548, %v1317
    %v1319 = vpop.f32.mrf.mxu0
    %v1320 = vadd.f32 %v552, %v1319
    %1321 = vdwg.mxu0
    %1322 = vmatprep.subr.mxu0 0.0
    %1323 = vmatpush1.msra.mxu0 %v144
    %1324 = vmatprep.subr.mxu0 0.0
    %1325 = vmatpush1.msra.mxu0 %v141
    %1326 = vmatprep.subr.mxu0 0.0
    %1327 = vmatpush1.msra.mxu0 %v138
    %1328 = vmatprep.subr.mxu0 0.0
    %1329 = vmatpush1.msra.mxu0 %v135
    %1330 = vmatprep.subr.mxu0 0.0
    %1331 = vmatpush1.msra.mxu0 %v132
    %1332 = vmatprep.subr.mxu0 0.0
    %1333 = vmatpush1.msra.mxu0 %v129
    %1334 = vmatprep.subr.mxu0 0.0
    %1335 = vmatpush1.msra.mxu0 %v126
    %1336 = vmatprep.subr.mxu0 0.0
    %1337 = vmatpush1.msra.mxu0 %v123
    %1338 = vmatprep.subr.mxu0 0.0
    %1339 = vmatpush1.msra.mxu0 %v120
    %1340 = vmatprep.subr.mxu0 0.0
    %1341 = vmatpush1.msra.mxu0 %v117
    %1342 = vmatprep.subr.mxu0 0.0
    %1343 = vmatpush1.msra.mxu0 %v114
    %1344 = vmatprep.subr.mxu0 0.0
    %1345 = vmatpush1.msra.mxu0 %v111
    %1346 = vmatprep.subr.mxu0 0.0
    %1347 = vmatpush1.msra.mxu0 %v108
    %1348 = vmatprep.subr.mxu0 0.0
    %1349 = vmatpush1.msra.mxu0 %v105
    %1350 = vmatprep.subr.mxu0 0.0
    %1351 = vmatpush1.msra.mxu0 %v102
    %1352 = vmatprep.subr.mxu0 0.0
    %1353 = vmatpush1.msra.mxu0 %v99
    %1354 = vmatprep.subr.mxu0 0.0
    %1355 = vmatpush2.msra.mxu0 0.0
    %1356 = vmatprep.subr.mxu0 0.0
    %1357 = vmatpush2.msra.mxu0 0.0
    %1358 = vmatprep.subr.mxu0 0.0
    %1359 = vmatpush2.msra.mxu0 0.0
    %1360 = vmatprep.subr.mxu0 0.0
    %1361 = vmatpush2.msra.mxu0 0.0
    %1362 = vmatprep.subr.mxu0 0.0
    %1363 = vmatpush2.msra.mxu0 0.0
    %1364 = vmatprep.subr.mxu0 0.0
    %1365 = vmatpush2.msra.mxu0 0.0
    %1366 = vmatprep.subr.mxu0 0.0
    %1367 = vmatpush2.msra.mxu0 0.0
    %1368 = vmatprep.subr.mxu0 0.0
    %1369 = vmatpush2.msra.mxu0 0.0
    %1370 = vmatprep.subr.mxu0 0.0
    %1371 = vmatpush2.msra.mxu0 0.0
    %1372 = vmatprep.subr.mxu0 0.0
    %1373 = vmatpush2.msra.mxu0 0.0
    %1374 = vmatprep.subr.mxu0 0.0
    %1375 = vmatpush2.msra.mxu0 0.0
    %1376 = vmatprep.subr.mxu0 0.0
    %1377 = vmatpush2.msra.mxu0 0.0
    %1378 = vmatprep.subr.mxu0 0.0
    %1379 = vmatpush2.msra.mxu0 0.0
    %1380 = vmatprep.subr.mxu0 0.0
    %1381 = vmatpush2.msra.mxu0 0.0
    %1382 = vmatprep.subr.mxu0 0.0
    %1383 = vmatpush2.msra.mxu0 0.0
    %1384 = vmatprep.subr.mxu0 0.0
    %1385 = vmatpush2.msra.mxu0 0.0
    %1386 = vmatprep.mubr.f32.mxu0 0.0
    %1387 = vmatmul.mubr.f32.gmra.mxu0 %v1249
    %v1388 = vpop.f32.mrf.mxu0
    %v1389 = vadd.f32 %v556, %v1388
    %v1390 = vpop.f32.mrf.mxu0
    %1391 = vdwg.mxu0
    %v1393 = vrot.slane %v1318, 4
    %v1395 = vadd.f32 %v296, %v1393
    %v1396 = vxor.u32 %v1395, 2147483648
    %v1397 = vmul.f32 %v1396, 1.442695
    %v1398 = vpow.pop %v1397
    %v1399 = vadd.f32 %v1398, 1.0
    %v1400 = vrcp.pop %v1399
    %v1401 = vmul.f32 1.0, %v1400
    %v1403 = vrot.slane %v1320, 4
    %v1405 = vadd.f32 %v298, %v1403
    %v1406 = vxor.u32 %v1405, 2147483648
    %v1407 = vmul.f32 %v1406, 1.442695
    %v1408 = vpow.pop %v1407
    %v1409 = vadd.f32 %v1408, 1.0
    %v1410 = vrcp.pop %v1409
    %v1411 = vmul.f32 1.0, %v1410
    %v1413 = vrot.slane %v1389, 4
    %v1415 = vmul.f32 %v1401, %v1413
    %v1416 = vadd.f32 %v367, %v1415
    %v1417 = vtanh.pop %v1416
    %v1418 = vsub.f32 1.0, %v1411
    %v1419 = vmul.f32 %v1418, %v1417
    %v1420 = vrot.slane %v1247, 7
    %v1422 = vmul.f32 %v1411, %v1420
    %v1423 = vadd.f32 %v1419, %v1422
    %v1425 = vrot.slane %v1423, 4
    %1427 = vmatprep.subr.mxu0 %v143
    %1428 = vmatpush1.msra.mxu0 %v142
    %1429 = vmatprep.subr.mxu0 %v140
    %1430 = vmatpush1.msra.mxu0 %v139
    %1431 = vmatprep.subr.mxu0 %v137
    %1432 = vmatpush1.msra.mxu0 %v136
    %1433 = vmatprep.subr.mxu0 %v134
    %1434 = vmatpush1.msra.mxu0 %v133
    %1435 = vmatprep.subr.mxu0 %v131
    %1436 = vmatpush1.msra.mxu0 %v130
    %1437 = vmatprep.subr.mxu0 %v128
    %1438 = vmatpush1.msra.mxu0 %v127
    %1439 = vmatprep.subr.mxu0 %v125
    %1440 = vmatpush1.msra.mxu0 %v124
    %1441 = vmatprep.subr.mxu0 %v122
    %1442 = vmatpush1.msra.mxu0 %v121
    %1443 = vmatprep.subr.mxu0 %v119
    %1444 = vmatpush1.msra.mxu0 %v118
    %1445 = vmatprep.subr.mxu0 %v116
    %1446 = vmatpush1.msra.mxu0 %v115
    %1447 = vmatprep.subr.mxu0 %v113
    %1448 = vmatpush1.msra.mxu0 %v112
    %1449 = vmatprep.subr.mxu0 %v110
    %1450 = vmatpush1.msra.mxu0 %v109
    %1451 = vmatprep.subr.mxu0 %v107
    %1452 = vmatpush1.msra.mxu0 %v106
    %1453 = vmatprep.subr.mxu0 %v104
    %1454 = vmatpush1.msra.mxu0 %v103
    %1455 = vmatprep.subr.mxu0 %v101
    %1456 = vmatpush1.msra.mxu0 %v100
    %1457 = vmatprep.subr.mxu0 %v98
    %1458 = vmatpush1.msra.mxu0 %v97
    %1459 = vmatprep.subr.mxu0 0.0
    %1460 = vmatpush2.msra.mxu0 0.0
    %1461 = vmatprep.subr.mxu0 0.0
    %1462 = vmatpush2.msra.mxu0 0.0
    %1463 = vmatprep.subr.mxu0 0.0
    %1464 = vmatpush2.msra.mxu0 0.0
    %1465 = vmatprep.subr.mxu0 0.0
    %1466 = vmatpush2.msra.mxu0 0.0
    %1467 = vmatprep.subr.mxu0 0.0
    %1468 = vmatpush2.msra.mxu0 0.0
    %1469 = vmatprep.subr.mxu0 0.0
    %1470 = vmatpush2.msra.mxu0 0.0
    %1471 = vmatprep.subr.mxu0 0.0
    %1472 = vmatpush2.msra.mxu0 0.0
    %1473 = vmatprep.subr.mxu0 0.0
    %1474 = vmatpush2.msra.mxu0 0.0
    %1475 = vmatprep.subr.mxu0 0.0
    %1476 = vmatpush2.msra.mxu0 0.0
    %1477 = vmatprep.subr.mxu0 0.0
    %1478 = vmatpush2.msra.mxu0 0.0
    %1479 = vmatprep.subr.mxu0 0.0
    %1480 = vmatpush2.msra.mxu0 0.0
    %1481 = vmatprep.subr.mxu0 0.0
    %1482 = vmatpush2.msra.mxu0 0.0
    %1483 = vmatprep.subr.mxu0 0.0
    %1484 = vmatpush2.msra.mxu0 0.0
    %1485 = vmatprep.subr.mxu0 0.0
    %1486 = vmatpush2.msra.mxu0 0.0
    %1487 = vmatprep.subr.mxu0 0.0
    %1488 = vmatpush2.msra.mxu0 0.0
    %1489 = vmatprep.subr.mxu0 0.0
    %1490 = vmatpush2.msra.mxu0 0.0
    %1491 = vmatprep.mubr.f32.mxu0 0.0
    %1492 = vmatmul.mubr.f32.gmra.mxu0 %v1425
    %v1493 = vpop.f32.mrf.mxu0
    %v1494 = vadd.f32 %v548, %v1493
    %v1495 = vpop.f32.mrf.mxu0
    %v1496 = vadd.f32 %v552, %v1495
    %1497 = vdwg.mxu0
    %1498 = vmatprep.subr.mxu0 0.0
    %1499 = vmatpush1.msra.mxu0 %v144
    %1500 = vmatprep.subr.mxu0 0.0
    %1501 = vmatpush1.msra.mxu0 %v141
    %1502 = vmatprep.subr.mxu0 0.0
    %1503 = vmatpush1.msra.mxu0 %v138
    %1504 = vmatprep.subr.mxu0 0.0
    %1505 = vmatpush1.msra.mxu0 %v135
    %1506 = vmatprep.subr.mxu0 0.0
    %1507 = vmatpush1.msra.mxu0 %v132
    %1508 = vmatprep.subr.mxu0 0.0
    %1509 = vmatpush1.msra.mxu0 %v129
    %1510 = vmatprep.subr.mxu0 0.0
    %1511 = vmatpush1.msra.mxu0 %v126
    %1512 = vmatprep.subr.mxu0 0.0
    %1513 = vmatpush1.msra.mxu0 %v123
    %1514 = vmatprep.subr.mxu0 0.0
    %1515 = vmatpush1.msra.mxu0 %v120
    %1516 = vmatprep.subr.mxu0 0.0
    %1517 = vmatpush1.msra.mxu0 %v117
    %1518 = vmatprep.subr.mxu0 0.0
    %1519 = vmatpush1.msra.mxu0 %v114
    %1520 = vmatprep.subr.mxu0 0.0
    %1521 = vmatpush1.msra.mxu0 %v111
    %1522 = vmatprep.subr.mxu0 0.0
    %1523 = vmatpush1.msra.mxu0 %v108
    %1524 = vmatprep.subr.mxu0 0.0
    %1525 = vmatpush1.msra.mxu0 %v105
    %1526 = vmatprep.subr.mxu0 0.0
    %1527 = vmatpush1.msra.mxu0 %v102
    %1528 = vmatprep.subr.mxu0 0.0
    %1529 = vmatpush1.msra.mxu0 %v99
    %1530 = vmatprep.subr.mxu0 0.0
    %1531 = vmatpush2.msra.mxu0 0.0
    %1532 = vmatprep.subr.mxu0 0.0
    %1533 = vmatpush2.msra.mxu0 0.0
    %1534 = vmatprep.subr.mxu0 0.0
    %1535 = vmatpush2.msra.mxu0 0.0
    %1536 = vmatprep.subr.mxu0 0.0
    %1537 = vmatpush2.msra.mxu0 0.0
    %1538 = vmatprep.subr.mxu0 0.0
    %1539 = vmatpush2.msra.mxu0 0.0
    %1540 = vmatprep.subr.mxu0 0.0
    %1541 = vmatpush2.msra.mxu0 0.0
    %1542 = vmatprep.subr.mxu0 0.0
    %1543 = vmatpush2.msra.mxu0 0.0
    %1544 = vmatprep.subr.mxu0 0.0
    %1545 = vmatpush2.msra.mxu0 0.0
    %1546 = vmatprep.subr.mxu0 0.0
    %1547 = vmatpush2.msra.mxu0 0.0
    %1548 = vmatprep.subr.mxu0 0.0
    %1549 = vmatpush2.msra.mxu0 0.0
    %1550 = vmatprep.subr.mxu0 0.0
    %1551 = vmatpush2.msra.mxu0 0.0
    %1552 = vmatprep.subr.mxu0 0.0
    %1553 = vmatpush2.msra.mxu0 0.0
    %1554 = vmatprep.subr.mxu0 0.0
    %1555 = vmatpush2.msra.mxu0 0.0
    %1556 = vmatprep.subr.mxu0 0.0
    %1557 = vmatpush2.msra.mxu0 0.0
    %1558 = vmatprep.subr.mxu0 0.0
    %1559 = vmatpush2.msra.mxu0 0.0
    %1560 = vmatprep.subr.mxu0 0.0
    %1561 = vmatpush2.msra.mxu0 0.0
    %1562 = vmatprep.mubr.f32.mxu0 0.0
    %1563 = vmatmul.mubr.f32.gmra.mxu0 %v1425
    %v1564 = vpop.f32.mrf.mxu0
    %v1565 = vadd.f32 %v556, %v1564
    %v1566 = vpop.f32.mrf.mxu0
    %1567 = vdwg.mxu0
    %v1569 = vrot.slane %v1494, 3
    %v1571 = vadd.f32 %v296, %v1569
    %v1572 = vxor.u32 %v1571, 2147483648
    %v1573 = vmul.f32 %v1572, 1.442695
    %v1574 = vpow.pop %v1573
    %v1575 = vadd.f32 %v1574, 1.0
    %v1576 = vrcp.pop %v1575
    %v1577 = vmul.f32 1.0, %v1576
    %v1579 = vrot.slane %v1496, 3
    %v1581 = vadd.f32 %v298, %v1579
    %v1582 = vxor.u32 %v1581, 2147483648
    %v1583 = vmul.f32 %v1582, 1.442695
    %v1584 = vpow.pop %v1583
    %v1585 = vadd.f32 %v1584, 1.0
    %v1586 = vrcp.pop %v1585
    %v1587 = vmul.f32 1.0, %v1586
    %v1589 = vrot.slane %v1565, 3
    %v1591 = vmul.f32 %v1577, %v1589
    %v1592 = vadd.f32 %v367, %v1591
    %v1593 = vtanh.pop %v1592
    %v1594 = vsub.f32 1.0, %v1587
    %v1595 = vmul.f32 %v1594, %v1593
    %v1596 = vrot.slane %v1423, 7
    %v1598 = vmul.f32 %v1587, %v1596
    %v1599 = vadd.f32 %v1595, %v1598
    %v1601 = vrot.slane %v1599, 5
    %1603 = vmatprep.subr.mxu0 %v143
    %1604 = vmatpush1.msra.mxu0 %v142
    %1605 = vmatprep.subr.mxu0 %v140
    %1606 = vmatpush1.msra.mxu0 %v139
    %1607 = vmatprep.subr.mxu0 %v137
    %1608 = vmatpush1.msra.mxu0 %v136
    %1609 = vmatprep.subr.mxu0 %v134
    %1610 = vmatpush1.msra.mxu0 %v133
    %1611 = vmatprep.subr.mxu0 %v131
    %1612 = vmatpush1.msra.mxu0 %v130
    %1613 = vmatprep.subr.mxu0 %v128
    %1614 = vmatpush1.msra.mxu0 %v127
    %1615 = vmatprep.subr.mxu0 %v125
    %1616 = vmatpush1.msra.mxu0 %v124
    %1617 = vmatprep.subr.mxu0 %v122
    %1618 = vmatpush1.msra.mxu0 %v121
    %1619 = vmatprep.subr.mxu0 %v119
    %1620 = vmatpush1.msra.mxu0 %v118
    %1621 = vmatprep.subr.mxu0 %v116
    %1622 = vmatpush1.msra.mxu0 %v115
    %1623 = vmatprep.subr.mxu0 %v113
    %1624 = vmatpush1.msra.mxu0 %v112
    %1625 = vmatprep.subr.mxu0 %v110
    %1626 = vmatpush1.msra.mxu0 %v109
    %1627 = vmatprep.subr.mxu0 %v107
    %1628 = vmatpush1.msra.mxu0 %v106
    %1629 = vmatprep.subr.mxu0 %v104
    %1630 = vmatpush1.msra.mxu0 %v103
    %1631 = vmatprep.subr.mxu0 %v101
    %1632 = vmatpush1.msra.mxu0 %v100
    %1633 = vmatprep.subr.mxu0 %v98
    %1634 = vmatpush1.msra.mxu0 %v97
    %1635 = vmatprep.subr.mxu0 0.0
    %1636 = vmatpush2.msra.mxu0 0.0
    %1637 = vmatprep.subr.mxu0 0.0
    %1638 = vmatpush2.msra.mxu0 0.0
    %1639 = vmatprep.subr.mxu0 0.0
    %1640 = vmatpush2.msra.mxu0 0.0
    %1641 = vmatprep.subr.mxu0 0.0
    %1642 = vmatpush2.msra.mxu0 0.0
    %1643 = vmatprep.subr.mxu0 0.0
    %1644 = vmatpush2.msra.mxu0 0.0
    %1645 = vmatprep.subr.mxu0 0.0
    %1646 = vmatpush2.msra.mxu0 0.0
    %1647 = vmatprep.subr.mxu0 0.0
    %1648 = vmatpush2.msra.mxu0 0.0
    %1649 = vmatprep.subr.mxu0 0.0
    %1650 = vmatpush2.msra.mxu0 0.0
    %1651 = vmatprep.subr.mxu0 0.0
    %1652 = vmatpush2.msra.mxu0 0.0
    %1653 = vmatprep.subr.mxu0 0.0
    %1654 = vmatpush2.msra.mxu0 0.0
    %1655 = vmatprep.subr.mxu0 0.0
    %1656 = vmatpush2.msra.mxu0 0.0
    %1657 = vmatprep.subr.mxu0 0.0
    %1658 = vmatpush2.msra.mxu0 0.0
    %1659 = vmatprep.subr.mxu0 0.0
    %1660 = vmatpush2.msra.mxu0 0.0
    %1661 = vmatprep.subr.mxu0 0.0
    %1662 = vmatpush2.msra.mxu0 0.0
    %1663 = vmatprep.subr.mxu0 0.0
    %1664 = vmatpush2.msra.mxu0 0.0
    %1665 = vmatprep.subr.mxu0 0.0
    %1666 = vmatpush2.msra.mxu0 0.0
    %1667 = vmatprep.mubr.f32.mxu0 0.0
    %1668 = vmatmul.mubr.f32.gmra.mxu0 %v1601
    %v1669 = vpop.f32.mrf.mxu0
    %v1670 = vadd.f32 %v548, %v1669
    %v1671 = vpop.f32.mrf.mxu0
    %v1672 = vadd.f32 %v552, %v1671
    %1673 = vdwg.mxu0
    %1674 = vmatprep.subr.mxu0 0.0
    %1675 = vmatpush1.msra.mxu0 %v144
    %1676 = vmatprep.subr.mxu0 0.0
    %1677 = vmatpush1.msra.mxu0 %v141
    %1678 = vmatprep.subr.mxu0 0.0
    %1679 = vmatpush1.msra.mxu0 %v138
    %1680 = vmatprep.subr.mxu0 0.0
    %1681 = vmatpush1.msra.mxu0 %v135
    %1682 = vmatprep.subr.mxu0 0.0
    %1683 = vmatpush1.msra.mxu0 %v132
    %1684 = vmatprep.subr.mxu0 0.0
    %1685 = vmatpush1.msra.mxu0 %v129
    %1686 = vmatprep.subr.mxu0 0.0
    %1687 = vmatpush1.msra.mxu0 %v126
    %1688 = vmatprep.subr.mxu0 0.0
    %1689 = vmatpush1.msra.mxu0 %v123
    %1690 = vmatprep.subr.mxu0 0.0
    %1691 = vmatpush1.msra.mxu0 %v120
    %1692 = vmatprep.subr.mxu0 0.0
    %1693 = vmatpush1.msra.mxu0 %v117
    %1694 = vmatprep.subr.mxu0 0.0
    %1695 = vmatpush1.msra.mxu0 %v114
    %1696 = vmatprep.subr.mxu0 0.0
    %1697 = vmatpush1.msra.mxu0 %v111
    %1698 = vmatprep.subr.mxu0 0.0
    %1699 = vmatpush1.msra.mxu0 %v108
    %1700 = vmatprep.subr.mxu0 0.0
    %1701 = vmatpush1.msra.mxu0 %v105
    %1702 = vmatprep.subr.mxu0 0.0
    %1703 = vmatpush1.msra.mxu0 %v102
    %1704 = vmatprep.subr.mxu0 0.0
    %1705 = vmatpush1.msra.mxu0 %v99
    %1706 = vmatprep.subr.mxu0 0.0
    %1707 = vmatpush2.msra.mxu0 0.0
    %1708 = vmatprep.subr.mxu0 0.0
    %1709 = vmatpush2.msra.mxu0 0.0
    %1710 = vmatprep.subr.mxu0 0.0
    %1711 = vmatpush2.msra.mxu0 0.0
    %1712 = vmatprep.subr.mxu0 0.0
    %1713 = vmatpush2.msra.mxu0 0.0
    %1714 = vmatprep.subr.mxu0 0.0
    %1715 = vmatpush2.msra.mxu0 0.0
    %1716 = vmatprep.subr.mxu0 0.0
    %1717 = vmatpush2.msra.mxu0 0.0
    %1718 = vmatprep.subr.mxu0 0.0
    %1719 = vmatpush2.msra.mxu0 0.0
    %1720 = vmatprep.subr.mxu0 0.0
    %1721 = vmatpush2.msra.mxu0 0.0
    %1722 = vmatprep.subr.mxu0 0.0
    %1723 = vmatpush2.msra.mxu0 0.0
    %1724 = vmatprep.subr.mxu0 0.0
    %1725 = vmatpush2.msra.mxu0 0.0
    %1726 = vmatprep.subr.mxu0 0.0
    %1727 = vmatpush2.msra.mxu0 0.0
    %1728 = vmatprep.subr.mxu0 0.0
    %1729 = vmatpush2.msra.mxu0 0.0
    %1730 = vmatprep.subr.mxu0 0.0
    %1731 = vmatpush2.msra.mxu0 0.0
    %1732 = vmatprep.subr.mxu0 0.0
    %1733 = vmatpush2.msra.mxu0 0.0
    %1734 = vmatprep.subr.mxu0 0.0
    %1735 = vmatpush2.msra.mxu0 0.0
    %1736 = vmatprep.subr.mxu0 0.0
    %1737 = vmatpush2.msra.mxu0 0.0
    %1738 = vmatprep.mubr.f32.mxu0 0.0
    %1739 = vmatmul.mubr.f32.gmra.mxu0 %v1601
    %v1740 = vpop.f32.mrf.mxu0
    %v1741 = vadd.f32 %v556, %v1740
    %v1742 = vpop.f32.mrf.mxu0
    %1743 = vdwg.mxu0
    %v1745 = vrot.slane %v1670, 2
    %v1747 = vadd.f32 %v296, %v1745
    %v1748 = vxor.u32 %v1747, 2147483648
    %v1749 = vmul.f32 %v1748, 1.442695
    %v1750 = vpow.pop %v1749
    %v1751 = vadd.f32 %v1750, 1.0
    %v1752 = vrcp.pop %v1751
    %v1753 = vmul.f32 1.0, %v1752
    %v1755 = vrot.slane %v1672, 2
    %v1757 = vadd.f32 %v298, %v1755
    %v1758 = vxor.u32 %v1757, 2147483648
    %v1759 = vmul.f32 %v1758, 1.442695
    %v1760 = vpow.pop %v1759
    %v1761 = vadd.f32 %v1760, 1.0
    %v1762 = vrcp.pop %v1761
    %v1763 = vmul.f32 1.0, %v1762
    %v1765 = vrot.slane %v1741, 2
    %v1767 = vmul.f32 %v1753, %v1765
    %v1768 = vadd.f32 %v367, %v1767
    %v1769 = vtanh.pop %v1768
    %v1770 = vsub.f32 1.0, %v1763
    %v1771 = vmul.f32 %v1770, %v1769
    %v1772 = vrot.slane %v1599, 7
    %v1774 = vmul.f32 %v1763, %v1772
    %v1775 = vadd.f32 %v1771, %v1774
    %v1777 = vrot.slane %v1775, 6
    %1779 = vmatprep.subr.mxu0 %v143
    %1780 = vmatpush1.msra.mxu0 %v142
    %1781 = vmatprep.subr.mxu0 %v140
    %1782 = vmatpush1.msra.mxu0 %v139
    %1783 = vmatprep.subr.mxu0 %v137
    %1784 = vmatpush1.msra.mxu0 %v136
    %1785 = vmatprep.subr.mxu0 %v134
    %1786 = vmatpush1.msra.mxu0 %v133
    %1787 = vmatprep.subr.mxu0 %v131
    %1788 = vmatpush1.msra.mxu0 %v130
    %1789 = vmatprep.subr.mxu0 %v128
    %1790 = vmatpush1.msra.mxu0 %v127
    %1791 = vmatprep.subr.mxu0 %v125
    %1792 = vmatpush1.msra.mxu0 %v124
    %1793 = vmatprep.subr.mxu0 %v122
    %1794 = vmatpush1.msra.mxu0 %v121
    %1795 = vmatprep.subr.mxu0 %v119
    %1796 = vmatpush1.msra.mxu0 %v118
    %1797 = vmatprep.subr.mxu0 %v116
    %1798 = vmatpush1.msra.mxu0 %v115
    %1799 = vmatprep.subr.mxu0 %v113
    %1800 = vmatpush1.msra.mxu0 %v112
    %1801 = vmatprep.subr.mxu0 %v110
    %1802 = vmatpush1.msra.mxu0 %v109
    %1803 = vmatprep.subr.mxu0 %v107
    %1804 = vmatpush1.msra.mxu0 %v106
    %1805 = vmatprep.subr.mxu0 %v104
    %1806 = vmatpush1.msra.mxu0 %v103
    %1807 = vmatprep.subr.mxu0 %v101
    %1808 = vmatpush1.msra.mxu0 %v100
    %1809 = vmatprep.subr.mxu0 %v98
    %1810 = vmatpush1.msra.mxu0 %v97
    %1811 = vmatprep.subr.mxu0 0.0
    %1812 = vmatpush2.msra.mxu0 0.0
    %1813 = vmatprep.subr.mxu0 0.0
    %1814 = vmatpush2.msra.mxu0 0.0
    %1815 = vmatprep.subr.mxu0 0.0
    %1816 = vmatpush2.msra.mxu0 0.0
    %1817 = vmatprep.subr.mxu0 0.0
    %1818 = vmatpush2.msra.mxu0 0.0
    %1819 = vmatprep.subr.mxu0 0.0
    %1820 = vmatpush2.msra.mxu0 0.0
    %1821 = vmatprep.subr.mxu0 0.0
    %1822 = vmatpush2.msra.mxu0 0.0
    %1823 = vmatprep.subr.mxu0 0.0
    %1824 = vmatpush2.msra.mxu0 0.0
    %1825 = vmatprep.subr.mxu0 0.0
    %1826 = vmatpush2.msra.mxu0 0.0
    %1827 = vmatprep.subr.mxu0 0.0
    %1828 = vmatpush2.msra.mxu0 0.0
    %1829 = vmatprep.subr.mxu0 0.0
    %1830 = vmatpush2.msra.mxu0 0.0
    %1831 = vmatprep.subr.mxu0 0.0
    %1832 = vmatpush2.msra.mxu0 0.0
    %1833 = vmatprep.subr.mxu0 0.0
    %1834 = vmatpush2.msra.mxu0 0.0
    %1835 = vmatprep.subr.mxu0 0.0
    %1836 = vmatpush2.msra.mxu0 0.0
    %1837 = vmatprep.subr.mxu0 0.0
    %1838 = vmatpush2.msra.mxu0 0.0
    %1839 = vmatprep.subr.mxu0 0.0
    %1840 = vmatpush2.msra.mxu0 0.0
    %1841 = vmatprep.subr.mxu0 0.0
    %1842 = vmatpush2.msra.mxu0 0.0
    %1843 = vmatprep.mubr.f32.mxu0 0.0
    %1844 = vmatmul.mubr.f32.gmra.mxu0 %v1777
    %v1845 = vpop.f32.mrf.mxu0
    %v1846 = vadd.f32 %v548, %v1845
    %v1847 = vpop.f32.mrf.mxu0
    %v1848 = vadd.f32 %v552, %v1847
    %1849 = vdwg.mxu0
    %1850 = vmatprep.subr.mxu0 0.0
    %1851 = vmatpush1.msra.mxu0 %v144
    %1852 = vmatprep.subr.mxu0 0.0
    %1853 = vmatpush1.msra.mxu0 %v141
    %1854 = vmatprep.subr.mxu0 0.0
    %1855 = vmatpush1.msra.mxu0 %v138
    %1856 = vmatprep.subr.mxu0 0.0
    %1857 = vmatpush1.msra.mxu0 %v135
    %1858 = vmatprep.subr.mxu0 0.0
    %1859 = vmatpush1.msra.mxu0 %v132
    %1860 = vmatprep.subr.mxu0 0.0
    %1861 = vmatpush1.msra.mxu0 %v129
    %1862 = vmatprep.subr.mxu0 0.0
    %1863 = vmatpush1.msra.mxu0 %v126
    %1864 = vmatprep.subr.mxu0 0.0
    %1865 = vmatpush1.msra.mxu0 %v123
    %1866 = vmatprep.subr.mxu0 0.0
    %1867 = vmatpush1.msra.mxu0 %v120
    %1868 = vmatprep.subr.mxu0 0.0
    %1869 = vmatpush1.msra.mxu0 %v117
    %1870 = vmatprep.subr.mxu0 0.0
    %1871 = vmatpush1.msra.mxu0 %v114
    %1872 = vmatprep.subr.mxu0 0.0
    %1873 = vmatpush1.msra.mxu0 %v111
    %1874 = vmatprep.subr.mxu0 0.0
    %1875 = vmatpush1.msra.mxu0 %v108
    %1876 = vmatprep.subr.mxu0 0.0
    %1877 = vmatpush1.msra.mxu0 %v105
    %1878 = vmatprep.subr.mxu0 0.0
    %1879 = vmatpush1.msra.mxu0 %v102
    %1880 = vmatprep.subr.mxu0 0.0
    %1881 = vmatpush1.msra.mxu0 %v99
    %1882 = vmatprep.subr.mxu0 0.0
    %1883 = vmatpush2.msra.mxu0 0.0
    %1884 = vmatprep.subr.mxu0 0.0
    %1885 = vmatpush2.msra.mxu0 0.0
    %1886 = vmatprep.subr.mxu0 0.0
    %1887 = vmatpush2.msra.mxu0 0.0
    %1888 = vmatprep.subr.mxu0 0.0
    %1889 = vmatpush2.msra.mxu0 0.0
    %1890 = vmatprep.subr.mxu0 0.0
    %1891 = vmatpush2.msra.mxu0 0.0
    %1892 = vmatprep.subr.mxu0 0.0
    %1893 = vmatpush2.msra.mxu0 0.0
    %1894 = vmatprep.subr.mxu0 0.0
    %1895 = vmatpush2.msra.mxu0 0.0
    %1896 = vmatprep.subr.mxu0 0.0
    %1897 = vmatpush2.msra.mxu0 0.0
    %1898 = vmatprep.subr.mxu0 0.0
    %1899 = vmatpush2.msra.mxu0 0.0
    %1900 = vmatprep.subr.mxu0 0.0
    %1901 = vmatpush2.msra.mxu0 0.0
    %1902 = vmatprep.subr.mxu0 0.0
    %1903 = vmatpush2.msra.mxu0 0.0
    %1904 = vmatprep.subr.mxu0 0.0
    %1905 = vmatpush2.msra.mxu0 0.0
    %1906 = vmatprep.subr.mxu0 0.0
    %1907 = vmatpush2.msra.mxu0 0.0
    %1908 = vmatprep.subr.mxu0 0.0
    %1909 = vmatpush2.msra.mxu0 0.0
    %1910 = vmatprep.subr.mxu0 0.0
    %1911 = vmatpush2.msra.mxu0 0.0
    %1912 = vmatprep.subr.mxu0 0.0
    %1913 = vmatpush2.msra.mxu0 0.0
    %1914 = vmatprep.mubr.f32.mxu0 0.0
    %1915 = vmatmul.mubr.f32.gmra.mxu0 %v1777
    %v1916 = vpop.f32.mrf.mxu0
    %v1917 = vadd.f32 %v556, %v1916
    %v1918 = vpop.f32.mrf.mxu0
    %1919 = vdwg.mxu0
    %v1921 = vrot.slane %v1846, 1
    %v1923 = vadd.f32 %v296, %v1921
    %v1924 = vxor.u32 %v1923, 2147483648
    %v1925 = vmul.f32 %v1924, 1.442695
    %v1926 = vpow.pop %v1925
    %v1927 = vadd.f32 %v1926, 1.0
    %v1928 = vrcp.pop %v1927
    %v1929 = vmul.f32 1.0, %v1928
    %v1931 = vrot.slane %v1848, 1
    %v1933 = vadd.f32 %v298, %v1931
    %v1934 = vxor.u32 %v1933, 2147483648
    %v1935 = vmul.f32 %v1934, 1.442695
    %v1936 = vpow.pop %v1935
    %v1937 = vadd.f32 %v1936, 1.0
    %v1938 = vrcp.pop %v1937
    %v1939 = vmul.f32 1.0, %v1938
    %v1941 = vrot.slane %v1917, 1
    %v1943 = vmul.f32 %v1929, %v1941
    %v1944 = vadd.f32 %v367, %v1943
    %v1945 = vtanh.pop %v1944
    %v1946 = vsub.f32 1.0, %v1939
    %v1947 = vmul.f32 %v1946, %v1945
    %v1948 = vrot.slane %v1775, 7
    %v1950 = vmul.f32 %v1939, %v1948
    %v1951 = vadd.f32 %v1947, %v1950
    %v1953 = vrot.slane %v1951, 7
    %v1956 = vlaneseq
    %v1957 = vshrl.u32 %v1956, 7
    %v1958 = vsub.s32 0, %v1957
    %v1959 = vrot.slane %v194, %v1958
    %v1960 = vlaneseq
    %v1961 = vshrl.u32 %v1960, 7
    %v1962 = vsub.s32 1, %v1961
    %v1963 = vrot.slane %v194, %v1962
    %v1964 = vlaneseq
    %v1965 = vshrl.u32 %v1964, 7
    %v1966 = vsub.s32 2, %v1965
    %v1967 = vrot.slane %v194, %v1966
    %1971 = vmatprep.subr.mxu0 %v192
    %1972 = vmatpush1.msra.mxu0 %v191
    %1973 = vmatprep.subr.mxu0 %v189
    %1974 = vmatpush1.msra.mxu0 %v188
    %1975 = vmatprep.subr.mxu0 %v186
    %1976 = vmatpush1.msra.mxu0 %v185
    %1977 = vmatprep.subr.mxu0 %v183
    %1978 = vmatpush1.msra.mxu0 %v182
    %1979 = vmatprep.subr.mxu0 %v180
    %1980 = vmatpush1.msra.mxu0 %v179
    %1981 = vmatprep.subr.mxu0 %v177
    %1982 = vmatpush1.msra.mxu0 %v176
    %1983 = vmatprep.subr.mxu0 %v174
    %1984 = vmatpush1.msra.mxu0 %v173
    %1985 = vmatprep.subr.mxu0 %v171
    %1986 = vmatpush1.msra.mxu0 %v170
    %1987 = vmatprep.subr.mxu0 %v168
    %1988 = vmatpush1.msra.mxu0 %v167
    %1989 = vmatprep.subr.mxu0 %v165
    %1990 = vmatpush1.msra.mxu0 %v164
    %1991 = vmatprep.subr.mxu0 %v162
    %1992 = vmatpush1.msra.mxu0 %v161
    %1993 = vmatprep.subr.mxu0 %v159
    %1994 = vmatpush1.msra.mxu0 %v158
    %1995 = vmatprep.subr.mxu0 %v156
    %1996 = vmatpush1.msra.mxu0 %v155
    %1997 = vmatprep.subr.mxu0 %v153
    %1998 = vmatpush1.msra.mxu0 %v152
    %1999 = vmatprep.subr.mxu0 %v150
    %2000 = vmatpush1.msra.mxu0 %v149
    %2001 = vmatprep.subr.mxu0 %v147
    %2002 = vmatpush1.msra.mxu0 %v146
    %2003 = vmatprep.subr.mxu0 0.0
    %2004 = vmatpush2.msra.mxu0 0.0
    %2005 = vmatprep.subr.mxu0 0.0
    %2006 = vmatpush2.msra.mxu0 0.0
    %2007 = vmatprep.subr.mxu0 0.0
    %2008 = vmatpush2.msra.mxu0 0.0
    %2009 = vmatprep.subr.mxu0 0.0
    %2010 = vmatpush2.msra.mxu0 0.0
    %2011 = vmatprep.subr.mxu0 0.0
    %2012 = vmatpush2.msra.mxu0 0.0
    %2013 = vmatprep.subr.mxu0 0.0
    %2014 = vmatpush2.msra.mxu0 0.0
    %2015 = vmatprep.subr.mxu0 0.0
    %2016 = vmatpush2.msra.mxu0 0.0
    %2017 = vmatprep.subr.mxu0 0.0
    %2018 = vmatpush2.msra.mxu0 0.0
    %2019 = vmatprep.subr.mxu0 0.0
    %2020 = vmatpush2.msra.mxu0 0.0
    %2021 = vmatprep.subr.mxu0 0.0
    %2022 = vmatpush2.msra.mxu0 0.0
    %2023 = vmatprep.subr.mxu0 0.0
    %2024 = vmatpush2.msra.mxu0 0.0
    %2025 = vmatprep.subr.mxu0 0.0
    %2026 = vmatpush2.msra.mxu0 0.0
    %2027 = vmatprep.subr.mxu0 0.0
    %2028 = vmatpush2.msra.mxu0 0.0
    %2029 = vmatprep.subr.mxu0 0.0
    %2030 = vmatpush2.msra.mxu0 0.0
    %2031 = vmatprep.subr.mxu0 0.0
    %2032 = vmatpush2.msra.mxu0 0.0
    %2033 = vmatprep.subr.mxu0 0.0
    %2034 = vmatpush2.msra.mxu0 0.0
    %2035 = vmatprep.mubr.f32.mxu0 0.0
    %2036 = vmatmul.mubr.f32.gmra.mxu0 %v1953
    %v2037 = vpop.f32.mrf.mxu0
    %v2038 = vadd.f32 %v1959, %v2037
    %v2039 = vpop.f32.mrf.mxu0
    %v2040 = vadd.f32 %v1963, %v2039
    %2041 = vdwg.mxu0
    %2042 = vmatprep.subr.mxu0 0.0
    %2043 = vmatpush1.msra.mxu0 %v193
    %2044 = vmatprep.subr.mxu0 0.0
    %2045 = vmatpush1.msra.mxu0 %v190
    %2046 = vmatprep.subr.mxu0 0.0
    %2047 = vmatpush1.msra.mxu0 %v187
    %2048 = vmatprep.subr.mxu0 0.0
    %2049 = vmatpush1.msra.mxu0 %v184
    %2050 = vmatprep.subr.mxu0 0.0
    %2051 = vmatpush1.msra.mxu0 %v181
    %2052 = vmatprep.subr.mxu0 0.0
    %2053 = vmatpush1.msra.mxu0 %v178
    %2054 = vmatprep.subr.mxu0 0.0
    %2055 = vmatpush1.msra.mxu0 %v175
    %2056 = vmatprep.subr.mxu0 0.0
    %2057 = vmatpush1.msra.mxu0 %v172
    %2058 = vmatprep.subr.mxu0 0.0
    %2059 = vmatpush1.msra.mxu0 %v169
    %2060 = vmatprep.subr.mxu0 0.0
    %2061 = vmatpush1.msra.mxu0 %v166
    %2062 = vmatprep.subr.mxu0 0.0
    %2063 = vmatpush1.msra.mxu0 %v163
    %2064 = vmatprep.subr.mxu0 0.0
    %2065 = vmatpush1.msra.mxu0 %v160
    %2066 = vmatprep.subr.mxu0 0.0
    %2067 = vmatpush1.msra.mxu0 %v157
    %2068 = vmatprep.subr.mxu0 0.0
    %2069 = vmatpush1.msra.mxu0 %v154
    %2070 = vmatprep.subr.mxu0 0.0
    %2071 = vmatpush1.msra.mxu0 %v151
    %2072 = vmatprep.subr.mxu0 0.0
    %2073 = vmatpush1.msra.mxu0 %v148
    %2074 = vmatprep.subr.mxu0 0.0
    %2075 = vmatpush2.msra.mxu0 0.0
    %2076 = vmatprep.subr.mxu0 0.0
    %2077 = vmatpush2.msra.mxu0 0.0
    %2078 = vmatprep.subr.mxu0 0.0
    %2079 = vmatpush2.msra.mxu0 0.0
    %2080 = vmatprep.subr.mxu0 0.0
    %2081 = vmatpush2.msra.mxu0 0.0
    %2082 = vmatprep.subr.mxu0 0.0
    %2083 = vmatpush2.msra.mxu0 0.0
    %2084 = vmatprep.subr.mxu0 0.0
    %2085 = vmatpush2.msra.mxu0 0.0
    %2086 = vmatprep.subr.mxu0 0.0
    %2087 = vmatpush2.msra.mxu0 0.0
    %2088 = vmatprep.subr.mxu0 0.0
    %2089 = vmatpush2.msra.mxu0 0.0
    %2090 = vmatprep.subr.mxu0 0.0
    %2091 = vmatpush2.msra.mxu0 0.0
    %2092 = vmatprep.subr.mxu0 0.0
    %2093 = vmatpush2.msra.mxu0 0.0
    %2094 = vmatprep.subr.mxu0 0.0
    %2095 = vmatpush2.msra.mxu0 0.0
    %2096 = vmatprep.subr.mxu0 0.0
    %2097 = vmatpush2.msra.mxu0 0.0
    %2098 = vmatprep.subr.mxu0 0.0
    %2099 = vmatpush2.msra.mxu0 0.0
    %2100 = vmatprep.subr.mxu0 0.0
    %2101 = vmatpush2.msra.mxu0 0.0
    %2102 = vmatprep.subr.mxu0 0.0
    %2103 = vmatpush2.msra.mxu0 0.0
    %2104 = vmatprep.subr.mxu0 0.0
    %2105 = vmatpush2.msra.mxu0 0.0
    %2106 = vmatprep.mubr.f32.mxu0 0.0
    %2107 = vmatmul.mubr.f32.gmra.mxu0 %v1953
    %v2108 = vpop.f32.mrf.mxu0
    %v2109 = vadd.f32 %v1967, %v2108
    %v2110 = vpop.f32.mrf.mxu0
    %2111 = vdwg.mxu0
    %v2112 = vadd.f32 %v470, %v2038
    %v2113 = vxor.u32 %v2112, 2147483648
    %v2114 = vmul.f32 %v2113, 1.442695
    %v2115 = vpow.pop %v2114
    %v2116 = vadd.f32 %v2115, 1.0
    %v2117 = vrcp.pop %v2116
    %v2118 = vmul.f32 1.0, %v2117
    %v2119 = vadd.f32 %v472, %v2040
    %v2120 = vxor.u32 %v2119, 2147483648
    %v2121 = vmul.f32 %v2120, 1.442695
    %v2122 = vpow.pop %v2121
    %v2123 = vadd.f32 %v2122, 1.0
    %v2124 = vrcp.pop %v2123
    %v2125 = vmul.f32 1.0, %v2124
    %v2126 = vmul.f32 %v2118, %v2109
    %v2127 = vadd.f32 %v541, %v2126
    %v2128 = vtanh.pop %v2127
    %v2129 = vsub.f32 1.0, %v2125
    %v2130 = vmul.f32 %v2129, %v2128
    %v2131 = vmul.f32 %v2125, %v1953
    %v2132 = vadd.f32 %v2130, %v2131
    %2133 = vst [vmem:[#allocation2] sm:$0x1] %v2132
    %2134 = vmatprep.subr.mxu0 %v192
    %2135 = vmatpush1.msra.mxu0 %v191
    %2136 = vmatprep.subr.mxu0 %v189
    %2137 = vmatpush1.msra.mxu0 %v188
    %2138 = vmatprep.subr.mxu0 %v186
    %2139 = vmatpush1.msra.mxu0 %v185
    %2140 = vmatprep.subr.mxu0 %v183
    %2141 = vmatpush1.msra.mxu0 %v182
    %2142 = vmatprep.subr.mxu0 %v180
    %2143 = vmatpush1.msra.mxu0 %v179
    %2144 = vmatprep.subr.mxu0 %v177
    %2145 = vmatpush1.msra.mxu0 %v176
    %2146 = vmatprep.subr.mxu0 %v174
    %2147 = vmatpush1.msra.mxu0 %v173
    %2148 = vmatprep.subr.mxu0 %v171
    %2149 = vmatpush1.msra.mxu0 %v170
    %2150 = vmatprep.subr.mxu0 %v168
    %2151 = vmatpush1.msra.mxu0 %v167
    %2152 = vmatprep.subr.mxu0 %v165
    %2153 = vmatpush1.msra.mxu0 %v164
    %2154 = vmatprep.subr.mxu0 %v162
    %2155 = vmatpush1.msra.mxu0 %v161
    %2156 = vmatprep.subr.mxu0 %v159
    %2157 = vmatpush1.msra.mxu0 %v158
    %2158 = vmatprep.subr.mxu0 %v156
    %2159 = vmatpush1.msra.mxu0 %v155
    %2160 = vmatprep.subr.mxu0 %v153
    %2161 = vmatpush1.msra.mxu0 %v152
    %2162 = vmatprep.subr.mxu0 %v150
    %2163 = vmatpush1.msra.mxu0 %v149
    %2164 = vmatprep.subr.mxu0 %v147
    %2165 = vmatpush1.msra.mxu0 %v146
    %2166 = vmatprep.subr.mxu0 0.0
    %2167 = vmatpush2.msra.mxu0 0.0
    %2168 = vmatprep.subr.mxu0 0.0
    %2169 = vmatpush2.msra.mxu0 0.0
    %2170 = vmatprep.subr.mxu0 0.0
    %2171 = vmatpush2.msra.mxu0 0.0
    %2172 = vmatprep.subr.mxu0 0.0
    %2173 = vmatpush2.msra.mxu0 0.0
    %2174 = vmatprep.subr.mxu0 0.0
    %2175 = vmatpush2.msra.mxu0 0.0
    %2176 = vmatprep.subr.mxu0 0.0
    %2177 = vmatpush2.msra.mxu0 0.0
    %2178 = vmatprep.subr.mxu0 0.0
    %2179 = vmatpush2.msra.mxu0 0.0
    %2180 = vmatprep.subr.mxu0 0.0
    %2181 = vmatpush2.msra.mxu0 0.0
    %2182 = vmatprep.subr.mxu0 0.0
    %2183 = vmatpush2.msra.mxu0 0.0
    %2184 = vmatprep.subr.mxu0 0.0
    %2185 = vmatpush2.msra.mxu0 0.0
    %2186 = vmatprep.subr.mxu0 0.0
    %2187 = vmatpush2.msra.mxu0 0.0
    %2188 = vmatprep.subr.mxu0 0.0
    %2189 = vmatpush2.msra.mxu0 0.0
    %2190 = vmatprep.subr.mxu0 0.0
    %2191 = vmatpush2.msra.mxu0 0.0
    %2192 = vmatprep.subr.mxu0 0.0
    %2193 = vmatpush2.msra.mxu0 0.0
    %2194 = vmatprep.subr.mxu0 0.0
    %2195 = vmatpush2.msra.mxu0 0.0
    %2196 = vmatprep.subr.mxu0 0.0
    %2197 = vmatpush2.msra.mxu0 0.0
    %2198 = vmatprep.mubr.f32.mxu0 0.0
    %2199 = vmatmul.mubr.f32.gmra.mxu0 %v2132
    %v2200 = vpop.f32.mrf.mxu0
    %v2201 = vadd.f32 %v1959, %v2200
    %v2202 = vpop.f32.mrf.mxu0
    %v2203 = vadd.f32 %v1963, %v2202
    %2204 = vdwg.mxu0
    %2205 = vmatprep.subr.mxu0 0.0
    %2206 = vmatpush1.msra.mxu0 %v193
    %2207 = vmatprep.subr.mxu0 0.0
    %2208 = vmatpush1.msra.mxu0 %v190
    %2209 = vmatprep.subr.mxu0 0.0
    %2210 = vmatpush1.msra.mxu0 %v187
    %2211 = vmatprep.subr.mxu0 0.0
    %2212 = vmatpush1.msra.mxu0 %v184
    %2213 = vmatprep.subr.mxu0 0.0
    %2214 = vmatpush1.msra.mxu0 %v181
    %2215 = vmatprep.subr.mxu0 0.0
    %2216 = vmatpush1.msra.mxu0 %v178
    %2217 = vmatprep.subr.mxu0 0.0
    %2218 = vmatpush1.msra.mxu0 %v175
    %2219 = vmatprep.subr.mxu0 0.0
    %2220 = vmatpush1.msra.mxu0 %v172
    %2221 = vmatprep.subr.mxu0 0.0
    %2222 = vmatpush1.msra.mxu0 %v169
    %2223 = vmatprep.subr.mxu0 0.0
    %2224 = vmatpush1.msra.mxu0 %v166
    %2225 = vmatprep.subr.mxu0 0.0
    %2226 = vmatpush1.msra.mxu0 %v163
    %2227 = vmatprep.subr.mxu0 0.0
    %2228 = vmatpush1.msra.mxu0 %v160
    %2229 = vmatprep.subr.mxu0 0.0
    %2230 = vmatpush1.msra.mxu0 %v157
    %2231 = vmatprep.subr.mxu0 0.0
    %2232 = vmatpush1.msra.mxu0 %v154
    %2233 = vmatprep.subr.mxu0 0.0
    %2234 = vmatpush1.msra.mxu0 %v151
    %2235 = vmatprep.subr.mxu0 0.0
    %2236 = vmatpush1.msra.mxu0 %v148
    %2237 = vmatprep.subr.mxu0 0.0
    %2238 = vmatpush2.msra.mxu0 0.0
    %2239 = vmatprep.subr.mxu0 0.0
    %2240 = vmatpush2.msra.mxu0 0.0
    %2241 = vmatprep.subr.mxu0 0.0
    %2242 = vmatpush2.msra.mxu0 0.0
    %2243 = vmatprep.subr.mxu0 0.0
    %2244 = vmatpush2.msra.mxu0 0.0
    %2245 = vmatprep.subr.mxu0 0.0
    %2246 = vmatpush2.msra.mxu0 0.0
    %2247 = vmatprep.subr.mxu0 0.0
    %2248 = vmatpush2.msra.mxu0 0.0
    %2249 = vmatprep.subr.mxu0 0.0
    %2250 = vmatpush2.msra.mxu0 0.0
    %2251 = vmatprep.subr.mxu0 0.0
    %2252 = vmatpush2.msra.mxu0 0.0
    %2253 = vmatprep.subr.mxu0 0.0
    %2254 = vmatpush2.msra.mxu0 0.0
    %2255 = vmatprep.subr.mxu0 0.0
    %2256 = vmatpush2.msra.mxu0 0.0
    %2257 = vmatprep.subr.mxu0 0.0
    %2258 = vmatpush2.msra.mxu0 0.0
    %2259 = vmatprep.subr.mxu0 0.0
    %2260 = vmatpush2.msra.mxu0 0.0
    %2261 = vmatprep.subr.mxu0 0.0
    %2262 = vmatpush2.msra.mxu0 0.0
    %2263 = vmatprep.subr.mxu0 0.0
    %2264 = vmatpush2.msra.mxu0 0.0
    %2265 = vmatprep.subr.mxu0 0.0
    %2266 = vmatpush2.msra.mxu0 0.0
    %2267 = vmatprep.subr.mxu0 0.0
    %2268 = vmatpush2.msra.mxu0 0.0
    %2269 = vmatprep.mubr.f32.mxu0 0.0
    %2270 = vmatmul.mubr.f32.gmra.mxu0 %v2132
    %v2271 = vpop.f32.mrf.mxu0
    %v2272 = vadd.f32 %v1967, %v2271
    %v2273 = vpop.f32.mrf.mxu0
    %2274 = vdwg.mxu0
    %v2276 = vrot.slane %v2201, 7
    %v2278 = vadd.f32 %v470, %v2276
    %v2279 = vxor.u32 %v2278, 2147483648
    %v2280 = vmul.f32 %v2279, 1.442695
    %v2281 = vpow.pop %v2280
    %v2282 = vadd.f32 %v2281, 1.0
    %v2283 = vrcp.pop %v2282
    %v2284 = vmul.f32 1.0, %v2283
    %v2286 = vrot.slane %v2203, 7
    %v2288 = vadd.f32 %v472, %v2286
    %v2289 = vxor.u32 %v2288, 2147483648
    %v2290 = vmul.f32 %v2289, 1.442695
    %v2291 = vpow.pop %v2290
    %v2292 = vadd.f32 %v2291, 1.0
    %v2293 = vrcp.pop %v2292
    %v2294 = vmul.f32 1.0, %v2293
    %v2296 = vrot.slane %v2272, 7
    %v2298 = vmul.f32 %v2284, %v2296
    %v2299 = vadd.f32 %v541, %v2298
    %v2300 = vtanh.pop %v2299
    %v2301 = vsub.f32 1.0, %v2294
    %v2302 = vmul.f32 %v2301, %v2300
    %v2304 = vrot.slane %v2132, 7
    %v2306 = vmul.f32 %v2294, %v2304
    %v2307 = vadd.f32 %v2302, %v2306
    %2308 = vst [vmem:[#allocation2] sm:$0x2] %v2307
    %v2310 = vrot.slane %v2307, 1
    %2312 = vmatprep.subr.mxu0 %v192
    %2313 = vmatpush1.msra.mxu0 %v191
    %2314 = vmatprep.subr.mxu0 %v189
    %2315 = vmatpush1.msra.mxu0 %v188
    %2316 = vmatprep.subr.mxu0 %v186
    %2317 = vmatpush1.msra.mxu0 %v185
    %2318 = vmatprep.subr.mxu0 %v183
    %2319 = vmatpush1.msra.mxu0 %v182
    %2320 = vmatprep.subr.mxu0 %v180
    %2321 = vmatpush1.msra.mxu0 %v179
    %2322 = vmatprep.subr.mxu0 %v177
    %2323 = vmatpush1.msra.mxu0 %v176
    %2324 = vmatprep.subr.mxu0 %v174
    %2325 = vmatpush1.msra.mxu0 %v173
    %2326 = vmatprep.subr.mxu0 %v171
    %2327 = vmatpush1.msra.mxu0 %v170
    %2328 = vmatprep.subr.mxu0 %v168
    %2329 = vmatpush1.msra.mxu0 %v167
    %2330 = vmatprep.subr.mxu0 %v165
    %2331 = vmatpush1.msra.mxu0 %v164
    %2332 = vmatprep.subr.mxu0 %v162
    %2333 = vmatpush1.msra.mxu0 %v161
    %2334 = vmatprep.subr.mxu0 %v159
    %2335 = vmatpush1.msra.mxu0 %v158
    %2336 = vmatprep.subr.mxu0 %v156
    %2337 = vmatpush1.msra.mxu0 %v155
    %2338 = vmatprep.subr.mxu0 %v153
    %2339 = vmatpush1.msra.mxu0 %v152
    %2340 = vmatprep.subr.mxu0 %v150
    %2341 = vmatpush1.msra.mxu0 %v149
    %2342 = vmatprep.subr.mxu0 %v147
    %2343 = vmatpush1.msra.mxu0 %v146
    %2344 = vmatprep.subr.mxu0 0.0
    %2345 = vmatpush2.msra.mxu0 0.0
    %2346 = vmatprep.subr.mxu0 0.0
    %2347 = vmatpush2.msra.mxu0 0.0
    %2348 = vmatprep.subr.mxu0 0.0
    %2349 = vmatpush2.msra.mxu0 0.0
    %2350 = vmatprep.subr.mxu0 0.0
    %2351 = vmatpush2.msra.mxu0 0.0
    %2352 = vmatprep.subr.mxu0 0.0
    %2353 = vmatpush2.msra.mxu0 0.0
    %2354 = vmatprep.subr.mxu0 0.0
    %2355 = vmatpush2.msra.mxu0 0.0
    %2356 = vmatprep.subr.mxu0 0.0
    %2357 = vmatpush2.msra.mxu0 0.0
    %2358 = vmatprep.subr.mxu0 0.0
    %2359 = vmatpush2.msra.mxu0 0.0
    %2360 = vmatprep.subr.mxu0 0.0
    %2361 = vmatpush2.msra.mxu0 0.0
    %2362 = vmatprep.subr.mxu0 0.0
    %2363 = vmatpush2.msra.mxu0 0.0
    %2364 = vmatprep.subr.mxu0 0.0
    %2365 = vmatpush2.msra.mxu0 0.0
    %2366 = vmatprep.subr.mxu0 0.0
    %2367 = vmatpush2.msra.mxu0 0.0
    %2368 = vmatprep.subr.mxu0 0.0
    %2369 = vmatpush2.msra.mxu0 0.0
    %2370 = vmatprep.subr.mxu0 0.0
    %2371 = vmatpush2.msra.mxu0 0.0
    %2372 = vmatprep.subr.mxu0 0.0
    %2373 = vmatpush2.msra.mxu0 0.0
    %2374 = vmatprep.subr.mxu0 0.0
    %2375 = vmatpush2.msra.mxu0 0.0
    %2376 = vmatprep.mubr.f32.mxu0 0.0
    %2377 = vmatmul.mubr.f32.gmra.mxu0 %v2310
    %v2378 = vpop.f32.mrf.mxu0
    %v2379 = vadd.f32 %v1959, %v2378
    %v2380 = vpop.f32.mrf.mxu0
    %v2381 = vadd.f32 %v1963, %v2380
    %2382 = vdwg.mxu0
    %2383 = vmatprep.subr.mxu0 0.0
    %2384 = vmatpush1.msra.mxu0 %v193
    %2385 = vmatprep.subr.mxu0 0.0
    %2386 = vmatpush1.msra.mxu0 %v190
    %2387 = vmatprep.subr.mxu0 0.0
    %2388 = vmatpush1.msra.mxu0 %v187
    %2389 = vmatprep.subr.mxu0 0.0
    %2390 = vmatpush1.msra.mxu0 %v184
    %2391 = vmatprep.subr.mxu0 0.0
    %2392 = vmatpush1.msra.mxu0 %v181
    %2393 = vmatprep.subr.mxu0 0.0
    %2394 = vmatpush1.msra.mxu0 %v178
    %2395 = vmatprep.subr.mxu0 0.0
    %2396 = vmatpush1.msra.mxu0 %v175
    %2397 = vmatprep.subr.mxu0 0.0
    %2398 = vmatpush1.msra.mxu0 %v172
    %2399 = vmatprep.subr.mxu0 0.0
    %2400 = vmatpush1.msra.mxu0 %v169
    %2401 = vmatprep.subr.mxu0 0.0
    %2402 = vmatpush1.msra.mxu0 %v166
    %2403 = vmatprep.subr.mxu0 0.0
    %2404 = vmatpush1.msra.mxu0 %v163
    %2405 = vmatprep.subr.mxu0 0.0
    %2406 = vmatpush1.msra.mxu0 %v160
    %2407 = vmatprep.subr.mxu0 0.0
    %2408 = vmatpush1.msra.mxu0 %v157
    %2409 = vmatprep.subr.mxu0 0.0
    %2410 = vmatpush1.msra.mxu0 %v154
    %2411 = vmatprep.subr.mxu0 0.0
    %2412 = vmatpush1.msra.mxu0 %v151
    %2413 = vmatprep.subr.mxu0 0.0
    %2414 = vmatpush1.msra.mxu0 %v148
    %2415 = vmatprep.subr.mxu0 0.0
    %2416 = vmatpush2.msra.mxu0 0.0
    %2417 = vmatprep.subr.mxu0 0.0
    %2418 = vmatpush2.msra.mxu0 0.0
    %2419 = vmatprep.subr.mxu0 0.0
    %2420 = vmatpush2.msra.mxu0 0.0
    %2421 = vmatprep.subr.mxu0 0.0
    %2422 = vmatpush2.msra.mxu0 0.0
    %2423 = vmatprep.subr.mxu0 0.0
    %2424 = vmatpush2.msra.mxu0 0.0
    %2425 = vmatprep.subr.mxu0 0.0
    %2426 = vmatpush2.msra.mxu0 0.0
    %2427 = vmatprep.subr.mxu0 0.0
    %2428 = vmatpush2.msra.mxu0 0.0
    %2429 = vmatprep.subr.mxu0 0.0
    %2430 = vmatpush2.msra.mxu0 0.0
    %2431 = vmatprep.subr.mxu0 0.0
    %2432 = vmatpush2.msra.mxu0 0.0
    %2433 = vmatprep.subr.mxu0 0.0
    %2434 = vmatpush2.msra.mxu0 0.0
    %2435 = vmatprep.subr.mxu0 0.0
    %2436 = vmatpush2.msra.mxu0 0.0
    %2437 = vmatprep.subr.mxu0 0.0
    %2438 = vmatpush2.msra.mxu0 0.0
    %2439 = vmatprep.subr.mxu0 0.0
    %2440 = vmatpush2.msra.mxu0 0.0
    %2441 = vmatprep.subr.mxu0 0.0
    %2442 = vmatpush2.msra.mxu0 0.0
    %2443 = vmatprep.subr.mxu0 0.0
    %2444 = vmatpush2.msra.mxu0 0.0
    %2445 = vmatprep.subr.mxu0 0.0
    %2446 = vmatpush2.msra.mxu0 0.0
    %2447 = vmatprep.mubr.f32.mxu0 0.0
    %2448 = vmatmul.mubr.f32.gmra.mxu0 %v2310
    %v2449 = vpop.f32.mrf.mxu0
    %v2450 = vadd.f32 %v1967, %v2449
    %v2451 = vpop.f32.mrf.mxu0
    %2452 = vdwg.mxu0
    %v2454 = vrot.slane %v2379, 7
    %v2456 = vadd.f32 %v470, %v2454
    %v2457 = vxor.u32 %v2456, 2147483648
    %v2458 = vmul.f32 %v2457, 1.442695
    %v2459 = vpow.pop %v2458
    %v2460 = vadd.f32 %v2459, 1.0
    %v2461 = vrcp.pop %v2460
    %v2462 = vmul.f32 1.0, %v2461
    %v2464 = vrot.slane %v2381, 7
    %v2466 = vadd.f32 %v472, %v2464
    %v2467 = vxor.u32 %v2466, 2147483648
    %v2468 = vmul.f32 %v2467, 1.442695
    %v2469 = vpow.pop %v2468
    %v2470 = vadd.f32 %v2469, 1.0
    %v2471 = vrcp.pop %v2470
    %v2472 = vmul.f32 1.0, %v2471
    %v2474 = vrot.slane %v2450, 7
    %v2476 = vmul.f32 %v2462, %v2474
    %v2477 = vadd.f32 %v541, %v2476
    %v2478 = vtanh.pop %v2477
    %v2479 = vsub.f32 1.0, %v2472
    %v2480 = vmul.f32 %v2479, %v2478
    %v2481 = vmul.f32 %v2472, %v2307
    %v2482 = vadd.f32 %v2480, %v2481
    %2483 = vst [vmem:[#allocation2 + $0x1] sm:$0x2] %v2482
    %v2485 = vrot.slane %v2482, 1
    %2487 = vmatprep.subr.mxu0 %v192
    %2488 = vmatpush1.msra.mxu0 %v191
    %2489 = vmatprep.subr.mxu0 %v189
    %2490 = vmatpush1.msra.mxu0 %v188
    %2491 = vmatprep.subr.mxu0 %v186
    %2492 = vmatpush1.msra.mxu0 %v185
    %2493 = vmatprep.subr.mxu0 %v183
    %2494 = vmatpush1.msra.mxu0 %v182
    %2495 = vmatprep.subr.mxu0 %v180
    %2496 = vmatpush1.msra.mxu0 %v179
    %2497 = vmatprep.subr.mxu0 %v177
    %2498 = vmatpush1.msra.mxu0 %v176
    %2499 = vmatprep.subr.mxu0 %v174
    %2500 = vmatpush1.msra.mxu0 %v173
    %2501 = vmatprep.subr.mxu0 %v171
    %2502 = vmatpush1.msra.mxu0 %v170
    %2503 = vmatprep.subr.mxu0 %v168
    %2504 = vmatpush1.msra.mxu0 %v167
    %2505 = vmatprep.subr.mxu0 %v165
    %2506 = vmatpush1.msra.mxu0 %v164
    %2507 = vmatprep.subr.mxu0 %v162
    %2508 = vmatpush1.msra.mxu0 %v161
    %2509 = vmatprep.subr.mxu0 %v159
    %2510 = vmatpush1.msra.mxu0 %v158
    %2511 = vmatprep.subr.mxu0 %v156
    %2512 = vmatpush1.msra.mxu0 %v155
    %2513 = vmatprep.subr.mxu0 %v153
    %2514 = vmatpush1.msra.mxu0 %v152
    %2515 = vmatprep.subr.mxu0 %v150
    %2516 = vmatpush1.msra.mxu0 %v149
    %2517 = vmatprep.subr.mxu0 %v147
    %2518 = vmatpush1.msra.mxu0 %v146
    %2519 = vmatprep.subr.mxu0 0.0
    %2520 = vmatpush2.msra.mxu0 0.0
    %2521 = vmatprep.subr.mxu0 0.0
    %2522 = vmatpush2.msra.mxu0 0.0
    %2523 = vmatprep.subr.mxu0 0.0
    %2524 = vmatpush2.msra.mxu0 0.0
    %2525 = vmatprep.subr.mxu0 0.0
    %2526 = vmatpush2.msra.mxu0 0.0
    %2527 = vmatprep.subr.mxu0 0.0
    %2528 = vmatpush2.msra.mxu0 0.0
    %2529 = vmatprep.subr.mxu0 0.0
    %2530 = vmatpush2.msra.mxu0 0.0
    %2531 = vmatprep.subr.mxu0 0.0
    %2532 = vmatpush2.msra.mxu0 0.0
    %2533 = vmatprep.subr.mxu0 0.0
    %2534 = vmatpush2.msra.mxu0 0.0
    %2535 = vmatprep.subr.mxu0 0.0
    %2536 = vmatpush2.msra.mxu0 0.0
    %2537 = vmatprep.subr.mxu0 0.0
    %2538 = vmatpush2.msra.mxu0 0.0
    %2539 = vmatprep.subr.mxu0 0.0
    %2540 = vmatpush2.msra.mxu0 0.0
    %2541 = vmatprep.subr.mxu0 0.0
    %2542 = vmatpush2.msra.mxu0 0.0
    %2543 = vmatprep.subr.mxu0 0.0
    %2544 = vmatpush2.msra.mxu0 0.0
    %2545 = vmatprep.subr.mxu0 0.0
    %2546 = vmatpush2.msra.mxu0 0.0
    %2547 = vmatprep.subr.mxu0 0.0
    %2548 = vmatpush2.msra.mxu0 0.0
    %2549 = vmatprep.subr.mxu0 0.0
    %2550 = vmatpush2.msra.mxu0 0.0
    %2551 = vmatprep.mubr.f32.mxu0 0.0
    %2552 = vmatmul.mubr.f32.gmra.mxu0 %v2485
    %v2553 = vpop.f32.mrf.mxu0
    %v2554 = vadd.f32 %v1959, %v2553
    %v2555 = vpop.f32.mrf.mxu0
    %v2556 = vadd.f32 %v1963, %v2555
    %2557 = vdwg.mxu0
    %2558 = vmatprep.subr.mxu0 0.0
    %2559 = vmatpush1.msra.mxu0 %v193
    %2560 = vmatprep.subr.mxu0 0.0
    %2561 = vmatpush1.msra.mxu0 %v190
    %2562 = vmatprep.subr.mxu0 0.0
    %2563 = vmatpush1.msra.mxu0 %v187
    %2564 = vmatprep.subr.mxu0 0.0
    %2565 = vmatpush1.msra.mxu0 %v184
    %2566 = vmatprep.subr.mxu0 0.0
    %2567 = vmatpush1.msra.mxu0 %v181
    %2568 = vmatprep.subr.mxu0 0.0
    %2569 = vmatpush1.msra.mxu0 %v178
    %2570 = vmatprep.subr.mxu0 0.0
    %2571 = vmatpush1.msra.mxu0 %v175
    %2572 = vmatprep.subr.mxu0 0.0
    %2573 = vmatpush1.msra.mxu0 %v172
    %2574 = vmatprep.subr.mxu0 0.0
    %2575 = vmatpush1.msra.mxu0 %v169
    %2576 = vmatprep.subr.mxu0 0.0
    %2577 = vmatpush1.msra.mxu0 %v166
    %2578 = vmatprep.subr.mxu0 0.0
    %2579 = vmatpush1.msra.mxu0 %v163
    %2580 = vmatprep.subr.mxu0 0.0
    %2581 = vmatpush1.msra.mxu0 %v160
    %2582 = vmatprep.subr.mxu0 0.0
    %2583 = vmatpush1.msra.mxu0 %v157
    %2584 = vmatprep.subr.mxu0 0.0
    %2585 = vmatpush1.msra.mxu0 %v154
    %2586 = vmatprep.subr.mxu0 0.0
    %2587 = vmatpush1.msra.mxu0 %v151
    %2588 = vmatprep.subr.mxu0 0.0
    %2589 = vmatpush1.msra.mxu0 %v148
    %2590 = vmatprep.subr.mxu0 0.0
    %2591 = vmatpush2.msra.mxu0 0.0
    %2592 = vmatprep.subr.mxu0 0.0
    %2593 = vmatpush2.msra.mxu0 0.0
    %2594 = vmatprep.subr.mxu0 0.0
    %2595 = vmatpush2.msra.mxu0 0.0
    %2596 = vmatprep.subr.mxu0 0.0
    %2597 = vmatpush2.msra.mxu0 0.0
    %2598 = vmatprep.subr.mxu0 0.0
    %2599 = vmatpush2.msra.mxu0 0.0
    %2600 = vmatprep.subr.mxu0 0.0
    %2601 = vmatpush2.msra.mxu0 0.0
    %2602 = vmatprep.subr.mxu0 0.0
    %2603 = vmatpush2.msra.mxu0 0.0
    %2604 = vmatprep.subr.mxu0 0.0
    %2605 = vmatpush2.msra.mxu0 0.0
    %2606 = vmatprep.subr.mxu0 0.0
    %2607 = vmatpush2.msra.mxu0 0.0
    %2608 = vmatprep.subr.mxu0 0.0
    %2609 = vmatpush2.msra.mxu0 0.0
    %2610 = vmatprep.subr.mxu0 0.0
    %2611 = vmatpush2.msra.mxu0 0.0
    %2612 = vmatprep.subr.mxu0 0.0
    %2613 = vmatpush2.msra.mxu0 0.0
    %2614 = vmatprep.subr.mxu0 0.0
    %2615 = vmatpush2.msra.mxu0 0.0
    %2616 = vmatprep.subr.mxu0 0.0
    %2617 = vmatpush2.msra.mxu0 0.0
    %2618 = vmatprep.subr.mxu0 0.0
    %2619 = vmatpush2.msra.mxu0 0.0
    %2620 = vmatprep.subr.mxu0 0.0
    %2621 = vmatpush2.msra.mxu0 0.0
    %2622 = vmatprep.mubr.f32.mxu0 0.0
    %2623 = vmatmul.mubr.f32.gmra.mxu0 %v2485
    %v2624 = vpop.f32.mrf.mxu0
    %v2625 = vadd.f32 %v1967, %v2624
    %v2626 = vpop.f32.mrf.mxu0
    %2627 = vdwg.mxu0
    %v2629 = vrot.slane %v2554, 7
    %v2631 = vadd.f32 %v470, %v2629
    %v2632 = vxor.u32 %v2631, 2147483648
    %v2633 = vmul.f32 %v2632, 1.442695
    %v2634 = vpow.pop %v2633
    %v2635 = vadd.f32 %v2634, 1.0
    %v2636 = vrcp.pop %v2635
    %v2637 = vmul.f32 1.0, %v2636
    %v2639 = vrot.slane %v2556, 7
    %v2641 = vadd.f32 %v472, %v2639
    %v2642 = vxor.u32 %v2641, 2147483648
    %v2643 = vmul.f32 %v2642, 1.442695
    %v2644 = vpow.pop %v2643
    %v2645 = vadd.f32 %v2644, 1.0
    %v2646 = vrcp.pop %v2645
    %v2647 = vmul.f32 1.0, %v2646
    %v2649 = vrot.slane %v2625, 7
    %v2651 = vmul.f32 %v2637, %v2649
    %v2652 = vadd.f32 %v541, %v2651
    %v2653 = vtanh.pop %v2652
    %v2654 = vsub.f32 1.0, %v2647
    %v2655 = vmul.f32 %v2654, %v2653
    %v2656 = vmul.f32 %v2647, %v2482
    %v2657 = vadd.f32 %v2655, %v2656
    %2658 = vst [vmem:[#allocation2 + $0x2] sm:$0x2] %v2657
    %v2660 = vrot.slane %v2657, 1
    %2662 = vmatprep.subr.mxu0 %v192
    %2663 = vmatpush1.msra.mxu0 %v191
    %2664 = vmatprep.subr.mxu0 %v189
    %2665 = vmatpush1.msra.mxu0 %v188
    %2666 = vmatprep.subr.mxu0 %v186
    %2667 = vmatpush1.msra.mxu0 %v185
    %2668 = vmatprep.subr.mxu0 %v183
    %2669 = vmatpush1.msra.mxu0 %v182
    %2670 = vmatprep.subr.mxu0 %v180
    %2671 = vmatpush1.msra.mxu0 %v179
    %2672 = vmatprep.subr.mxu0 %v177
    %2673 = vmatpush1.msra.mxu0 %v176
    %2674 = vmatprep.subr.mxu0 %v174
    %2675 = vmatpush1.msra.mxu0 %v173
    %2676 = vmatprep.subr.mxu0 %v171
    %2677 = vmatpush1.msra.mxu0 %v170
    %2678 = vmatprep.subr.mxu0 %v168
    %2679 = vmatpush1.msra.mxu0 %v167
    %2680 = vmatprep.subr.mxu0 %v165
    %2681 = vmatpush1.msra.mxu0 %v164
    %2682 = vmatprep.subr.mxu0 %v162
    %2683 = vmatpush1.msra.mxu0 %v161
    %2684 = vmatprep.subr.mxu0 %v159
    %2685 = vmatpush1.msra.mxu0 %v158
    %2686 = vmatprep.subr.mxu0 %v156
    %2687 = vmatpush1.msra.mxu0 %v155
    %2688 = vmatprep.subr.mxu0 %v153
    %2689 = vmatpush1.msra.mxu0 %v152
    %2690 = vmatprep.subr.mxu0 %v150
    %2691 = vmatpush1.msra.mxu0 %v149
    %2692 = vmatprep.subr.mxu0 %v147
    %2693 = vmatpush1.msra.mxu0 %v146
    %2694 = vmatprep.subr.mxu0 0.0
    %2695 = vmatpush2.msra.mxu0 0.0
    %2696 = vmatprep.subr.mxu0 0.0
    %2697 = vmatpush2.msra.mxu0 0.0
    %2698 = vmatprep.subr.mxu0 0.0
    %2699 = vmatpush2.msra.mxu0 0.0
    %2700 = vmatprep.subr.mxu0 0.0
    %2701 = vmatpush2.msra.mxu0 0.0
    %2702 = vmatprep.subr.mxu0 0.0
    %2703 = vmatpush2.msra.mxu0 0.0
    %2704 = vmatprep.subr.mxu0 0.0
    %2705 = vmatpush2.msra.mxu0 0.0
    %2706 = vmatprep.subr.mxu0 0.0
    %2707 = vmatpush2.msra.mxu0 0.0
    %2708 = vmatprep.subr.mxu0 0.0
    %2709 = vmatpush2.msra.mxu0 0.0
    %2710 = vmatprep.subr.mxu0 0.0
    %2711 = vmatpush2.msra.mxu0 0.0
    %2712 = vmatprep.subr.mxu0 0.0
    %2713 = vmatpush2.msra.mxu0 0.0
    %2714 = vmatprep.subr.mxu0 0.0
    %2715 = vmatpush2.msra.mxu0 0.0
    %2716 = vmatprep.subr.mxu0 0.0
    %2717 = vmatpush2.msra.mxu0 0.0
    %2718 = vmatprep.subr.mxu0 0.0
    %2719 = vmatpush2.msra.mxu0 0.0
    %2720 = vmatprep.subr.mxu0 0.0
    %2721 = vmatpush2.msra.mxu0 0.0
    %2722 = vmatprep.subr.mxu0 0.0
    %2723 = vmatpush2.msra.mxu0 0.0
    %2724 = vmatprep.subr.mxu0 0.0
    %2725 = vmatpush2.msra.mxu0 0.0
    %2726 = vmatprep.mubr.f32.mxu0 0.0
    %2727 = vmatmul.mubr.f32.gmra.mxu0 %v2660
    %v2728 = vpop.f32.mrf.mxu0
    %v2729 = vadd.f32 %v1959, %v2728
    %v2730 = vpop.f32.mrf.mxu0
    %v2731 = vadd.f32 %v1963, %v2730
    %2732 = vdwg.mxu0
    %2733 = vmatprep.subr.mxu0 0.0
    %2734 = vmatpush1.msra.mxu0 %v193
    %2735 = vmatprep.subr.mxu0 0.0
    %2736 = vmatpush1.msra.mxu0 %v190
    %2737 = vmatprep.subr.mxu0 0.0
    %2738 = vmatpush1.msra.mxu0 %v187
    %2739 = vmatprep.subr.mxu0 0.0
    %2740 = vmatpush1.msra.mxu0 %v184
    %2741 = vmatprep.subr.mxu0 0.0
    %2742 = vmatpush1.msra.mxu0 %v181
    %2743 = vmatprep.subr.mxu0 0.0
    %2744 = vmatpush1.msra.mxu0 %v178
    %2745 = vmatprep.subr.mxu0 0.0
    %2746 = vmatpush1.msra.mxu0 %v175
    %2747 = vmatprep.subr.mxu0 0.0
    %2748 = vmatpush1.msra.mxu0 %v172
    %2749 = vmatprep.subr.mxu0 0.0
    %2750 = vmatpush1.msra.mxu0 %v169
    %2751 = vmatprep.subr.mxu0 0.0
    %2752 = vmatpush1.msra.mxu0 %v166
    %2753 = vmatprep.subr.mxu0 0.0
    %2754 = vmatpush1.msra.mxu0 %v163
    %2755 = vmatprep.subr.mxu0 0.0
    %2756 = vmatpush1.msra.mxu0 %v160
    %2757 = vmatprep.subr.mxu0 0.0
    %2758 = vmatpush1.msra.mxu0 %v157
    %2759 = vmatprep.subr.mxu0 0.0
    %2760 = vmatpush1.msra.mxu0 %v154
    %2761 = vmatprep.subr.mxu0 0.0
    %2762 = vmatpush1.msra.mxu0 %v151
    %2763 = vmatprep.subr.mxu0 0.0
    %2764 = vmatpush1.msra.mxu0 %v148
    %2765 = vmatprep.subr.mxu0 0.0
    %2766 = vmatpush2.msra.mxu0 0.0
    %2767 = vmatprep.subr.mxu0 0.0
    %2768 = vmatpush2.msra.mxu0 0.0
    %2769 = vmatprep.subr.mxu0 0.0
    %2770 = vmatpush2.msra.mxu0 0.0
    %2771 = vmatprep.subr.mxu0 0.0
    %2772 = vmatpush2.msra.mxu0 0.0
    %2773 = vmatprep.subr.mxu0 0.0
    %2774 = vmatpush2.msra.mxu0 0.0
    %2775 = vmatprep.subr.mxu0 0.0
    %2776 = vmatpush2.msra.mxu0 0.0
    %2777 = vmatprep.subr.mxu0 0.0
    %2778 = vmatpush2.msra.mxu0 0.0
    %2779 = vmatprep.subr.mxu0 0.0
    %2780 = vmatpush2.msra.mxu0 0.0
    %2781 = vmatprep.subr.mxu0 0.0
    %2782 = vmatpush2.msra.mxu0 0.0
    %2783 = vmatprep.subr.mxu0 0.0
    %2784 = vmatpush2.msra.mxu0 0.0
    %2785 = vmatprep.subr.mxu0 0.0
    %2786 = vmatpush2.msra.mxu0 0.0
    %2787 = vmatprep.subr.mxu0 0.0
    %2788 = vmatpush2.msra.mxu0 0.0
    %2789 = vmatprep.subr.mxu0 0.0
    %2790 = vmatpush2.msra.mxu0 0.0
    %2791 = vmatprep.subr.mxu0 0.0
    %2792 = vmatpush2.msra.mxu0 0.0
    %2793 = vmatprep.subr.mxu0 0.0
    %2794 = vmatpush2.msra.mxu0 0.0
    %2795 = vmatprep.subr.mxu0 0.0
    %2796 = vmatpush2.msra.mxu0 0.0
    %2797 = vmatprep.mubr.f32.mxu0 0.0
    %2798 = vmatmul.mubr.f32.gmra.mxu0 %v2660
    %v2799 = vpop.f32.mrf.mxu0
    %v2800 = vadd.f32 %v1967, %v2799
    %v2801 = vpop.f32.mrf.mxu0
    %2802 = vdwg.mxu0
    %v2804 = vrot.slane %v2729, 7
    %v2806 = vadd.f32 %v470, %v2804
    %v2807 = vxor.u32 %v2806, 2147483648
    %v2808 = vmul.f32 %v2807, 1.442695
    %v2809 = vpow.pop %v2808
    %v2810 = vadd.f32 %v2809, 1.0
    %v2811 = vrcp.pop %v2810
    %v2812 = vmul.f32 1.0, %v2811
    %v2814 = vrot.slane %v2731, 7
    %v2816 = vadd.f32 %v472, %v2814
    %v2817 = vxor.u32 %v2816, 2147483648
    %v2818 = vmul.f32 %v2817, 1.442695
    %v2819 = vpow.pop %v2818
    %v2820 = vadd.f32 %v2819, 1.0
    %v2821 = vrcp.pop %v2820
    %v2822 = vmul.f32 1.0, %v2821
    %v2824 = vrot.slane %v2800, 7
    %v2826 = vmul.f32 %v2812, %v2824
    %v2827 = vadd.f32 %v541, %v2826
    %v2828 = vtanh.pop %v2827
    %v2829 = vsub.f32 1.0, %v2822
    %v2830 = vmul.f32 %v2829, %v2828
    %v2831 = vmul.f32 %v2822, %v2657
    %v2832 = vadd.f32 %v2830, %v2831
    %2833 = vst [vmem:[#allocation2 + $0x3] sm:$0x2] %v2832
    %v2835 = vrot.slane %v2832, 1
    %2837 = vmatprep.subr.mxu0 %v192
    %2838 = vmatpush1.msra.mxu0 %v191
    %2839 = vmatprep.subr.mxu0 %v189
    %2840 = vmatpush1.msra.mxu0 %v188
    %2841 = vmatprep.subr.mxu0 %v186
    %2842 = vmatpush1.msra.mxu0 %v185
    %2843 = vmatprep.subr.mxu0 %v183
    %2844 = vmatpush1.msra.mxu0 %v182
    %2845 = vmatprep.subr.mxu0 %v180
    %2846 = vmatpush1.msra.mxu0 %v179
    %2847 = vmatprep.subr.mxu0 %v177
    %2848 = vmatpush1.msra.mxu0 %v176
    %2849 = vmatprep.subr.mxu0 %v174
    %2850 = vmatpush1.msra.mxu0 %v173
    %2851 = vmatprep.subr.mxu0 %v171
    %2852 = vmatpush1.msra.mxu0 %v170
    %2853 = vmatprep.subr.mxu0 %v168
    %2854 = vmatpush1.msra.mxu0 %v167
    %2855 = vmatprep.subr.mxu0 %v165
    %2856 = vmatpush1.msra.mxu0 %v164
    %2857 = vmatprep.subr.mxu0 %v162
    %2858 = vmatpush1.msra.mxu0 %v161
    %2859 = vmatprep.subr.mxu0 %v159
    %2860 = vmatpush1.msra.mxu0 %v158
    %2861 = vmatprep.subr.mxu0 %v156
    %2862 = vmatpush1.msra.mxu0 %v155
    %2863 = vmatprep.subr.mxu0 %v153
    %2864 = vmatpush1.msra.mxu0 %v152
    %2865 = vmatprep.subr.mxu0 %v150
    %2866 = vmatpush1.msra.mxu0 %v149
    %2867 = vmatprep.subr.mxu0 %v147
    %2868 = vmatpush1.msra.mxu0 %v146
    %2869 = vmatprep.subr.mxu0 0.0
    %2870 = vmatpush2.msra.mxu0 0.0
    %2871 = vmatprep.subr.mxu0 0.0
    %2872 = vmatpush2.msra.mxu0 0.0
    %2873 = vmatprep.subr.mxu0 0.0
    %2874 = vmatpush2.msra.mxu0 0.0
    %2875 = vmatprep.subr.mxu0 0.0
    %2876 = vmatpush2.msra.mxu0 0.0
    %2877 = vmatprep.subr.mxu0 0.0
    %2878 = vmatpush2.msra.mxu0 0.0
    %2879 = vmatprep.subr.mxu0 0.0
    %2880 = vmatpush2.msra.mxu0 0.0
    %2881 = vmatprep.subr.mxu0 0.0
    %2882 = vmatpush2.msra.mxu0 0.0
    %2883 = vmatprep.subr.mxu0 0.0
    %2884 = vmatpush2.msra.mxu0 0.0
    %2885 = vmatprep.subr.mxu0 0.0
    %2886 = vmatpush2.msra.mxu0 0.0
    %2887 = vmatprep.subr.mxu0 0.0
    %2888 = vmatpush2.msra.mxu0 0.0
    %2889 = vmatprep.subr.mxu0 0.0
    %2890 = vmatpush2.msra.mxu0 0.0
    %2891 = vmatprep.subr.mxu0 0.0
    %2892 = vmatpush2.msra.mxu0 0.0
    %2893 = vmatprep.subr.mxu0 0.0
    %2894 = vmatpush2.msra.mxu0 0.0
    %2895 = vmatprep.subr.mxu0 0.0
    %2896 = vmatpush2.msra.mxu0 0.0
    %2897 = vmatprep.subr.mxu0 0.0
    %2898 = vmatpush2.msra.mxu0 0.0
    %2899 = vmatprep.subr.mxu0 0.0
    %2900 = vmatpush2.msra.mxu0 0.0
    %2901 = vmatprep.mubr.f32.mxu0 0.0
    %2902 = vmatmul.mubr.f32.gmra.mxu0 %v2835
    %v2903 = vpop.f32.mrf.mxu0
    %v2904 = vadd.f32 %v1959, %v2903
    %v2905 = vpop.f32.mrf.mxu0
    %v2906 = vadd.f32 %v1963, %v2905
    %2907 = vdwg.mxu0
    %2908 = vmatprep.subr.mxu0 0.0
    %2909 = vmatpush1.msra.mxu0 %v193
    %2910 = vmatprep.subr.mxu0 0.0
    %2911 = vmatpush1.msra.mxu0 %v190
    %2912 = vmatprep.subr.mxu0 0.0
    %2913 = vmatpush1.msra.mxu0 %v187
    %2914 = vmatprep.subr.mxu0 0.0
    %2915 = vmatpush1.msra.mxu0 %v184
    %2916 = vmatprep.subr.mxu0 0.0
    %2917 = vmatpush1.msra.mxu0 %v181
    %2918 = vmatprep.subr.mxu0 0.0
    %2919 = vmatpush1.msra.mxu0 %v178
    %2920 = vmatprep.subr.mxu0 0.0
    %2921 = vmatpush1.msra.mxu0 %v175
    %2922 = vmatprep.subr.mxu0 0.0
    %2923 = vmatpush1.msra.mxu0 %v172
    %2924 = vmatprep.subr.mxu0 0.0
    %2925 = vmatpush1.msra.mxu0 %v169
    %2926 = vmatprep.subr.mxu0 0.0
    %2927 = vmatpush1.msra.mxu0 %v166
    %2928 = vmatprep.subr.mxu0 0.0
    %2929 = vmatpush1.msra.mxu0 %v163
    %2930 = vmatprep.subr.mxu0 0.0
    %2931 = vmatpush1.msra.mxu0 %v160
    %2932 = vmatprep.subr.mxu0 0.0
    %2933 = vmatpush1.msra.mxu0 %v157
    %2934 = vmatprep.subr.mxu0 0.0
    %2935 = vmatpush1.msra.mxu0 %v154
    %2936 = vmatprep.subr.mxu0 0.0
    %2937 = vmatpush1.msra.mxu0 %v151
    %2938 = vmatprep.subr.mxu0 0.0
    %2939 = vmatpush1.msra.mxu0 %v148
    %2940 = vmatprep.subr.mxu0 0.0
    %2941 = vmatpush2.msra.mxu0 0.0
    %2942 = vmatprep.subr.mxu0 0.0
    %2943 = vmatpush2.msra.mxu0 0.0
    %2944 = vmatprep.subr.mxu0 0.0
    %2945 = vmatpush2.msra.mxu0 0.0
    %2946 = vmatprep.subr.mxu0 0.0
    %2947 = vmatpush2.msra.mxu0 0.0
    %2948 = vmatprep.subr.mxu0 0.0
    %2949 = vmatpush2.msra.mxu0 0.0
    %2950 = vmatprep.subr.mxu0 0.0
    %2951 = vmatpush2.msra.mxu0 0.0
    %2952 = vmatprep.subr.mxu0 0.0
    %2953 = vmatpush2.msra.mxu0 0.0
    %2954 = vmatprep.subr.mxu0 0.0
    %2955 = vmatpush2.msra.mxu0 0.0
    %2956 = vmatprep.subr.mxu0 0.0
    %2957 = vmatpush2.msra.mxu0 0.0
    %2958 = vmatprep.subr.mxu0 0.0
    %2959 = vmatpush2.msra.mxu0 0.0
    %2960 = vmatprep.subr.mxu0 0.0
    %2961 = vmatpush2.msra.mxu0 0.0
    %2962 = vmatprep.subr.mxu0 0.0
    %2963 = vmatpush2.msra.mxu0 0.0
    %2964 = vmatprep.subr.mxu0 0.0
    %2965 = vmatpush2.msra.mxu0 0.0
    %2966 = vmatprep.subr.mxu0 0.0
    %2967 = vmatpush2.msra.mxu0 0.0
    %2968 = vmatprep.subr.mxu0 0.0
    %2969 = vmatpush2.msra.mxu0 0.0
    %2970 = vmatprep.subr.mxu0 0.0
    %2971 = vmatpush2.msra.mxu0 0.0
    %2972 = vmatprep.mubr.f32.mxu0 0.0
    %2973 = vmatmul.mubr.f32.gmra.mxu0 %v2835
    %v2974 = vpop.f32.mrf.mxu0
    %v2975 = vadd.f32 %v1967, %v2974
    %v2976 = vpop.f32.mrf.mxu0
    %2977 = vdwg.mxu0
    %v2979 = vrot.slane %v2904, 7
    %v2981 = vadd.f32 %v470, %v2979
    %v2982 = vxor.u32 %v2981, 2147483648
    %v2983 = vmul.f32 %v2982, 1.442695
    %v2984 = vpow.pop %v2983
    %v2985 = vadd.f32 %v2984, 1.0
    %v2986 = vrcp.pop %v2985
    %v2987 = vmul.f32 1.0, %v2986
    %v2989 = vrot.slane %v2906, 7
    %v2991 = vadd.f32 %v472, %v2989
    %v2992 = vxor.u32 %v2991, 2147483648
    %v2993 = vmul.f32 %v2992, 1.442695
    %v2994 = vpow.pop %v2993
    %v2995 = vadd.f32 %v2994, 1.0
    %v2996 = vrcp.pop %v2995
    %v2997 = vmul.f32 1.0, %v2996
    %v2999 = vrot.slane %v2975, 7
    %v3001 = vmul.f32 %v2987, %v2999
    %v3002 = vadd.f32 %v541, %v3001
    %v3003 = vtanh.pop %v3002
    %v3004 = vsub.f32 1.0, %v2997
    %v3005 = vmul.f32 %v3004, %v3003
    %v3006 = vmul.f32 %v2997, %v2832
    %v3007 = vadd.f32 %v3005, %v3006
    %3008 = vst [vmem:[#allocation2 + $0x4] sm:$0x2] %v3007
    %v3010 = vrot.slane %v3007, 1
    %3012 = vmatprep.subr.mxu0 %v192
    %3013 = vmatpush1.msra.mxu0 %v191
    %3014 = vmatprep.subr.mxu0 %v189
    %3015 = vmatpush1.msra.mxu0 %v188
    %3016 = vmatprep.subr.mxu0 %v186
    %3017 = vmatpush1.msra.mxu0 %v185
    %3018 = vmatprep.subr.mxu0 %v183
    %3019 = vmatpush1.msra.mxu0 %v182
    %3020 = vmatprep.subr.mxu0 %v180
    %3021 = vmatpush1.msra.mxu0 %v179
    %3022 = vmatprep.subr.mxu0 %v177
    %3023 = vmatpush1.msra.mxu0 %v176
    %3024 = vmatprep.subr.mxu0 %v174
    %3025 = vmatpush1.msra.mxu0 %v173
    %3026 = vmatprep.subr.mxu0 %v171
    %3027 = vmatpush1.msra.mxu0 %v170
    %3028 = vmatprep.subr.mxu0 %v168
    %3029 = vmatpush1.msra.mxu0 %v167
    %3030 = vmatprep.subr.mxu0 %v165
    %3031 = vmatpush1.msra.mxu0 %v164
    %3032 = vmatprep.subr.mxu0 %v162
    %3033 = vmatpush1.msra.mxu0 %v161
    %3034 = vmatprep.subr.mxu0 %v159
    %3035 = vmatpush1.msra.mxu0 %v158
    %3036 = vmatprep.subr.mxu0 %v156
    %3037 = vmatpush1.msra.mxu0 %v155
    %3038 = vmatprep.subr.mxu0 %v153
    %3039 = vmatpush1.msra.mxu0 %v152
    %3040 = vmatprep.subr.mxu0 %v150
    %3041 = vmatpush1.msra.mxu0 %v149
    %3042 = vmatprep.subr.mxu0 %v147
    %3043 = vmatpush1.msra.mxu0 %v146
    %3044 = vmatprep.subr.mxu0 0.0
    %3045 = vmatpush2.msra.mxu0 0.0
    %3046 = vmatprep.subr.mxu0 0.0
    %3047 = vmatpush2.msra.mxu0 0.0
    %3048 = vmatprep.subr.mxu0 0.0
    %3049 = vmatpush2.msra.mxu0 0.0
    %3050 = vmatprep.subr.mxu0 0.0
    %3051 = vmatpush2.msra.mxu0 0.0
    %3052 = vmatprep.subr.mxu0 0.0
    %3053 = vmatpush2.msra.mxu0 0.0
    %3054 = vmatprep.subr.mxu0 0.0
    %3055 = vmatpush2.msra.mxu0 0.0
    %3056 = vmatprep.subr.mxu0 0.0
    %3057 = vmatpush2.msra.mxu0 0.0
    %3058 = vmatprep.subr.mxu0 0.0
    %3059 = vmatpush2.msra.mxu0 0.0
    %3060 = vmatprep.subr.mxu0 0.0
    %3061 = vmatpush2.msra.mxu0 0.0
    %3062 = vmatprep.subr.mxu0 0.0
    %3063 = vmatpush2.msra.mxu0 0.0
    %3064 = vmatprep.subr.mxu0 0.0
    %3065 = vmatpush2.msra.mxu0 0.0
    %3066 = vmatprep.subr.mxu0 0.0
    %3067 = vmatpush2.msra.mxu0 0.0
    %3068 = vmatprep.subr.mxu0 0.0
    %3069 = vmatpush2.msra.mxu0 0.0
    %3070 = vmatprep.subr.mxu0 0.0
    %3071 = vmatpush2.msra.mxu0 0.0
    %3072 = vmatprep.subr.mxu0 0.0
    %3073 = vmatpush2.msra.mxu0 0.0
    %3074 = vmatprep.subr.mxu0 0.0
    %3075 = vmatpush2.msra.mxu0 0.0
    %3076 = vmatprep.mubr.f32.mxu0 0.0
    %3077 = vmatmul.mubr.f32.gmra.mxu0 %v3010
    %v3078 = vpop.f32.mrf.mxu0
    %v3079 = vadd.f32 %v1959, %v3078
    %v3080 = vpop.f32.mrf.mxu0
    %v3081 = vadd.f32 %v1963, %v3080
    %3082 = vdwg.mxu0
    %3083 = vmatprep.subr.mxu0 0.0
    %3084 = vmatpush1.msra.mxu0 %v193
    %3085 = vmatprep.subr.mxu0 0.0
    %3086 = vmatpush1.msra.mxu0 %v190
    %3087 = vmatprep.subr.mxu0 0.0
    %3088 = vmatpush1.msra.mxu0 %v187
    %3089 = vmatprep.subr.mxu0 0.0
    %3090 = vmatpush1.msra.mxu0 %v184
    %3091 = vmatprep.subr.mxu0 0.0
    %3092 = vmatpush1.msra.mxu0 %v181
    %3093 = vmatprep.subr.mxu0 0.0
    %3094 = vmatpush1.msra.mxu0 %v178
    %3095 = vmatprep.subr.mxu0 0.0
    %3096 = vmatpush1.msra.mxu0 %v175
    %3097 = vmatprep.subr.mxu0 0.0
    %3098 = vmatpush1.msra.mxu0 %v172
    %3099 = vmatprep.subr.mxu0 0.0
    %3100 = vmatpush1.msra.mxu0 %v169
    %3101 = vmatprep.subr.mxu0 0.0
    %3102 = vmatpush1.msra.mxu0 %v166
    %3103 = vmatprep.subr.mxu0 0.0
    %3104 = vmatpush1.msra.mxu0 %v163
    %3105 = vmatprep.subr.mxu0 0.0
    %3106 = vmatpush1.msra.mxu0 %v160
    %3107 = vmatprep.subr.mxu0 0.0
    %3108 = vmatpush1.msra.mxu0 %v157
    %3109 = vmatprep.subr.mxu0 0.0
    %3110 = vmatpush1.msra.mxu0 %v154
    %3111 = vmatprep.subr.mxu0 0.0
    %3112 = vmatpush1.msra.mxu0 %v151
    %3113 = vmatprep.subr.mxu0 0.0
    %3114 = vmatpush1.msra.mxu0 %v148
    %3115 = vmatprep.subr.mxu0 0.0
    %3116 = vmatpush2.msra.mxu0 0.0
    %3117 = vmatprep.subr.mxu0 0.0
    %3118 = vmatpush2.msra.mxu0 0.0
    %3119 = vmatprep.subr.mxu0 0.0
    %3120 = vmatpush2.msra.mxu0 0.0
    %3121 = vmatprep.subr.mxu0 0.0
    %3122 = vmatpush2.msra.mxu0 0.0
    %3123 = vmatprep.subr.mxu0 0.0
    %3124 = vmatpush2.msra.mxu0 0.0
    %3125 = vmatprep.subr.mxu0 0.0
    %3126 = vmatpush2.msra.mxu0 0.0
    %3127 = vmatprep.subr.mxu0 0.0
    %3128 = vmatpush2.msra.mxu0 0.0
    %3129 = vmatprep.subr.mxu0 0.0
    %3130 = vmatpush2.msra.mxu0 0.0
    %3131 = vmatprep.subr.mxu0 0.0
    %3132 = vmatpush2.msra.mxu0 0.0
    %3133 = vmatprep.subr.mxu0 0.0
    %3134 = vmatpush2.msra.mxu0 0.0
    %3135 = vmatprep.subr.mxu0 0.0
    %3136 = vmatpush2.msra.mxu0 0.0
    %3137 = vmatprep.subr.mxu0 0.0
    %3138 = vmatpush2.msra.mxu0 0.0
    %3139 = vmatprep.subr.mxu0 0.0
    %3140 = vmatpush2.msra.mxu0 0.0
    %3141 = vmatprep.subr.mxu0 0.0
    %3142 = vmatpush2.msra.mxu0 0.0
    %3143 = vmatprep.subr.mxu0 0.0
    %3144 = vmatpush2.msra.mxu0 0.0
    %3145 = vmatprep.subr.mxu0 0.0
    %3146 = vmatpush2.msra.mxu0 0.0
    %3147 = vmatprep.mubr.f32.mxu0 0.0
    %3148 = vmatmul.mubr.f32.gmra.mxu0 %v3010
    %v3149 = vpop.f32.mrf.mxu0
    %v3150 = vadd.f32 %v1967, %v3149
    %v3151 = vpop.f32.mrf.mxu0
    %3152 = vdwg.mxu0
    %v3154 = vrot.slane %v3079, 7
    %v3156 = vadd.f32 %v470, %v3154
    %v3157 = vxor.u32 %v3156, 2147483648
    %v3158 = vmul.f32 %v3157, 1.442695
    %v3159 = vpow.pop %v3158
    %v3160 = vadd.f32 %v3159, 1.0
    %v3161 = vrcp.pop %v3160
    %v3162 = vmul.f32 1.0, %v3161
    %v3164 = vrot.slane %v3081, 7
    %v3166 = vadd.f32 %v472, %v3164
    %v3167 = vxor.u32 %v3166, 2147483648
    %v3168 = vmul.f32 %v3167, 1.442695
    %v3169 = vpow.pop %v3168
    %v3170 = vadd.f32 %v3169, 1.0
    %v3171 = vrcp.pop %v3170
    %v3172 = vmul.f32 1.0, %v3171
    %v3174 = vrot.slane %v3150, 7
    %v3176 = vmul.f32 %v3162, %v3174
    %v3177 = vadd.f32 %v541, %v3176
    %v3178 = vtanh.pop %v3177
    %v3179 = vsub.f32 1.0, %v3172
    %v3180 = vmul.f32 %v3179, %v3178
    %v3181 = vmul.f32 %v3172, %v3007
    %v3182 = vadd.f32 %v3180, %v3181
    %3183 = vst [vmem:[#allocation2 + $0x5] sm:$0x2] %v3182
    %v3185 = vrot.slane %v3182, 1
    %3187 = vmatprep.subr.mxu0 %v192
    %3188 = vmatpush1.msra.mxu0 %v191
    %3189 = vmatprep.subr.mxu0 %v189
    %3190 = vmatpush1.msra.mxu0 %v188
    %3191 = vmatprep.subr.mxu0 %v186
    %3192 = vmatpush1.msra.mxu0 %v185
    %3193 = vmatprep.subr.mxu0 %v183
    %3194 = vmatpush1.msra.mxu0 %v182
    %3195 = vmatprep.subr.mxu0 %v180
    %3196 = vmatpush1.msra.mxu0 %v179
    %3197 = vmatprep.subr.mxu0 %v177
    %3198 = vmatpush1.msra.mxu0 %v176
    %3199 = vmatprep.subr.mxu0 %v174
    %3200 = vmatpush1.msra.mxu0 %v173
    %3201 = vmatprep.subr.mxu0 %v171
    %3202 = vmatpush1.msra.mxu0 %v170
    %3203 = vmatprep.subr.mxu0 %v168
    %3204 = vmatpush1.msra.mxu0 %v167
    %3205 = vmatprep.subr.mxu0 %v165
    %3206 = vmatpush1.msra.mxu0 %v164
    %3207 = vmatprep.subr.mxu0 %v162
    %3208 = vmatpush1.msra.mxu0 %v161
    %3209 = vmatprep.subr.mxu0 %v159
    %3210 = vmatpush1.msra.mxu0 %v158
    %3211 = vmatprep.subr.mxu0 %v156
    %3212 = vmatpush1.msra.mxu0 %v155
    %3213 = vmatprep.subr.mxu0 %v153
    %3214 = vmatpush1.msra.mxu0 %v152
    %3215 = vmatprep.subr.mxu0 %v150
    %3216 = vmatpush1.msra.mxu0 %v149
    %3217 = vmatprep.subr.mxu0 %v147
    %3218 = vmatpush1.msra.mxu0 %v146
    %3219 = vmatprep.subr.mxu0 0.0
    %3220 = vmatpush2.msra.mxu0 0.0
    %3221 = vmatprep.subr.mxu0 0.0
    %3222 = vmatpush2.msra.mxu0 0.0
    %3223 = vmatprep.subr.mxu0 0.0
    %3224 = vmatpush2.msra.mxu0 0.0
    %3225 = vmatprep.subr.mxu0 0.0
    %3226 = vmatpush2.msra.mxu0 0.0
    %3227 = vmatprep.subr.mxu0 0.0
    %3228 = vmatpush2.msra.mxu0 0.0
    %3229 = vmatprep.subr.mxu0 0.0
    %3230 = vmatpush2.msra.mxu0 0.0
    %3231 = vmatprep.subr.mxu0 0.0
    %3232 = vmatpush2.msra.mxu0 0.0
    %3233 = vmatprep.subr.mxu0 0.0
    %3234 = vmatpush2.msra.mxu0 0.0
    %3235 = vmatprep.subr.mxu0 0.0
    %3236 = vmatpush2.msra.mxu0 0.0
    %3237 = vmatprep.subr.mxu0 0.0
    %3238 = vmatpush2.msra.mxu0 0.0
    %3239 = vmatprep.subr.mxu0 0.0
    %3240 = vmatpush2.msra.mxu0 0.0
    %3241 = vmatprep.subr.mxu0 0.0
    %3242 = vmatpush2.msra.mxu0 0.0
    %3243 = vmatprep.subr.mxu0 0.0
    %3244 = vmatpush2.msra.mxu0 0.0
    %3245 = vmatprep.subr.mxu0 0.0
    %3246 = vmatpush2.msra.mxu0 0.0
    %3247 = vmatprep.subr.mxu0 0.0
    %3248 = vmatpush2.msra.mxu0 0.0
    %3249 = vmatprep.subr.mxu0 0.0
    %3250 = vmatpush2.msra.mxu0 0.0
    %3251 = vmatprep.mubr.f32.mxu0 0.0
    %3252 = vmatmul.mubr.f32.gmra.mxu0 %v3185
    %v3253 = vpop.f32.mrf.mxu0
    %v3254 = vadd.f32 %v1959, %v3253
    %v3255 = vpop.f32.mrf.mxu0
    %v3256 = vadd.f32 %v1963, %v3255
    %3257 = vdwg.mxu0
    %3258 = vmatprep.subr.mxu0 0.0
    %3259 = vmatpush1.msra.mxu0 %v193
    %3260 = vmatprep.subr.mxu0 0.0
    %3261 = vmatpush1.msra.mxu0 %v190
    %3262 = vmatprep.subr.mxu0 0.0
    %3263 = vmatpush1.msra.mxu0 %v187
    %3264 = vmatprep.subr.mxu0 0.0
    %3265 = vmatpush1.msra.mxu0 %v184
    %3266 = vmatprep.subr.mxu0 0.0
    %3267 = vmatpush1.msra.mxu0 %v181
    %3268 = vmatprep.subr.mxu0 0.0
    %3269 = vmatpush1.msra.mxu0 %v178
    %3270 = vmatprep.subr.mxu0 0.0
    %3271 = vmatpush1.msra.mxu0 %v175
    %3272 = vmatprep.subr.mxu0 0.0
    %3273 = vmatpush1.msra.mxu0 %v172
    %3274 = vmatprep.subr.mxu0 0.0
    %3275 = vmatpush1.msra.mxu0 %v169
    %3276 = vmatprep.subr.mxu0 0.0
    %3277 = vmatpush1.msra.mxu0 %v166
    %3278 = vmatprep.subr.mxu0 0.0
    %3279 = vmatpush1.msra.mxu0 %v163
    %3280 = vmatprep.subr.mxu0 0.0
    %3281 = vmatpush1.msra.mxu0 %v160
    %3282 = vmatprep.subr.mxu0 0.0
    %3283 = vmatpush1.msra.mxu0 %v157
    %3284 = vmatprep.subr.mxu0 0.0
    %3285 = vmatpush1.msra.mxu0 %v154
    %3286 = vmatprep.subr.mxu0 0.0
    %3287 = vmatpush1.msra.mxu0 %v151
    %3288 = vmatprep.subr.mxu0 0.0
    %3289 = vmatpush1.msra.mxu0 %v148
    %3290 = vmatprep.subr.mxu0 0.0
    %3291 = vmatpush2.msra.mxu0 0.0
    %3292 = vmatprep.subr.mxu0 0.0
    %3293 = vmatpush2.msra.mxu0 0.0
    %3294 = vmatprep.subr.mxu0 0.0
    %3295 = vmatpush2.msra.mxu0 0.0
    %3296 = vmatprep.subr.mxu0 0.0
    %3297 = vmatpush2.msra.mxu0 0.0
    %3298 = vmatprep.subr.mxu0 0.0
    %3299 = vmatpush2.msra.mxu0 0.0
    %3300 = vmatprep.subr.mxu0 0.0
    %3301 = vmatpush2.msra.mxu0 0.0
    %3302 = vmatprep.subr.mxu0 0.0
    %3303 = vmatpush2.msra.mxu0 0.0
    %3304 = vmatprep.subr.mxu0 0.0
    %3305 = vmatpush2.msra.mxu0 0.0
    %3306 = vmatprep.subr.mxu0 0.0
    %3307 = vmatpush2.msra.mxu0 0.0
    %3308 = vmatprep.subr.mxu0 0.0
    %3309 = vmatpush2.msra.mxu0 0.0
    %3310 = vmatprep.subr.mxu0 0.0
    %3311 = vmatpush2.msra.mxu0 0.0
    %3312 = vmatprep.subr.mxu0 0.0
    %3313 = vmatpush2.msra.mxu0 0.0
    %3314 = vmatprep.subr.mxu0 0.0
    %3315 = vmatpush2.msra.mxu0 0.0
    %3316 = vmatprep.subr.mxu0 0.0
    %3317 = vmatpush2.msra.mxu0 0.0
    %3318 = vmatprep.subr.mxu0 0.0
    %3319 = vmatpush2.msra.mxu0 0.0
    %3320 = vmatprep.subr.mxu0 0.0
    %3321 = vmatpush2.msra.mxu0 0.0
    %3322 = vmatprep.mubr.f32.mxu0 0.0
    %3323 = vmatmul.mubr.f32.gmra.mxu0 %v3185
    %v3324 = vpop.f32.mrf.mxu0
    %v3325 = vadd.f32 %v1967, %v3324
    %v3326 = vpop.f32.mrf.mxu0
    %3327 = vdwg.mxu0
    %v3329 = vrot.slane %v3254, 7
    %v3331 = vadd.f32 %v470, %v3329
    %v3332 = vxor.u32 %v3331, 2147483648
    %v3333 = vmul.f32 %v3332, 1.442695
    %v3334 = vpow.pop %v3333
    %v3335 = vadd.f32 %v3334, 1.0
    %v3336 = vrcp.pop %v3335
    %v3337 = vmul.f32 1.0, %v3336
    %v3339 = vrot.slane %v3256, 7
    %v3341 = vadd.f32 %v472, %v3339
    %v3342 = vxor.u32 %v3341, 2147483648
    %v3343 = vmul.f32 %v3342, 1.442695
    %v3344 = vpow.pop %v3343
    %v3345 = vadd.f32 %v3344, 1.0
    %v3346 = vrcp.pop %v3345
    %v3347 = vmul.f32 1.0, %v3346
    %v3349 = vrot.slane %v3325, 7
    %v3351 = vmul.f32 %v3337, %v3349
    %v3352 = vadd.f32 %v541, %v3351
    %v3353 = vtanh.pop %v3352
    %v3354 = vsub.f32 1.0, %v3347
    %v3355 = vmul.f32 %v3354, %v3353
    %v3356 = vmul.f32 %v3347, %v3182
    %v3357 = vadd.f32 %v3355, %v3356
    %3358 = vst [vmem:[#allocation2 + $0x6] sm:$0x2] %v3357
    %v3359 = vld [vmem:[#allocation2] sm:$0xff]
    %v3360 = vld [vmem:[#allocation9] sm:$0xff]
    %v3361 = vld [vmem:[#allocation9 + $0x8] sm:$0xff]
    %v3362 = vld [vmem:[#allocation9 + $0x10] sm:$0xff]
    %v3363 = vld [vmem:[#allocation9 + $0x18] sm:$0xff]
    %v3364 = vld [vmem:[#allocation9 + $0x20] sm:$0xff]
    %v3365 = vld [vmem:[#allocation9 + $0x28] sm:$0xff]
    %v3366 = vld [vmem:[#allocation9 + $0x30] sm:$0xff]
    %v3367 = vld [vmem:[#allocation9 + $0x38] sm:$0xff]
    %v3368 = vld [vmem:[#allocation9 + $0x40] sm:$0xff]
    %v3369 = vld [vmem:[#allocation9 + $0x48] sm:$0xff]
    %v3370 = vld [vmem:[#allocation9 + $0x50] sm:$0xff]
    %v3371 = vld [vmem:[#allocation9 + $0x58] sm:$0xff]
    %v3372 = vld [vmem:[#allocation9 + $0x60] sm:$0xff]
    %v3373 = vld [vmem:[#allocation9 + $0x68] sm:$0xff]
    %v3374 = vld [vmem:[#allocation9 + $0x70] sm:$0xff]
    %v3375 = vld [vmem:[#allocation9 + $0x78] sm:$0xff]
    %v3376 = vld [vmem:[#allocation9 + $0x80] sm:$0xff]
    %v3377 = vld [vmem:[#allocation9 + $0x88] sm:$0xff]
    %v3378 = vld [vmem:[#allocation9 + $0x90] sm:$0xff]
    %v3379 = vld [vmem:[#allocation9 + $0x98] sm:$0xff]
    %v3380 = vld [vmem:[#allocation9 + $0xa0] sm:$0xff]
    %v3381 = vld [vmem:[#allocation9 + $0xa8] sm:$0xff]
    %v3382 = vld [vmem:[#allocation9 + $0xb0] sm:$0xff]
    %v3383 = vld [vmem:[#allocation9 + $0xb8] sm:$0xff]
    %v3384 = vld [vmem:[#allocation9 + $0xc0] sm:$0xff]
    %v3385 = vld [vmem:[#allocation9 + $0xc8] sm:$0xff]
    %v3386 = vld [vmem:[#allocation9 + $0xd0] sm:$0xff]
    %v3387 = vld [vmem:[#allocation9 + $0xd8] sm:$0xff]
    %v3388 = vld [vmem:[#allocation9 + $0xe0] sm:$0xff]
    %v3389 = vld [vmem:[#allocation9 + $0xe8] sm:$0xff]
    %v3390 = vld [vmem:[#allocation9 + $0xf0] sm:$0xff]
    %v3391 = vld [vmem:[#allocation9 + $0xf8] sm:$0xff]
    %v3392 = vld [vmem:[%s11] sm:$0x3]
    %v3394 = vlaneseq
    %v3395 = vshrl.u32 %v3394, 7
    %v3396 = vsub.s32 0, %v3395
    %v3397 = vrot.slane %v3392, %v3396
    %v3398 = vlaneseq
    %v3399 = vshrl.u32 %v3398, 7
    %v3400 = vsub.s32 1, %v3399
    %v3401 = vrot.slane %v3392, %v3400
    %3404 = vmatprep.subr.mxu0 %v3391
    %3405 = vmatpush1.msra.mxu0 %v3390
    %3406 = vmatprep.subr.mxu0 %v3389
    %3407 = vmatpush1.msra.mxu0 %v3388
    %3408 = vmatprep.subr.mxu0 %v3387
    %3409 = vmatpush1.msra.mxu0 %v3386
    %3410 = vmatprep.subr.mxu0 %v3385
    %3411 = vmatpush1.msra.mxu0 %v3384
    %3412 = vmatprep.subr.mxu0 %v3383
    %3413 = vmatpush1.msra.mxu0 %v3382
    %3414 = vmatprep.subr.mxu0 %v3381
    %3415 = vmatpush1.msra.mxu0 %v3380
    %3416 = vmatprep.subr.mxu0 %v3379
    %3417 = vmatpush1.msra.mxu0 %v3378
    %3418 = vmatprep.subr.mxu0 %v3377
    %3419 = vmatpush1.msra.mxu0 %v3376
    %3420 = vmatprep.subr.mxu0 %v3375
    %3421 = vmatpush1.msra.mxu0 %v3374
    %3422 = vmatprep.subr.mxu0 %v3373
    %3423 = vmatpush1.msra.mxu0 %v3372
    %3424 = vmatprep.subr.mxu0 %v3371
    %3425 = vmatpush1.msra.mxu0 %v3370
    %3426 = vmatprep.subr.mxu0 %v3369
    %3427 = vmatpush1.msra.mxu0 %v3368
    %3428 = vmatprep.subr.mxu0 %v3367
    %3429 = vmatpush1.msra.mxu0 %v3366
    %3430 = vmatprep.subr.mxu0 %v3365
    %3431 = vmatpush1.msra.mxu0 %v3364
    %3432 = vmatprep.subr.mxu0 %v3363
    %3433 = vmatpush1.msra.mxu0 %v3362
    %3434 = vmatprep.subr.mxu0 %v3361
    %3435 = vmatpush1.msra.mxu0 %v3360
    %3436 = vmatprep.subr.mxu0 0.0
    %3437 = vmatpush2.msra.mxu0 0.0
    %3438 = vmatprep.subr.mxu0 0.0
    %3439 = vmatpush2.msra.mxu0 0.0
    %3440 = vmatprep.subr.mxu0 0.0
    %3441 = vmatpush2.msra.mxu0 0.0
    %3442 = vmatprep.subr.mxu0 0.0
    %3443 = vmatpush2.msra.mxu0 0.0
    %3444 = vmatprep.subr.mxu0 0.0
    %3445 = vmatpush2.msra.mxu0 0.0
    %3446 = vmatprep.subr.mxu0 0.0
    %3447 = vmatpush2.msra.mxu0 0.0
    %3448 = vmatprep.subr.mxu0 0.0
    %3449 = vmatpush2.msra.mxu0 0.0
    %3450 = vmatprep.subr.mxu0 0.0
    %3451 = vmatpush2.msra.mxu0 0.0
    %3452 = vmatprep.subr.mxu0 0.0
    %3453 = vmatpush2.msra.mxu0 0.0
    %3454 = vmatprep.subr.mxu0 0.0
    %3455 = vmatpush2.msra.mxu0 0.0
    %3456 = vmatprep.subr.mxu0 0.0
    %3457 = vmatpush2.msra.mxu0 0.0
    %3458 = vmatprep.subr.mxu0 0.0
    %3459 = vmatpush2.msra.mxu0 0.0
    %3460 = vmatprep.subr.mxu0 0.0
    %3461 = vmatpush2.msra.mxu0 0.0
    %3462 = vmatprep.subr.mxu0 0.0
    %3463 = vmatpush2.msra.mxu0 0.0
    %3464 = vmatprep.subr.mxu0 0.0
    %3465 = vmatpush2.msra.mxu0 0.0
    %3466 = vmatprep.subr.mxu0 0.0
    %3467 = vmatpush2.msra.mxu0 0.0
    %3468 = vmatprep.mubr.f32.mxu0 0.0
    %3469 = vmatmul.mubr.f32.gmra.mxu0 %v3359
    %v3470 = vpop.f32.mrf.mxu0
    %v3471 = vadd.f32 %v3397, %v3470
    %v3472 = vpop.f32.mrf.mxu0
    %v3473 = vadd.f32 %v3401, %v3472
    %3474 = vdwg.mxu0
    %3475 = vst [vmem:[#allocation11] sm:$0xff] %v3471
    %3476 = vst [vmem:[#allocation11 + $0x8] sm:$0xff] %v3473
    // Predicated region
    $region66: #{seq2seq_forward.1} parent=1 // pred_check
      _
    $region67: #{seq2seq_forward.1} parent=1 // pred_check_branch
      %3478 = sbr.rel (0) target = $region69
    $region68: #{seq2seq_forward.1} parent=1 // pred_region
      %s3480 = ssub.s32 256, 256
      %3481 = vsyncadd [#allocation5], %s3480
      %s3483 = sshll.u32 [#allocation11], 4
      %s3484 = int_to_ptr.vmem [resolvable:$true] %s3483
      %3486 = dma.vmem_to_hbm [thread:$0]  %s3484, 256, %s12, [#allocation5]
    $region69: #{seq2seq_forward.1} parent=1 // pred_fallthru
      _
    // Predicated region
    $region70: #{seq2seq_forward.1} parent=1 // pred_check
      _
    $region71: #{seq2seq_forward.1} parent=1 // pred_check_branch
      %3488 = sbr.rel (0) target = $region73
    $region72: #{seq2seq_forward.1} parent=1 // pred_region
      %3489 = dma.done [#allocation5], 256
    $region73: #{seq2seq_forward.1} parent=1 // pred_fallthru
      _
    %3490 = vsyncpa [#allocation4], 1
    %3491 = vsyncpa [#allocation7], 1
    %3492 = vsyncpa [#allocation10], 1
    %3493 = vsyncpa [#allocation5], 1

</llo_original>
